<compile_context>
chip_gen: v6e
topology: v6e:2x2x1
jax: 0.10.0
libtpu: 0.0.40
codegen_flags: <defaults>
</compile_context>

<pallas_src>
from functools import partial

import jax
import jax.numpy as jnp
from jax import lax
from jax.experimental import pallas as pl
from jax.experimental.pallas import tpu as pltpu

LANE = 128   # channel padding granularity (vreg lane width)
SUB = 8      # sublane granularity


def _round_up(x, m):
    return (x + m - 1) // m * m


def _pick_ty(ho, xs, cp):
    """Row-tile size: keep the f32 accumulator (ty*xs, cp) around 256 KiB."""
    target_rows = max(SUB, 65536 // cp)
    ty = max(1, min(ho, max(1, target_rows // xs)))
    while ho % ty:
        ty -= 1
    return ty


def _vmem_limit(bytes_needed):
    try:
        cap = int(pltpu.get_tpu_info().vmem_capacity_bytes) * 3 // 4
    except Exception:
        cap = 48 << 20          # safe default (v7x has 64 MiB physical VMEM)
    return int(max(32 << 20, min(cap, bytes_needed)))


# ----------------------------- Pallas kernel -------------------------------- #

def _conv3x3_tile(x_ref, w_ref, acc, *, base, stride, cin_p, xs, mrows):
    """Accumulate a 3x3 conv row-tile as 9 contiguous-row-slice MXU matmuls.

    x_ref : (rows, groups*cin_p) flat padded activation (bf16)
    w_ref : (9, cin_p, cout_p)   BN-scaled weight taps (bf16)
    acc   : (mrows, cout_p)      f32 accumulator (in vregs / VMEM values)
    """
    for dy in range(3):
        qy, ry = divmod(dy, stride)
        for dx in range(3):
            qx, rx = divmod(dx, stride)
            c0 = (ry * stride + rx) * cin_p
            a = x_ref[pl.ds(base + qy * xs + qx, mrows), pl.ds(c0, cin_p)]
            acc = acc + jnp.dot(a, w_ref[dy * 3 + dx],
                                preferred_element_type=jnp.float32)
    return acc


def _basic_block_kernel(*refs, stride, cin_p, cp, ho, wo, xs, ty, proj):
    """Fused BasicBlock: conv1+bn1+relu -> VMEM -> conv2+bn2+shortcut+relu."""
    if proj:
        (x_ref, w1_ref, b1_ref, w2_ref, b2_ref,
         wsc_ref, bsc_ref, o_ref, mid_ref) = refs
    else:
        (x_ref, w1_ref, b1_ref, w2_ref, b2_ref,
         res_ref, o_ref, mid_ref) = refs

    mrows = ty * xs
    gm = ho // ty

    # Zero the halo rows of the padded VMEM intermediate (cheap; done every
    # step so the kernel stays correct if the batch axis is core-sharded).
    halo = jnp.zeros((xs + SUB, cp), mid_ref.dtype)
    mid_ref[pl.ds(0, xs + SUB), :] = halo
    mid_ref[pl.ds((ho + 1) * xs, xs + SUB), :] = halo

    col = lax.broadcasted_iota(jnp.int32, (ty, xs, 1), 1)
    col_valid = col < wo

    # ---- conv1 -> bn1 -> relu, stored (pre-padded for conv2) in VMEM ------ #
    for t in range(gm):
        base = t * mrows
        acc = jnp.zeros((mrows, cp), jnp.float32)
        acc = _conv3x3_tile(x_ref, w1_ref, acc, base=base, stride=stride,
                            cin_p=cin_p, xs=xs, mrows=mrows)
        h = jnp.maximum(acc + b1_ref[...], 0.0).reshape(ty, xs, cp)
        h = jnp.where(col_valid, h, 0.0).astype(mid_ref.dtype)
        # out1[y, x] lives at flat row (y+1)*xs + (x+1)  (conv2's padding)
        mid_ref[pl.ds(base + xs + 1, mrows), :] = h.reshape(mrows, cp)

    # ---- conv2 -> bn2 -> (+shortcut) -> relu -> output -------------------- #
    for t in range(gm):
        base = t * mrows
        acc = jnp.zeros((mrows, cp), jnp.float32)
        acc = _conv3x3_tile(mid_ref, w2_ref, acc, base=base, stride=1,
                            cin_p=cp, xs=xs, mrows=mrows)
        acc = acc + b2_ref[...]
        if proj:
            # Fused 1x1 projection shortcut (+ its BN): reads tap (1, 1) of
            # conv1's input slab, already resident in VMEM -> no extra DMA.
            sc_q, sc_r = divmod(1, stride)
            c0 = (sc_r * stride + sc_r) * cin_p
            a = x_ref[pl.ds(base + sc_q * xs + sc_q, mrows), pl.ds(c0, cin_p)]
            acc = acc + jnp.dot(a, wsc_ref[...],
                                preferred_element_type=jnp.float32)
            acc = acc + bsc_ref[...]
        out_t = acc.reshape(ty, xs, cp)[:, :wo, :]
        if not proj:
            out_t = out_t + res_ref[pl.ds(t * ty, ty), :, :]   # f32 residual
        out_t = jnp.maximum(out_t, 0.0)
        o_ref[pl.ds(t * ty, ty), :, :] = out_t.astype(o_ref.dtype)


# ------------------------------- JAX glue ----------------------------------- #

def _fold_bn(w_oihw, bn, cin_p, cout_p, eps=1e-5):
    """OIHW weight + BN -> (kh*kw, cin_p, cout_p) bf16 scaled taps, (1, cout_p) f32 bias."""
    cout, cin, kh, kw = w_oihw.shape
    scale = bn["gamma"] / jnp.sqrt(bn["var"] + eps)
    bias = bn["beta"] - bn["mean"] * scale
    w = jnp.transpose(w_oihw, (2, 3, 1, 0)) * scale
    w = jnp.pad(w, ((0, 0), (0, 0), (0, cin_p - cin), (0, cout_p - cout)))
    w = w.reshape(kh * kw, cin_p, cout_p).astype(jnp.bfloat16)
    b = jnp.pad(bias, (0, cout_p - cout)).reshape(1, cout_p).astype(jnp.float32)
    return w, b


def _pad_s2d_flat(x_nhwc, *, stride, cin_p, ys, xs, pad=1):
    """Pad (spatial + channels), space-to-depth, flatten rows -> (N, ys*xs, s*s*cin_p) bf16."""
    n, h, w, c = x_nhwc.shape
    hp, wp = ys * stride, xs * stride
    xq = jnp.pad(x_nhwc.astype(jnp.bfloat16),
                 ((0, 0), (pad, hp - h - pad), (pad, wp - w - pad),
                  (0, cin_p - c)))
    if stride > 1:
        xq = xq.reshape(n, ys, stride, xs, stride, cin_p)
        xq = xq.transpose(0, 1, 3, 2, 4, 5)
    return xq.reshape(n, ys * xs, stride * stride * cin_p)


def basic_block_forward(x_nchw, params, stride):
    """Pallas-backed BasicBlock forward (inference).  x: NCHW f32 -> NCHW f32."""
    n, cin, h, w = x_nchw.shape
    planes = params["conv1_w"].shape[0]
    proj = (stride != 1) or (cin != planes)

    cin_p = _round_up(cin, LANE)
    cp = _round_up(planes, LANE)
    ho = (h - 1) // stride + 1
    wo = (w - 1) // stride + 1

    xs = _round_up(wo + 2, SUB)          # unified padded width (s2d cells)
    qy_max = (3 - 1) // stride
    ys = ho + qy_max + 1                 # +1 zero row so tap slices stay in bounds
    ty = _pick_ty(ho, xs, cp)
    s_rows = (ho + 2) * xs + SUB         # padded conv2 input held in VMEM

    x_nhwc = jnp.transpose(x_nchw, (0, 2, 3, 1))
    xf = _pad_s2d_flat(x_nhwc, stride=stride, cin_p=cin_p, ys=ys, xs=xs)

    w1, b1 = _fold_bn(params["conv1_w"], params["bn1"], cin_p, cp)
    w2, b2 = _fold_bn(params["conv2_w"], params["bn2"], cp, cp)

    r1, cs1 = xf.shape[1], xf.shape[2]
    in_specs = [
        pl.BlockSpec((None, r1, cs1), lambda i: (i, 0, 0)),
        pl.BlockSpec((9, cin_p, cp), lambda i: (0, 0, 0)),
        pl.BlockSpec((1, cp), lambda i: (0, 0)),
        pl.BlockSpec((9, cp, cp), lambda i: (0, 0, 0)),
        pl.BlockSpec((1, cp), lambda i: (0, 0)),
    ]
    args = [xf, w1, b1, w2, b2]

    if proj:
        wsc, bsc = _fold_bn(params["sc_w"], params["sc_bn"], cin_p, cp)
        wsc = wsc.reshape(cin_p, cp)
        in_specs += [pl.BlockSpec((cin_p, cp), lambda i: (0, 0)),
                     pl.BlockSpec((1, cp), lambda i: (0, 0))]
        args += [wsc, bsc]
    else:
        # Identity shortcut: keep the residual in f32 for the epilogue add.
        res = jnp.pad(x_nhwc, ((0, 0), (0, 0), (0, 0), (0, cp - cin)))
        in_specs.append(pl.BlockSpec((None, ho, wo, cp), lambda i: (i, 0, 0, 0)))
        args.append(res)

    kernel = partial(_basic_block_kernel, stride=stride, cin_p=cin_p, cp=cp,
                     ho=ho, wo=wo, xs=xs, ty=ty, proj=proj)

    # VMEM accounting: only per-image blocks are double-buffered; weights/bias
    # have a constant block index, the scratch/accumulator exist once.
    bytes_needed = (2 * r1 * cs1 * 2                          # x slab (bf16)
                    + 9 * cin_p * cp * 2 + 9 * cp * cp * 2    # weights
                    + 4 * cp * 4                              # biases
                    + (cin_p * cp * 2 if proj else 2 * ho * wo * cp * 4)
                    + 2 * ho * wo * cp * 2                    # output (bf16)
                    + s_rows * cp * 2                         # VMEM intermediate
                    + 4 * ty * xs * cp * 4                    # acc + temps
                    + (8 << 20))                              # headroom

    out = pl.pallas_call(
        kernel,
        out_shape=jax.ShapeDtypeStruct((n, ho, wo, cp), jnp.bfloat16),
        grid=(n,),
        in_specs=in_specs,
        out_specs=pl.BlockSpec((None, ho, wo, cp), lambda i: (i, 0, 0, 0)),
        scratch_shapes=[pltpu.VMEM((s_rows, cp), jnp.bfloat16)],
        compiler_params=pltpu.CompilerParams(
            dimension_semantics=("parallel",),
            vmem_limit_bytes=_vmem_limit(bytes_needed)),
    )(*args)

    out = out[..., :planes]                      # drop channel padding
    return jnp.transpose(out, (0, 3, 1, 2)).astype(jnp.float32)


# --------------------------- reference (plain JAX) -------------------------- #

def conv_ref(x, w, stride, padding):
    return lax.conv_general_dilated(
        x, w, window_strides=(stride, stride),
        padding=[(padding, padding), (padding, padding)],
        dimension_numbers=("NCHW", "OIHW", "NCHW"))


def bn_ref(x, bn, eps=1e-5):
    s = bn["gamma"] / jnp.sqrt(bn["var"] + eps)
    b = bn["beta"] - bn["mean"] * s
    return x * s[None, :, None, None] + b[None, :, None, None]


def basic_block_ref(x, params, stride):
    out = jax.nn.relu(bn_ref(conv_ref(x, params["conv1_w"], stride, 1),
                             params["bn1"]))
    out = bn_ref(conv_ref(out, params["conv2_w"], 1, 1), params["bn2"])
    if stride != 1 or x.shape[1] != params["conv1_w"].shape[0]:
        sc = bn_ref(conv_ref(x, params["sc_w"], stride, 0), params["sc_bn"])
    else:
        sc = x
    return jax.nn.relu(out + sc)


# --------------------------------- params ----------------------------------- #

def make_bn(key, c):
    k1, k2, k3, k4 = jax.random.split(key, 4)
    return {
        "gamma": 0.5 + jax.random.uniform(k1, (c,), jnp.float32),
        "beta": 0.1 * jax.random.normal(k2, (c,), jnp.float32),
        "mean": 0.1 * jax.random.normal(k3, (c,), jnp.float32),
        "var": 0.5 + jax.random.uniform(k4, (c,), jnp.float32),
    }


def make_params(key, in_planes, planes, stride):
    ks = jax.random.split(key, 6)
    params = {
        "conv1_w": 0.1 * jax.random.normal(ks[0], (planes, in_planes, 3, 3),
                                           jnp.float32),
        "bn1": make_bn(ks[1], planes),
        "conv2_w": 0.1 * jax.random.normal(ks[2], (planes, planes, 3, 3),
                                           jnp.float32),
        "bn2": make_bn(ks[3], planes),
    }
    if stride != 1 or in_planes != planes:
        params["sc_w"] = 0.1 * jax.random.normal(
            ks[4], (planes, in_planes, 1, 1), jnp.float32)
        params["sc_bn"] = make_bn(ks[5], planes)
    return params


# ---------------------------------- main ------------------------------------ #

if __name__ == "__main__":
    key = jax.random.PRNGKey(0)
    fwd = jax.jit(basic_block_forward, static_argnums=(2,))

    # (N, Cin, H, W, planes, stride): exercises both the fused projection
    # shortcut path (stride=2) and the identity shortcut path (stride=1).
    configs = [
        (2, 4, 16, 16, 8, 2),
        (2, 8, 16, 16, 8, 1),
    ]
    for idx, (n, cin, h, w, planes, stride) in enumerate(configs):
        k_x, k_p, key = jax.random.split(key, 3)
        x = jax.random.normal(k_x, (n, cin, h, w), jnp.float32)
        params = make_params(k_p, cin, planes, stride)

        out = jax.block_until_ready(fwd(x, params, stride))
        ref = jax.block_until_ready(basic_block_ref(x, params, stride))

        assert out.shape == ref.shape == (n, planes, h // stride, w // stride), \
            (idx, out.shape)
        max_err = float(jnp.max(jnp.abs(out - ref)))
        # bf16 activations/weights on the MXU + bf16 stores, f32 accumulation.
        assert jnp.allclose(out, ref, rtol=4e-2, atol=4e-2), (idx, max_err)

    print("KERNEL_OK")
</pallas_src>

<mosaic_0001>
module attributes {stable_mosaic.version = 11 : i64} {
  func.func @_basic_block_kernel(%arg0: i32, %arg1: memref<1x160x512xbf16, #tpu.memory_space<vmem>>, %arg2: memref<9x128x128xbf16, #tpu.memory_space<vmem>>, %arg3: memref<1x128xf32, #tpu.memory_space<vmem>>, %arg4: memref<9x128x128xbf16, #tpu.memory_space<vmem>>, %arg5: memref<1x128xf32, #tpu.memory_space<vmem>>, %arg6: memref<128x128xbf16, #tpu.memory_space<vmem>>, %arg7: memref<1x128xf32, #tpu.memory_space<vmem>>, %arg8: memref<1x8x8x128xbf16, #tpu.memory_space<vmem>>, %arg9: memref<168x128xbf16, #tpu.memory_space<vmem>>) attributes {dimension_semantics = [#tpu.dimension_semantics<parallel>], iteration_bounds = array<i64: 2>, scalar_prefetch = 0 : i64, scratch_operands = 1 : i64, tpu.core_type = #tpu.core_type<tc>, window_params = [{transform_indices = @transform_0, window_bounds = array<i64: 1, 160, 512>}, {pipeline_mode = #tpu.pipeline_mode<synchronous>, transform_indices = @transform_1, window_bounds = array<i64: 9, 128, 128>}, {pipeline_mode = #tpu.pipeline_mode<synchronous>, transform_indices = @transform_2, window_bounds = array<i64: 1, 128>}, {pipeline_mode = #tpu.pipeline_mode<synchronous>, transform_indices = @transform_3, window_bounds = array<i64: 9, 128, 128>}, {pipeline_mode = #tpu.pipeline_mode<synchronous>, transform_indices = @transform_4, window_bounds = array<i64: 1, 128>}, {pipeline_mode = #tpu.pipeline_mode<synchronous>, transform_indices = @transform_5, window_bounds = array<i64: 128, 128>}, {pipeline_mode = #tpu.pipeline_mode<synchronous>, transform_indices = @transform_6, window_bounds = array<i64: 1, 128>}, {transform_indices = @transform_7, window_bounds = array<i64: 1, 8, 8, 128>}]} {
    %cst = arith.constant 0.000000e+00 : bf16
    %0 = vector.broadcast %cst : bf16 to vector<24x128xbf16>
    %c0 = arith.constant 0 : index
    %c0_0 = arith.constant 0 : index
    %1 = vector.load %arg9[%c0, %c0_0] : memref<168x128xbf16, #tpu.memory_space<vmem>>, vector<24x128xbf16>
    tpu.vector_store %arg9[%c0, %c0_0], %0 {strides = array<i32>} : memref<168x128xbf16, #tpu.memory_space<vmem>>, vector<24x128xbf16>,
    %c144 = arith.constant 144 : index
    %c0_1 = arith.constant 0 : index
    %2 = vector.load %arg9[%c144, %c0_1] : memref<168x128xbf16, #tpu.memory_space<vmem>>, vector<24x128xbf16>
    tpu.vector_store %arg9[%c144, %c0_1], %0 {strides = array<i32>} : memref<168x128xbf16, #tpu.memory_space<vmem>>, vector<24x128xbf16>,
    %3 = tpu.iota {dimensions = array<i32: 1>} : vector<8x16x1xi32>
    %c8_i32 = arith.constant 8 : i32
    %4 = vector.broadcast %c8_i32 : i32 to vector<8x16x1xi32>
    %5 = arith.cmpi slt, %3, %4 : vector<8x16x1xi32>
    %cst_2 = arith.constant 0.000000e+00 : f32
    %6 = vector.broadcast %cst_2 : f32 to vector<128x128xf32>
    %c0_3 = arith.constant 0 : index
    %c0_4 = arith.constant 0 : index
    %c0_5 = arith.constant 0 : index
    %7 = vector.load %arg1[%c0_3, %c0_4, %c0_5] : memref<1x160x512xbf16, #tpu.memory_space<vmem>>, vector<1x128x128xbf16>
    %8 = vector.shape_cast %7 : vector<1x128x128xbf16> to vector<128x128xbf16>
    %c0_6 = arith.constant 0 : index
    %c0_7 = arith.constant 0 : index
    %c0_8 = arith.constant 0 : index
    %9 = vector.load %arg2[%c0_6, %c0_7, %c0_8] : memref<9x128x128xbf16, #tpu.memory_space<vmem>>, vector<1x128x128xbf16>
    %10 = vector.shape_cast %9 : vector<1x128x128xbf16> to vector<128x128xbf16>
    %cst_9 = arith.constant dense<0.000000e+00> : vector<128x128xf32>
    %11 = tpu.matmul %8, %10, %cst_9 {dimension_numbers = #tpu.dot_dimension_numbers<[1], [0], [0], [1], [0, 0, 1, 1], [], []>} : vector<128x128xbf16>, vector<128x128xbf16>, vector<128x128xf32> -> vector<128x128xf32>
    %12 = arith.addf %6, %11 : vector<128x128xf32>
    %c0_10 = arith.constant 0 : index
    %c0_11 = arith.constant 0 : index
    %c128 = arith.constant 128 : index
    %13 = vector.load %arg1[%c0_10, %c0_11, %c128] : memref<1x160x512xbf16, #tpu.memory_space<vmem>>, vector<1x128x128xbf16>
    %14 = vector.shape_cast %13 : vector<1x128x128xbf16> to vector<128x128xbf16>
    %c1 = arith.constant 1 : index
    %c0_12 = arith.constant 0 : index
    %c0_13 = arith.constant 0 : index
    %15 = vector.load %arg2[%c1, %c0_12, %c0_13] : memref<9x128x128xbf16, #tpu.memory_space<vmem>>, vector<1x128x128xbf16>
    %16 = vector.shape_cast %15 : vector<1x128x128xbf16> to vector<128x128xbf16>
    %cst_14 = arith.constant dense<0.000000e+00> : vector<128x128xf32>
    %17 = tpu.matmul %14, %16, %cst_14 {dimension_numbers = #tpu.dot_dimension_numbers<[1], [0], [0], [1], [0, 0, 1, 1], [], []>} : vector<128x128xbf16>, vector<128x128xbf16>, vector<128x128xf32> -> vector<128x128xf32>
    %18 = arith.addf %12, %17 : vector<128x128xf32>
    %c0_15 = arith.constant 0 : index
    %c1_16 = arith.constant 1 : index
    %c0_17 = arith.constant 0 : index
    %19 = vector.load %arg1[%c0_15, %c1_16, %c0_17] : memref<1x160x512xbf16, #tpu.memory_space<vmem>>, vector<1x128x128xbf16>
    %20 = vector.shape_cast %19 : vector<1x128x128xbf16> to vector<128x128xbf16>
    %c2 = arith.constant 2 : index
    %c0_18 = arith.constant 0 : index
    %c0_19 = arith.constant 0 : index
    %21 = vector.load %arg2[%c2, %c0_18, %c0_19] : memref<9x128x128xbf16, #tpu.memory_space<vmem>>, vector<1x128x128xbf16>
    %22 = vector.shape_cast %21 : vector<1x128x128xbf16> to vector<128x128xbf16>
    %cst_20 = arith.constant dense<0.000000e+00> : vector<128x128xf32>
    %23 = tpu.matmul %20, %22, %cst_20 {dimension_numbers = #tpu.dot_dimension_numbers<[1], [0], [0], [1], [0, 0, 1, 1], [], []>} : vector<128x128xbf16>, vector<128x128xbf16>, vector<128x128xf32> -> vector<128x128xf32>
    %24 = arith.addf %18, %23 : vector<128x128xf32>
    %c0_21 = arith.constant 0 : index
    %c0_22 = arith.constant 0 : index
    %c256 = arith.constant 256 : index
    %25 = vector.load %arg1[%c0_21, %c0_22, %c256] : memref<1x160x512xbf16, #tpu.memory_space<vmem>>, vector<1x128x128xbf16>
    %26 = vector.shape_cast %25 : vector<1x128x128xbf16> to vector<128x128xbf16>
    %c3 = arith.constant 3 : index
    %c0_23 = arith.constant 0 : index
    %c0_24 = arith.constant 0 : index
    %27 = vector.load %arg2[%c3, %c0_23, %c0_24] : memref<9x128x128xbf16, #tpu.memory_space<vmem>>, vector<1x128x128xbf16>
    %28 = vector.shape_cast %27 : vector<1x128x128xbf16> to vector<128x128xbf16>
    %cst_25 = arith.constant dense<0.000000e+00> : vector<128x128xf32>
    %29 = tpu.matmul %26, %28, %cst_25 {dimension_numbers = #tpu.dot_dimension_numbers<[1], [0], [0], [1], [0, 0, 1, 1], [], []>} : vector<128x128xbf16>, vector<128x128xbf16>, vector<128x128xf32> -> vector<128x128xf32>
    %30 = arith.addf %24, %29 : vector<128x128xf32>
    %c0_26 = arith.constant 0 : index
    %c0_27 = arith.constant 0 : index
    %c384 = arith.constant 384 : index
    %31 = vector.load %arg1[%c0_26, %c0_27, %c384] : memref<1x160x512xbf16, #tpu.memory_space<vmem>>, vector<1x128x128xbf16>
    %32 = vector.shape_cast %31 : vector<1x128x128xbf16> to vector<128x128xbf16>
    %c4 = arith.constant 4 : index
    %c0_28 = arith.constant 0 : index
    %c0_29 = arith.constant 0 : index
    %33 = vector.load %arg2[%c4, %c0_28, %c0_29] : memref<9x128x128xbf16, #tpu.memory_space<vmem>>, vector<1x128x128xbf16>
    %34 = vector.shape_cast %33 : vector<1x128x128xbf16> to vector<128x128xbf16>
    %cst_30 = arith.constant dense<0.000000e+00> : vector<128x128xf32>
    %35 = tpu.matmul %32, %34, %cst_30 {dimension_numbers = #tpu.dot_dimension_numbers<[1], [0], [0], [1], [0, 0, 1, 1], [], []>} : vector<128x128xbf16>, vector<128x128xbf16>, vector<128x128xf32> -> vector<128x128xf32>
    %36 = arith.addf %30, %35 : vector<128x128xf32>
    %c0_31 = arith.constant 0 : index
    %c1_32 = arith.constant 1 : index
    %c256_33 = arith.constant 256 : index
    %37 = vector.load %arg1[%c0_31, %c1_32, %c256_33] : memref<1x160x512xbf16, #tpu.memory_space<vmem>>, vector<1x128x128xbf16>
    %38 = vector.shape_cast %37 : vector<1x128x128xbf16> to vector<128x128xbf16>
    %c5 = arith.constant 5 : index
    %c0_34 = arith.constant 0 : index
    %c0_35 = arith.constant 0 : index
    %39 = vector.load %arg2[%c5, %c0_34, %c0_35] : memref<9x128x128xbf16, #tpu.memory_space<vmem>>, vector<1x128x128xbf16>
    %40 = vector.shape_cast %39 : vector<1x128x128xbf16> to vector<128x128xbf16>
    %cst_36 = arith.constant dense<0.000000e+00> : vector<128x128xf32>
    %41 = tpu.matmul %38, %40, %cst_36 {dimension_numbers = #tpu.dot_dimension_numbers<[1], [0], [0], [1], [0, 0, 1, 1], [], []>} : vector<128x128xbf16>, vector<128x128xbf16>, vector<128x128xf32> -> vector<128x128xf32>
    %42 = arith.addf %36, %41 : vector<128x128xf32>
    %c0_37 = arith.constant 0 : index
    %c16 = arith.constant 16 : index
    %c0_38 = arith.constant 0 : index
    %43 = vector.load %arg1[%c0_37, %c16, %c0_38] : memref<1x160x512xbf16, #tpu.memory_space<vmem>>, vector<1x128x128xbf16>
    %44 = vector.shape_cast %43 : vector<1x128x128xbf16> to vector<128x128xbf16>
    %c6 = arith.constant 6 : index
    %c0_39 = arith.constant 0 : index
    %c0_40 = arith.constant 0 : index
    %45 = vector.load %arg2[%c6, %c0_39, %c0_40] : memref<9x128x128xbf16, #tpu.memory_space<vmem>>, vector<1x128x128xbf16>
    %46 = vector.shape_cast %45 : vector<1x128x128xbf16> to vector<128x128xbf16>
    %cst_41 = arith.constant dense<0.000000e+00> : vector<128x128xf32>
    %47 = tpu.matmul %44, %46, %cst_41 {dimension_numbers = #tpu.dot_dimension_numbers<[1], [0], [0], [1], [0, 0, 1, 1], [], []>} : vector<128x128xbf16>, vector<128x128xbf16>, vector<128x128xf32> -> vector<128x128xf32>
    %48 = arith.addf %42, %47 : vector<128x128xf32>
    %c0_42 = arith.constant 0 : index
    %c16_43 = arith.constant 16 : index
    %c128_44 = arith.constant 128 : index
    %49 = vector.load %arg1[%c0_42, %c16_43, %c128_44] : memref<1x160x512xbf16, #tpu.memory_space<vmem>>, vector<1x128x128xbf16>
    %50 = vector.shape_cast %49 : vector<1x128x128xbf16> to vector<128x128xbf16>
    %c7 = arith.constant 7 : index
    %c0_45 = arith.constant 0 : index
    %c0_46 = arith.constant 0 : index
    %51 = vector.load %arg2[%c7, %c0_45, %c0_46] : memref<9x128x128xbf16, #tpu.memory_space<vmem>>, vector<1x128x128xbf16>
    %52 = vector.shape_cast %51 : vector<1x128x128xbf16> to vector<128x128xbf16>
    %cst_47 = arith.constant dense<0.000000e+00> : vector<128x128xf32>
    %53 = tpu.matmul %50, %52, %cst_47 {dimension_numbers = #tpu.dot_dimension_numbers<[1], [0], [0], [1], [0, 0, 1, 1], [], []>} : vector<128x128xbf16>, vector<128x128xbf16>, vector<128x128xf32> -> vector<128x128xf32>
    %54 = arith.addf %48, %53 : vector<128x128xf32>
    %c0_48 = arith.constant 0 : index
    %c17 = arith.constant 17 : index
    %c0_49 = arith.constant 0 : index
    %55 = vector.load %arg1[%c0_48, %c17, %c0_49] : memref<1x160x512xbf16, #tpu.memory_space<vmem>>, vector<1x128x128xbf16>
    %56 = vector.shape_cast %55 : vector<1x128x128xbf16> to vector<128x128xbf16>
    %c8 = arith.constant 8 : index
    %c0_50 = arith.constant 0 : index
    %c0_51 = arith.constant 0 : index
    %57 = vector.load %arg2[%c8, %c0_50, %c0_51] : memref<9x128x128xbf16, #tpu.memory_space<vmem>>, vector<1x128x128xbf16>
    %58 = vector.shape_cast %57 : vector<1x128x128xbf16> to vector<128x128xbf16>
    %cst_52 = arith.constant dense<0.000000e+00> : vector<128x128xf32>
    %59 = tpu.matmul %56, %58, %cst_52 {dimension_numbers = #tpu.dot_dimension_numbers<[1], [0], [0], [1], [0, 0, 1, 1], [], []>} : vector<128x128xbf16>, vector<128x128xbf16>, vector<128x128xf32> -> vector<128x128xf32>
    %60 = arith.addf %54, %59 : vector<128x128xf32>
    %c0_53 = arith.constant 0 : index
    %c0_54 = arith.constant 0 : index
    %61 = vector.load %arg3[%c0_53, %c0_54] : memref<1x128xf32, #tpu.memory_space<vmem>>, vector<1x128xf32>
    %62 = vector.broadcast %61 : vector<1x128xf32> to vector<128x128xf32>
    %63 = arith.addf %60, %62 : vector<128x128xf32>
    %cst_55 = arith.constant 0.000000e+00 : f32
    %64 = vector.broadcast %cst_55 : f32 to vector<128x128xf32>
    %65 = arith.maximumf %63, %64 : vector<128x128xf32>
    %66 = vector.shape_cast %65 : vector<128x128xf32> to vector<8x16x128xf32>
    %cst_56 = arith.constant 0.000000e+00 : f32
    %67 = vector.shape_cast %5 : vector<8x16x1xi1> to vector<8x16x1xi1>
    %68 = vector.broadcast %67 : vector<8x16x1xi1> to vector<8x16x128xi1>
    %69 = vector.broadcast %cst_56 : f32 to vector<8x16x128xf32>
    %70 = arith.select %68, %66, %69 : vector<8x16x128xi1>, vector<8x16x128xf32>
    %71 = arith.truncf %70 : vector<8x16x128xf32> to vector<8x16x128xbf16>
    %72 = vector.shape_cast %71 : vector<8x16x128xbf16> to vector<128x128xbf16>
    %c17_57 = arith.constant 17 : index
    %c0_58 = arith.constant 0 : index
    %73 = vector.load %arg9[%c17_57, %c0_58] : memref<168x128xbf16, #tpu.memory_space<vmem>>, vector<128x128xbf16>
    tpu.vector_store %arg9[%c17_57, %c0_58], %72 {strides = array<i32>} : memref<168x128xbf16, #tpu.memory_space<vmem>>, vector<128x128xbf16>,
    %cst_59 = arith.constant 0.000000e+00 : f32
    %74 = vector.broadcast %cst_59 : f32 to vector<128x128xf32>
    %c0_60 = arith.constant 0 : index
    %c0_61 = arith.constant 0 : index
    %75 = vector.load %arg9[%c0_60, %c0_61] : memref<168x128xbf16, #tpu.memory_space<vmem>>, vector<128x128xbf16>
    %c0_62 = arith.constant 0 : index
    %c0_63 = arith.constant 0 : index
    %c0_64 = arith.constant 0 : index
    %76 = vector.load %arg4[%c0_62, %c0_63, %c0_64] : memref<9x128x128xbf16, #tpu.memory_space<vmem>>, vector<1x128x128xbf16>
    %77 = vector.shape_cast %76 : vector<1x128x128xbf16> to vector<128x128xbf16>
    %cst_65 = arith.constant dense<0.000000e+00> : vector<128x128xf32>
    %78 = tpu.matmul %75, %77, %cst_65 {dimension_numbers = #tpu.dot_dimension_numbers<[1], [0], [0], [1], [0, 0, 1, 1], [], []>} : vector<128x128xbf16>, vector<128x128xbf16>, vector<128x128xf32> -> vector<128x128xf32>
    %79 = arith.addf %74, %78 : vector<128x128xf32>
    %c1_66 = arith.constant 1 : index
    %c0_67 = arith.constant 0 : index
    %80 = vector.load %arg9[%c1_66, %c0_67] : memref<168x128xbf16, #tpu.memory_space<vmem>>, vector<128x128xbf16>
    %c1_68 = arith.constant 1 : index
    %c0_69 = arith.constant 0 : index
    %c0_70 = arith.constant 0 : index
    %81 = vector.load %arg4[%c1_68, %c0_69, %c0_70] : memref<9x128x128xbf16, #tpu.memory_space<vmem>>, vector<1x128x128xbf16>
    %82 = vector.shape_cast %81 : vector<1x128x128xbf16> to vector<128x128xbf16>
    %cst_71 = arith.constant dense<0.000000e+00> : vector<128x128xf32>
    %83 = tpu.matmul %80, %82, %cst_71 {dimension_numbers = #tpu.dot_dimension_numbers<[1], [0], [0], [1], [0, 0, 1, 1], [], []>} : vector<128x128xbf16>, vector<128x128xbf16>, vector<128x128xf32> -> vector<128x128xf32>
    %84 = arith.addf %79, %83 : vector<128x128xf32>
    %c2_72 = arith.constant 2 : index
    %c0_73 = arith.constant 0 : index
    %85 = vector.load %arg9[%c2_72, %c0_73] : memref<168x128xbf16, #tpu.memory_space<vmem>>, vector<128x128xbf16>
    %c2_74 = arith.constant 2 : index
    %c0_75 = arith.constant 0 : index
    %c0_76 = arith.constant 0 : index
    %86 = vector.load %arg4[%c2_74, %c0_75, %c0_76] : memref<9x128x128xbf16, #tpu.memory_space<vmem>>, vector<1x128x128xbf16>
    %87 = vector.shape_cast %86 : vector<1x128x128xbf16> to vector<128x128xbf16>
    %cst_77 = arith.constant dense<0.000000e+00> : vector<128x128xf32>
    %88 = tpu.matmul %85, %87, %cst_77 {dimension_numbers = #tpu.dot_dimension_numbers<[1], [0], [0], [1], [0, 0, 1, 1], [], []>} : vector<128x128xbf16>, vector<128x128xbf16>, vector<128x128xf32> -> vector<128x128xf32>
    %89 = arith.addf %84, %88 : vector<128x128xf32>
    %c16_78 = arith.constant 16 : index
    %c0_79 = arith.constant 0 : index
    %90 = vector.load %arg9[%c16_78, %c0_79] : memref<168x128xbf16, #tpu.memory_space<vmem>>, vector<128x128xbf16>
    %c3_80 = arith.constant 3 : index
    %c0_81 = arith.constant 0 : index
    %c0_82 = arith.constant 0 : index
    %91 = vector.load %arg4[%c3_80, %c0_81, %c0_82] : memref<9x128x128xbf16, #tpu.memory_space<vmem>>, vector<1x128x128xbf16>
    %92 = vector.shape_cast %91 : vector<1x128x128xbf16> to vector<128x128xbf16>
    %cst_83 = arith.constant dense<0.000000e+00> : vector<128x128xf32>
    %93 = tpu.matmul %90, %92, %cst_83 {dimension_numbers = #tpu.dot_dimension_numbers<[1], [0], [0], [1], [0, 0, 1, 1], [], []>} : vector<128x128xbf16>, vector<128x128xbf16>, vector<128x128xf32> -> vector<128x128xf32>
    %94 = arith.addf %89, %93 : vector<128x128xf32>
    %c17_84 = arith.constant 17 : index
    %c0_85 = arith.constant 0 : index
    %95 = vector.load %arg9[%c17_84, %c0_85] : memref<168x128xbf16, #tpu.memory_space<vmem>>, vector<128x128xbf16>
    %c4_86 = arith.constant 4 : index
    %c0_87 = arith.constant 0 : index
    %c0_88 = arith.constant 0 : index
    %96 = vector.load %arg4[%c4_86, %c0_87, %c0_88] : memref<9x128x128xbf16, #tpu.memory_space<vmem>>, vector<1x128x128xbf16>
    %97 = vector.shape_cast %96 : vector<1x128x128xbf16> to vector<128x128xbf16>
    %cst_89 = arith.constant dense<0.000000e+00> : vector<128x128xf32>
    %98 = tpu.matmul %95, %97, %cst_89 {dimension_numbers = #tpu.dot_dimension_numbers<[1], [0], [0], [1], [0, 0, 1, 1], [], []>} : vector<128x128xbf16>, vector<128x128xbf16>, vector<128x128xf32> -> vector<128x128xf32>
    %99 = arith.addf %94, %98 : vector<128x128xf32>
    %c18 = arith.constant 18 : index
    %c0_90 = arith.constant 0 : index
    %100 = vector.load %arg9[%c18, %c0_90] : memref<168x128xbf16, #tpu.memory_space<vmem>>, vector<128x128xbf16>
    %c5_91 = arith.constant 5 : index
    %c0_92 = arith.constant 0 : index
    %c0_93 = arith.constant 0 : index
    %101 = vector.load %arg4[%c5_91, %c0_92, %c0_93] : memref<9x128x128xbf16, #tpu.memory_space<vmem>>, vector<1x128x128xbf16>
    %102 = vector.shape_cast %101 : vector<1x128x128xbf16> to vector<128x128xbf16>
    %cst_94 = arith.constant dense<0.000000e+00> : vector<128x128xf32>
    %103 = tpu.matmul %100, %102, %cst_94 {dimension_numbers = #tpu.dot_dimension_numbers<[1], [0], [0], [1], [0, 0, 1, 1], [], []>} : vector<128x128xbf16>, vector<128x128xbf16>, vector<128x128xf32> -> vector<128x128xf32>
    %104 = arith.addf %99, %103 : vector<128x128xf32>
    %c32 = arith.constant 32 : index
    %c0_95 = arith.constant 0 : index
    %105 = vector.load %arg9[%c32, %c0_95] : memref<168x128xbf16, #tpu.memory_space<vmem>>, vector<128x128xbf16>
    %c6_96 = arith.constant 6 : index
    %c0_97 = arith.constant 0 : index
    %c0_98 = arith.constant 0 : index
    %106 = vector.load %arg4[%c6_96, %c0_97, %c0_98] : memref<9x128x128xbf16, #tpu.memory_space<vmem>>, vector<1x128x128xbf16>
    %107 = vector.shape_cast %106 : vector<1x128x128xbf16> to vector<128x128xbf16>
    %cst_99 = arith.constant dense<0.000000e+00> : vector<128x128xf32>
    %108 = tpu.matmul %105, %107, %cst_99 {dimension_numbers = #tpu.dot_dimension_numbers<[1], [0], [0], [1], [0, 0, 1, 1], [], []>} : vector<128x128xbf16>, vector<128x128xbf16>, vector<128x128xf32> -> vector<128x128xf32>
    %109 = arith.addf %104, %108 : vector<128x128xf32>
    %c33 = arith.constant 33 : index
    %c0_100 = arith.constant 0 : index
    %110 = vector.load %arg9[%c33, %c0_100] : memref<168x128xbf16, #tpu.memory_space<vmem>>, vector<128x128xbf16>
    %c7_101 = arith.constant 7 : index
    %c0_102 = arith.constant 0 : index
    %c0_103 = arith.constant 0 : index
    %111 = vector.load %arg4[%c7_101, %c0_102, %c0_103] : memref<9x128x128xbf16, #tpu.memory_space<vmem>>, vector<1x128x128xbf16>
    %112 = vector.shape_cast %111 : vector<1x128x128xbf16> to vector<128x128xbf16>
    %cst_104 = arith.constant dense<0.000000e+00> : vector<128x128xf32>
    %113 = tpu.matmul %110, %112, %cst_104 {dimension_numbers = #tpu.dot_dimension_numbers<[1], [0], [0], [1], [0, 0, 1, 1], [], []>} : vector<128x128xbf16>, vector<128x128xbf16>, vector<128x128xf32> -> vector<128x128xf32>
    %114 = arith.addf %109, %113 : vector<128x128xf32>
    %c34 = arith.constant 34 : index
    %c0_105 = arith.constant 0 : index
    %115 = vector.load %arg9[%c34, %c0_105] : memref<168x128xbf16, #tpu.memory_space<vmem>>, vector<128x128xbf16>
    %c8_106 = arith.constant 8 : index
    %c0_107 = arith.constant 0 : index
    %c0_108 = arith.constant 0 : index
    %116 = vector.load %arg4[%c8_106, %c0_107, %c0_108] : memref<9x128x128xbf16, #tpu.memory_space<vmem>>, vector<1x128x128xbf16>
    %117 = vector.shape_cast %116 : vector<1x128x128xbf16> to vector<128x128xbf16>
    %cst_109 = arith.constant dense<0.000000e+00> : vector<128x128xf32>
    %118 = tpu.matmul %115, %117, %cst_109 {dimension_numbers = #tpu.dot_dimension_numbers<[1], [0], [0], [1], [0, 0, 1, 1], [], []>} : vector<128x128xbf16>, vector<128x128xbf16>, vector<128x128xf32> -> vector<128x128xf32>
    %119 = arith.addf %114, %118 : vector<128x128xf32>
    %c0_110 = arith.constant 0 : index
    %c0_111 = arith.constant 0 : index
    %120 = vector.load %arg5[%c0_110, %c0_111] : memref<1x128xf32, #tpu.memory_space<vmem>>, vector<1x128xf32>
    %121 = vector.broadcast %120 : vector<1x128xf32> to vector<128x128xf32>
    %122 = arith.addf %119, %121 : vector<128x128xf32>
    %c0_112 = arith.constant 0 : index
    %c0_113 = arith.constant 0 : index
    %c384_114 = arith.constant 384 : index
    %123 = vector.load %arg1[%c0_112, %c0_113, %c384_114] : memref<1x160x512xbf16, #tpu.memory_space<vmem>>, vector<1x128x128xbf16>
    %124 = vector.shape_cast %123 : vector<1x128x128xbf16> to vector<128x128xbf16>
    %c0_115 = arith.constant 0 : index
    %c0_116 = arith.constant 0 : index
    %125 = vector.load %arg6[%c0_115, %c0_116] : memref<128x128xbf16, #tpu.memory_space<vmem>>, vector<128x128xbf16>
    %cst_117 = arith.constant dense<0.000000e+00> : vector<128x128xf32>
    %126 = tpu.matmul %124, %125, %cst_117 {dimension_numbers = #tpu.dot_dimension_numbers<[1], [0], [0], [1], [0, 0, 1, 1], [], []>} : vector<128x128xbf16>, vector<128x128xbf16>, vector<128x128xf32> -> vector<128x128xf32>
    %127 = arith.addf %122, %126 : vector<128x128xf32>
    %c0_118 = arith.constant 0 : index
    %c0_119 = arith.constant 0 : index
    %128 = vector.load %arg7[%c0_118, %c0_119] : memref<1x128xf32, #tpu.memory_space<vmem>>, vector<1x128xf32>
    %129 = vector.broadcast %128 : vector<1x128xf32> to vector<128x128xf32>
    %130 = arith.addf %127, %129 : vector<128x128xf32>
    %131 = vector.shape_cast %130 : vector<128x128xf32> to vector<8x16x128xf32>
    %132 = vector.extract_strided_slice %131 {offsets = [0, 0, 0], sizes = [8, 8, 128], strides = [1, 1, 1]} : vector<8x16x128xf32> to vector<8x8x128xf32>
    %cst_120 = arith.constant 0.000000e+00 : f32
    %133 = vector.broadcast %cst_120 : f32 to vector<8x8x128xf32>
    %134 = arith.maximumf %132, %133 : vector<8x8x128xf32>
    %135 = arith.truncf %134 : vector<8x8x128xf32> to vector<8x8x128xbf16>
    %c0_121 = arith.constant 0 : index
    %c0_122 = arith.constant 0 : index
    %c0_123 = arith.constant 0 : index
    %c0_124 = arith.constant 0 : index
    %136 = vector.load %arg8[%c0_121, %c0_122, %c0_123, %c0_124] : memref<1x8x8x128xbf16, #tpu.memory_space<vmem>>, vector<1x8x8x128xbf16>
    %137 = vector.shape_cast %136 : vector<1x8x8x128xbf16> to vector<8x8x128xbf16>
    %138 = vector.shape_cast %135 : vector<8x8x128xbf16> to vector<1x8x8x128xbf16>
    tpu.vector_store %arg8[%c0_121, %c0_122, %c0_123, %c0_124], %138 {strides = array<i32>} : memref<1x8x8x128xbf16, #tpu.memory_space<vmem>>, vector<1x8x8x128xbf16>,
    return
  }
  func.func @transform_0(%arg0: i32) -> (i32, i32, i32) {
    %c0_i32 = arith.constant 0 : i32
    %c0_i32_0 = arith.constant 0 : i32
    %c0_i32_1 = arith.constant 0 : i32
    return %arg0, %c0_i32, %c0_i32_0 : i32, i32, i32
  }
  func.func @transform_1(%arg0: i32) -> (i32, i32, i32) {
    %c0_i32 = arith.constant 0 : i32
    %c0_i32_0 = arith.constant 0 : i32
    %c0_i32_1 = arith.constant 0 : i32
    %c0_i32_2 = arith.constant 0 : i32
    return %c0_i32, %c0_i32_0, %c0_i32_1 : i32, i32, i32
  }
  func.func @transform_2(%arg0: i32) -> (i32, i32) {
    %c0_i32 = arith.constant 0 : i32
    %c0_i32_0 = arith.constant 0 : i32
    %c0_i32_1 = arith.constant 0 : i32
    return %c0_i32, %c0_i32_0 : i32, i32
  }
  func.func @transform_3(%arg0: i32) -> (i32, i32, i32) {
    %c0_i32 = arith.constant 0 : i32
    %c0_i32_0 = arith.constant 0 : i32
    %c0_i32_1 = arith.constant 0 : i32
    %c0_i32_2 = arith.constant 0 : i32
    return %c0_i32, %c0_i32_0, %c0_i32_1 : i32, i32, i32
  }
  func.func @transform_4(%arg0: i32) -> (i32, i32) {
    %c0_i32 = arith.constant 0 : i32
    %c0_i32_0 = arith.constant 0 : i32
    %c0_i32_1 = arith.constant 0 : i32
    return %c0_i32, %c0_i32_0 : i32, i32
  }
  func.func @transform_5(%arg0: i32) -> (i32, i32) {
    %c0_i32 = arith.constant 0 : i32
    %c0_i32_0 = arith.constant 0 : i32
    %c0_i32_1 = arith.constant 0 : i32
    return %c0_i32, %c0_i32_0 : i32, i32
  }
  func.func @transform_6(%arg0: i32) -> (i32, i32) {
    %c0_i32 = arith.constant 0 : i32
    %c0_i32_0 = arith.constant 0 : i32
    %c0_i32_1 = arith.constant 0 : i32
    return %c0_i32, %c0_i32_0 : i32, i32
  }
  func.func @transform_7(%arg0: i32) -> (i32, i32, i32, i32) {
    %c0_i32 = arith.constant 0 : i32
    %c0_i32_0 = arith.constant 0 : i32
    %c0_i32_1 = arith.constant 0 : i32
    %c0_i32_2 = arith.constant 0 : i32
    return %arg0, %c0_i32, %c0_i32_0, %c0_i32_1 : i32, i32, i32, i32
  }
}

</mosaic_0001>

<llo_original>
// kernel: basic_block_forward.1
$region0: #{basic_block_forward.1}
  #allocation0 [shape = 'u32[]', space=smem, size = 0x4, offset = 0x4, fixed_abs, tag = 'smem constant byte address 0x4 - core index']
  #allocation1 [shape = 'u32[144,128]{1,0:T(1,128)}', space=vmem, size = 0x12000, scoped, tag = 'internal scratch']
  #allocation2 [shape = 'bf16[168,128]{1,0:T(8,128)(2,1)}', space=vmem, size = 0xa800, scoped, tag = 'scratch operand']
  %s0 = inlined_call_operand.vmem [shape: bf16[2,160,512], index: 0, kind: input, shape index: {}]
  %s1 = inlined_call_operand.vmem [shape: bf16[9,128,128], index: 1, kind: input, shape index: {}]
  %s2 = inlined_call_operand.vmem [shape: f32[1,128], index: 2, kind: input, shape index: {}]
  %s3 = inlined_call_operand.vmem [shape: bf16[9,128,128], index: 3, kind: input, shape index: {}]
  %s4 = inlined_call_operand.vmem [shape: f32[1,128], index: 4, kind: input, shape index: {}]
  %s5 = inlined_call_operand.vmem [shape: bf16[128,128], index: 5, kind: input, shape index: {}]
  %s6 = inlined_call_operand.vmem [shape: f32[1,128], index: 6, kind: input, shape index: {}]
  %s7 = inlined_call_operand.vmem [shape: bf16[2,8,8,128], index: 7, kind: output, shape index: {}]
  %s8 = sld [smem:[#allocation0]]
  $region61: #{basic_block_forward.1} parent=0
    _
  %s10 = ssub.s32 1, %s8
  %s11 = scalar_select 0, %s10, %s8
  loop: start=0, step=1, limit=4
  $region2: #{basic_block_forward.1} parent=0 // loop_pre_header
    _
  $region3: #{basic_block_forward.1} parent=0 // loop_header
    %s13 = sphi 0, %s17
    %p14 = scmp.ge.s32.totalorder %s13, 4
    %s23 = sphi 0, %s25
    %s26 = sphi 0, %s23
    %s27 = sphi 0, %s26
    %s43 = sphi 0, %s27
    %s47 = sphi 0, %s47
    %s49 = sphi 0, %s47
    %s50 = sphi 0, %s49
    %s64 = sphi 0, %s50
    %s68 = sphi 0, %s68
    %s70 = sphi 0, %s68
    %s71 = sphi 0, %s70
    %s85 = sphi 0, %s71
    %s89 = sphi 0, %s89
    %s91 = sphi 0, %s89
    %s92 = sphi 0, %s91
    %s106 = sphi 0, %s92
    %s110 = sphi 0, %s110
    %s112 = sphi 0, %s110
    %s113 = sphi 0, %s112
    %s127 = sphi 0, %s113
    %s131 = sphi 0, %s131
    %s133 = sphi 0, %s131
    %s134 = sphi 0, %s133
    %s148 = sphi 0, %s134
    %s152 = sphi 0, %s152
    %s154 = sphi 0, %s152
    %s155 = sphi 0, %s154
    %s169 = sphi 0, %s155
    %s175 = sphi 0, %s177
    %s178 = sphi 0, %s175
    %s179 = sphi 0, %s178
    %s195 = sphi 0, %s179
  $region4: #{basic_block_forward.1} parent=0 // loop_header_branch
    %16 = sbr.rel (%p14) target = $region8
  $region5: #{basic_block_forward.1} parent=0 // loop_body
    %s18 = ssub.s32 %s13, 1
    %s19 = ssub.s32 %s13, 2
    %s20 = sadd.s32 %s13, 1
    %s21 = ssub.s32 %s13, %s20
    %p22 = scmp.eq.s32.totalorder %s21, 0
    %s24 = sadd.s32 %s23, 1
    %s25 = scalar_select %p22, %s23, %s24
    %p28 = pneg %p22
    %p29 = scmp.eq.s32.totalorder %s13, 1
    %p30 = por %p28, %p29
    %p31 = scmp.ne.s32.totalorder %s23, %s26
    %p32 = scmp.eq.s32.totalorder %s13, 0
    %p33 = por %p31, %p32
    %p34 = scmp.ne.s32.totalorder %s23, %s26
    %p35 = scmp.eq.s32.totalorder %s18, 1
    %p36 = por %p34, %p35
    %p37 = scmp.ne.s32.totalorder %s26, %s27
    %p38 = scmp.eq.s32.totalorder %s18, 0
    %p39 = por %p37, %p38
    %p40 = scmp.ne.s32.totalorder %s26, %s27
    %p41 = scmp.eq.s32.totalorder %s19, 1
    %p42 = por %p40, %p41
    %p44 = scmp.ne.s32.totalorder %s27, %s43
    %p45 = scmp.eq.s32.totalorder %s19, 0
    %p46 = por %p44, %p45
    %s48 = sadd.s32 %s47, 1
    %p51 = scmp.eq.s32.totalorder %s13, 1
    %p52 = scmp.ne.s32.totalorder %s47, %s49
    %p53 = scmp.eq.s32.totalorder %s13, 0
    %p54 = por %p52, %p53
    %p55 = scmp.ne.s32.totalorder %s47, %s49
    %p56 = scmp.eq.s32.totalorder %s18, 1
    %p57 = por %p55, %p56
    %p58 = scmp.ne.s32.totalorder %s49, %s50
    %p59 = scmp.eq.s32.totalorder %s18, 0
    %p60 = por %p58, %p59
    %p61 = scmp.ne.s32.totalorder %s49, %s50
    %p62 = scmp.eq.s32.totalorder %s19, 1
    %p63 = por %p61, %p62
    %p65 = scmp.ne.s32.totalorder %s50, %s64
    %p66 = scmp.eq.s32.totalorder %s19, 0
    %p67 = por %p65, %p66
    %s69 = sadd.s32 %s68, 1
    %p72 = scmp.eq.s32.totalorder %s13, 1
    %p73 = scmp.ne.s32.totalorder %s68, %s70
    %p74 = scmp.eq.s32.totalorder %s13, 0
    %p75 = por %p73, %p74
    %p76 = scmp.ne.s32.totalorder %s68, %s70
    %p77 = scmp.eq.s32.totalorder %s18, 1
    %p78 = por %p76, %p77
    %p79 = scmp.ne.s32.totalorder %s70, %s71
    %p80 = scmp.eq.s32.totalorder %s18, 0
    %p81 = por %p79, %p80
    %p82 = scmp.ne.s32.totalorder %s70, %s71
    %p83 = scmp.eq.s32.totalorder %s19, 1
    %p84 = por %p82, %p83
    %p86 = scmp.ne.s32.totalorder %s71, %s85
    %p87 = scmp.eq.s32.totalorder %s19, 0
    %p88 = por %p86, %p87
    %s90 = sadd.s32 %s89, 1
    %p93 = scmp.eq.s32.totalorder %s13, 1
    %p94 = scmp.ne.s32.totalorder %s89, %s91
    %p95 = scmp.eq.s32.totalorder %s13, 0
    %p96 = por %p94, %p95
    %p97 = scmp.ne.s32.totalorder %s89, %s91
    %p98 = scmp.eq.s32.totalorder %s18, 1
    %p99 = por %p97, %p98
    %p100 = scmp.ne.s32.totalorder %s91, %s92
    %p101 = scmp.eq.s32.totalorder %s18, 0
    %p102 = por %p100, %p101
    %p103 = scmp.ne.s32.totalorder %s91, %s92
    %p104 = scmp.eq.s32.totalorder %s19, 1
    %p105 = por %p103, %p104
    %p107 = scmp.ne.s32.totalorder %s92, %s106
    %p108 = scmp.eq.s32.totalorder %s19, 0
    %p109 = por %p107, %p108
    %s111 = sadd.s32 %s110, 1
    %p114 = scmp.eq.s32.totalorder %s13, 1
    %p115 = scmp.ne.s32.totalorder %s110, %s112
    %p116 = scmp.eq.s32.totalorder %s13, 0
    %p117 = por %p115, %p116
    %p118 = scmp.ne.s32.totalorder %s110, %s112
    %p119 = scmp.eq.s32.totalorder %s18, 1
    %p120 = por %p118, %p119
    %p121 = scmp.ne.s32.totalorder %s112, %s113
    %p122 = scmp.eq.s32.totalorder %s18, 0
    %p123 = por %p121, %p122
    %p124 = scmp.ne.s32.totalorder %s112, %s113
    %p125 = scmp.eq.s32.totalorder %s19, 1
    %p126 = por %p124, %p125
    %p128 = scmp.ne.s32.totalorder %s113, %s127
    %p129 = scmp.eq.s32.totalorder %s19, 0
    %p130 = por %p128, %p129
    %s132 = sadd.s32 %s131, 1
    %p135 = scmp.eq.s32.totalorder %s13, 1
    %p136 = scmp.ne.s32.totalorder %s131, %s133
    %p137 = scmp.eq.s32.totalorder %s13, 0
    %p138 = por %p136, %p137
    %p139 = scmp.ne.s32.totalorder %s131, %s133
    %p140 = scmp.eq.s32.totalorder %s18, 1
    %p141 = por %p139, %p140
    %p142 = scmp.ne.s32.totalorder %s133, %s134
    %p143 = scmp.eq.s32.totalorder %s18, 0
    %p144 = por %p142, %p143
    %p145 = scmp.ne.s32.totalorder %s133, %s134
    %p146 = scmp.eq.s32.totalorder %s19, 1
    %p147 = por %p145, %p146
    %p149 = scmp.ne.s32.totalorder %s134, %s148
    %p150 = scmp.eq.s32.totalorder %s19, 0
    %p151 = por %p149, %p150
    %s153 = sadd.s32 %s152, 1
    %p156 = scmp.eq.s32.totalorder %s13, 1
    %p157 = scmp.ne.s32.totalorder %s152, %s154
    %p158 = scmp.eq.s32.totalorder %s13, 0
    %p159 = por %p157, %p158
    %p160 = scmp.ne.s32.totalorder %s152, %s154
    %p161 = scmp.eq.s32.totalorder %s18, 1
    %p162 = por %p160, %p161
    %p163 = scmp.ne.s32.totalorder %s154, %s155
    %p164 = scmp.eq.s32.totalorder %s18, 0
    %p165 = por %p163, %p164
    %p166 = scmp.ne.s32.totalorder %s154, %s155
    %p167 = scmp.eq.s32.totalorder %s19, 1
    %p168 = por %p166, %p167
    %p170 = scmp.ne.s32.totalorder %s155, %s169
    %p171 = scmp.eq.s32.totalorder %s19, 0
    %p172 = por %p170, %p171
    %s173 = ssub.s32 %s13, %s20
    %p174 = scmp.eq.s32.totalorder %s173, 0
    %s176 = sadd.s32 %s175, 1
    %s177 = scalar_select %p174, %s175, %s176
    %p180 = pneg %p174
    %p181 = scmp.eq.s32.totalorder %s13, 1
    %p182 = por %p180, %p181
    %p183 = scmp.ne.s32.totalorder %s175, %s178
    %p184 = scmp.eq.s32.totalorder %s13, 0
    %p185 = por %p183, %p184
    %p186 = scmp.ne.s32.totalorder %s175, %s178
    %p187 = scmp.eq.s32.totalorder %s18, 1
    %p188 = por %p186, %p187
    %p189 = scmp.ne.s32.totalorder %s178, %s179
    %p190 = scmp.eq.s32.totalorder %s18, 0
    %p191 = por %p189, %p190
    %p192 = scmp.ne.s32.totalorder %s178, %s179
    %p193 = scmp.eq.s32.totalorder %s19, 1
    %p194 = por %p192, %p193
    %p196 = scmp.ne.s32.totalorder %s179, %s195
    %p197 = scmp.eq.s32.totalorder %s19, 0
    %p198 = por %p196, %p197
    %p199 = scmp.le.s32.totalorder 1, %s13
    %p200 = scmp.lt.s32.totalorder %s13, 3
    %p201 = pnand %p199, %p200
    %p202 = pneg %p201
    // Predicated region
    $region9: #{basic_block_forward.1} parent=5 // pred_check
      _
    $region10: #{basic_block_forward.1} parent=5 // pred_check_branch
      %204 = sbr.rel (%p201) target = $region12
    $region11: #{basic_block_forward.1} parent=5 // pred_region
      %s205 = ssub.s32 %s13, 1
      // Predicated region
      $region13: #{basic_block_forward.1} parent=11 // pred_check
        %p206 = pneg %p60
      $region14: #{basic_block_forward.1} parent=11 // pred_check_branch
        %208 = sbr.rel (%p206) target = $region16
      $region15: #{basic_block_forward.1} parent=11 // pred_region
        _
      $region16: #{basic_block_forward.1} parent=11 // pred_fallthru
        _
      // Predicated region
      $region17: #{basic_block_forward.1} parent=11 // pred_check
        %p209 = pneg %p81
      $region18: #{basic_block_forward.1} parent=11 // pred_check_branch
        %211 = sbr.rel (%p209) target = $region20
      $region19: #{basic_block_forward.1} parent=11 // pred_region
        _
      $region20: #{basic_block_forward.1} parent=11 // pred_fallthru
        _
      // Predicated region
      $region21: #{basic_block_forward.1} parent=11 // pred_check
        %p212 = pneg %p102
      $region22: #{basic_block_forward.1} parent=11 // pred_check_branch
        %214 = sbr.rel (%p212) target = $region24
      $region23: #{basic_block_forward.1} parent=11 // pred_region
        _
      $region24: #{basic_block_forward.1} parent=11 // pred_fallthru
        _
      // Predicated region
      $region25: #{basic_block_forward.1} parent=11 // pred_check
        %p215 = pneg %p123
      $region26: #{basic_block_forward.1} parent=11 // pred_check_branch
        %217 = sbr.rel (%p215) target = $region28
      $region27: #{basic_block_forward.1} parent=11 // pred_region
        _
      $region28: #{basic_block_forward.1} parent=11 // pred_fallthru
        _
      // Predicated region
      $region29: #{basic_block_forward.1} parent=11 // pred_check
        %p218 = pneg %p144
      $region30: #{basic_block_forward.1} parent=11 // pred_check_branch
        %220 = sbr.rel (%p218) target = $region32
      $region31: #{basic_block_forward.1} parent=11 // pred_region
        _
      $region32: #{basic_block_forward.1} parent=11 // pred_fallthru
        _
      // Predicated region
      $region33: #{basic_block_forward.1} parent=11 // pred_check
        %p221 = pneg %p165
      $region34: #{basic_block_forward.1} parent=11 // pred_check_branch
        %223 = sbr.rel (%p221) target = $region36
      $region35: #{basic_block_forward.1} parent=11 // pred_region
        _
      $region36: #{basic_block_forward.1} parent=11 // pred_fallthru
        _
    $region12: #{basic_block_forward.1} parent=5 // pred_fallthru
      _
    %p224 = scmp.lt.s32.totalorder %s13, 2
    // Predicated region
    $region37: #{basic_block_forward.1} parent=5 // pred_check
      %p225 = pneg %p224
    $region38: #{basic_block_forward.1} parent=5 // pred_check_branch
      %227 = sbr.rel (%p225) target = $region40
    $region39: #{basic_block_forward.1} parent=5 // pred_region
      // Predicated region
      $region41: #{basic_block_forward.1} parent=39 // pred_check
        %p228 = pneg %p33
      $region42: #{basic_block_forward.1} parent=39 // pred_check_branch
        %230 = sbr.rel (%p228) target = $region44
      $region43: #{basic_block_forward.1} parent=39 // pred_region
        %p231 = scmp.lt.s32.totalorder %s13, 1
        %s232 = scalar_select %p231, %s13, 1
        %s233 = smul.addr %s232, 80
        %s234 = smul.addr %s233, 4
        %s235 = scalar_lea.vmem %s0, %s234
      $region44: #{basic_block_forward.1} parent=39 // pred_fallthru
        _
    $region40: #{basic_block_forward.1} parent=5 // pred_fallthru
      _
    %p236 = scmp.le.s32.totalorder 1, %s13
    %p237 = scmp.lt.s32.totalorder %s13, 3
    %p238 = pnand %p236, %p237
    %p239 = pneg %p238
    // Predicated region
    $region45: #{basic_block_forward.1} parent=5 // pred_check
      _
    $region46: #{basic_block_forward.1} parent=5 // pred_check_branch
      %241 = sbr.rel (%p238) target = $region48
    $region47: #{basic_block_forward.1} parent=5 // pred_region
      %s242 = ssub.s32 %s13, 1
      %p243 = scmp.lt.s32.totalorder %s18, 1
      %s244 = scalar_select %p243, %s18, 1
      %s245 = smul.addr %s244, 80
      %s246 = smul.addr %s245, 4
      %s247 = scalar_lea.vmem %s0, %s246
      %p248 = pneg %p39
      %p249 = pneg %p36
      %p250 = pneg %p60
      %p251 = pneg %p57
      %p252 = pneg %p81
      %p253 = pneg %p78
      %p254 = pneg %p102
      %p255 = pneg %p99
      %p256 = pneg %p123
      %p257 = pneg %p120
      %p258 = pneg %p144
      %p259 = pneg %p141
      %p260 = pneg %p165
      %p261 = pneg %p162
      %p262 = pneg %p191
      %p263 = pneg %p188
      %p264 = scmp.lt.s32.totalorder %s18, 1
      %s265 = scalar_select %p264, %s18, 1
      %s266 = smul.addr %s265, 8
      %s267 = smul.addr %s266, 4
      %s268 = scalar_lea.vmem %s7, %s267
      %p269 = scmp.lt.s32.totalorder %s18, 1
      %s270 = scalar_select %p269, %s18, 1
      %s271 = smul.addr %s270, 80
      %s272 = smul.addr %s271, 4
      %s273 = scalar_lea.vmem %s0, %s272
      %p274 = scmp.lt.s32.totalorder %s18, 1
      %s275 = scalar_select %p274, %s18, 1
      %s276 = smul.addr %s275, 8
      %s277 = smul.addr %s276, 4
      %s278 = scalar_lea.vmem %s7, %s277
      %280 = vst [vmem:[#allocation2] sm:$0xf] 0
      %281 = vst [vmem:[#allocation2 + $0x4] sm:$0xf] 0
      %282 = vst [vmem:[#allocation2 + $0x8] sm:$0xf] 0
      %283 = vst [vmem:[#allocation2 + $0x48] sm:$0xf] 0
      %284 = vst [vmem:[#allocation2 + $0x4c] sm:$0xf] 0
      %285 = vst [vmem:[#allocation2 + $0x50] sm:$0xf] 0
      %v286 = vlaneseq
      %v287 = vshrl.u32 %v286, 7
      %v288 = vadd.s32 %v287, 8
      %vm289 = vcmp.lt.s32.totalorder %v287, 8
      %vm290 = vcmp.lt.s32.totalorder %v288, 8
      %v291 = vld [vmem:[%s273] sm:$0xf]
      %v292 = vld [vmem:[%s273 + $0x10] sm:$0xf]
      %v293 = vld [vmem:[%s273 + $0x20] sm:$0xf]
      %v294 = vld [vmem:[%s273 + $0x30] sm:$0xf]
      %v295 = vld [vmem:[%s273 + $0x40] sm:$0xf]
      %v296 = vld [vmem:[%s273 + $0x50] sm:$0xf]
      %v297 = vld [vmem:[%s273 + $0x60] sm:$0xf]
      %v298 = vld [vmem:[%s273 + $0x70] sm:$0xf]
      %v299 = vld [vmem:[%s273 + $0x80] sm:$0xf]
      %v300 = vld [vmem:[%s273 + $0x90] sm:$0xf]
      %v301 = vld [vmem:[%s273 + $0xa0] sm:$0xf]
      %v302 = vld [vmem:[%s273 + $0xb0] sm:$0xf]
      %v303 = vld [vmem:[%s273 + $0xc0] sm:$0xf]
      %v304 = vld [vmem:[%s273 + $0xd0] sm:$0xf]
      %v305 = vld [vmem:[%s273 + $0xe0] sm:$0xf]
      %v306 = vld [vmem:[%s273 + $0xf0] sm:$0xf]
      %v307 = vld [vmem:[%s1] sm:$0xf]
      %v308 = vld [vmem:[%s1 + $0x4] sm:$0xf]
      %v309 = vld [vmem:[%s1 + $0x8] sm:$0xf]
      %v310 = vld [vmem:[%s1 + $0xc] sm:$0xf]
      %v311 = vld [vmem:[%s1 + $0x10] sm:$0xf]
      %v312 = vld [vmem:[%s1 + $0x14] sm:$0xf]
      %v313 = vld [vmem:[%s1 + $0x18] sm:$0xf]
      %v314 = vld [vmem:[%s1 + $0x1c] sm:$0xf]
      %v315 = vld [vmem:[%s1 + $0x20] sm:$0xf]
      %v316 = vld [vmem:[%s1 + $0x24] sm:$0xf]
      %v317 = vld [vmem:[%s1 + $0x28] sm:$0xf]
      %v318 = vld [vmem:[%s1 + $0x2c] sm:$0xf]
      %v319 = vld [vmem:[%s1 + $0x30] sm:$0xf]
      %v320 = vld [vmem:[%s1 + $0x34] sm:$0xf]
      %v321 = vld [vmem:[%s1 + $0x38] sm:$0xf]
      %v322 = vld [vmem:[%s1 + $0x3c] sm:$0xf]
      %v323 = vld [vmem:[%s273 + $0x4] sm:$0xf]
      %v324 = vld [vmem:[%s273 + $0x14] sm:$0xf]
      %v325 = vld [vmem:[%s273 + $0x24] sm:$0xf]
      %v326 = vld [vmem:[%s273 + $0x34] sm:$0xf]
      %v327 = vld [vmem:[%s273 + $0x44] sm:$0xf]
      %v328 = vld [vmem:[%s273 + $0x54] sm:$0xf]
      %v329 = vld [vmem:[%s273 + $0x64] sm:$0xf]
      %v330 = vld [vmem:[%s273 + $0x74] sm:$0xf]
      %v331 = vld [vmem:[%s273 + $0x84] sm:$0xf]
      %v332 = vld [vmem:[%s273 + $0x94] sm:$0xf]
      %v333 = vld [vmem:[%s273 + $0xa4] sm:$0xf]
      %v334 = vld [vmem:[%s273 + $0xb4] sm:$0xf]
      %v335 = vld [vmem:[%s273 + $0xc4] sm:$0xf]
      %v336 = vld [vmem:[%s273 + $0xd4] sm:$0xf]
      %v337 = vld [vmem:[%s273 + $0xe4] sm:$0xf]
      %v338 = vld [vmem:[%s273 + $0xf4] sm:$0xf]
      %s339 = scalar_lea.vmem %s1, 64
      %v340 = vld [vmem:[%s339] sm:$0xf]
      %v341 = vld [vmem:[%s339 + $0x4] sm:$0xf]
      %v342 = vld [vmem:[%s339 + $0x8] sm:$0xf]
      %v343 = vld [vmem:[%s339 + $0xc] sm:$0xf]
      %v344 = vld [vmem:[%s339 + $0x10] sm:$0xf]
      %v345 = vld [vmem:[%s339 + $0x14] sm:$0xf]
      %v346 = vld [vmem:[%s339 + $0x18] sm:$0xf]
      %v347 = vld [vmem:[%s339 + $0x1c] sm:$0xf]
      %v348 = vld [vmem:[%s339 + $0x20] sm:$0xf]
      %v349 = vld [vmem:[%s339 + $0x24] sm:$0xf]
      %v350 = vld [vmem:[%s339 + $0x28] sm:$0xf]
      %v351 = vld [vmem:[%s339 + $0x2c] sm:$0xf]
      %v352 = vld [vmem:[%s339 + $0x30] sm:$0xf]
      %v353 = vld [vmem:[%s339 + $0x34] sm:$0xf]
      %v354 = vld [vmem:[%s339 + $0x38] sm:$0xf]
      %v355 = vld [vmem:[%s339 + $0x3c] sm:$0xf]
      %v372 = vunpack.c.l.b16 %v323
      %v373 = vunpack.c.l.b16 %v324
      %v374 = vunpack.c.l.b16 %v325
      %v375 = vunpack.c.l.b16 %v326
      %v376 = vunpack.c.l.b16 %v327
      %v377 = vunpack.c.l.b16 %v328
      %v378 = vunpack.c.l.b16 %v329
      %v379 = vunpack.c.l.b16 %v330
      %v380 = vunpack.c.l.b16 %v331
      %v381 = vunpack.c.l.b16 %v332
      %v382 = vunpack.c.l.b16 %v333
      %v383 = vunpack.c.l.b16 %v334
      %v384 = vunpack.c.l.b16 %v335
      %v385 = vunpack.c.l.b16 %v336
      %v386 = vunpack.c.l.b16 %v337
      %v387 = vunpack.c.l.b16 %v338
      %v388 = vpack.c.b16 %v373, %v372
      %v389 = vpack.c.b16 %v375, %v374
      %v390 = vpack.c.b16 %v377, %v376
      %v391 = vpack.c.b16 %v379, %v378
      %v392 = vpack.c.b16 %v381, %v380
      %v393 = vpack.c.b16 %v383, %v382
      %v394 = vpack.c.b16 %v385, %v384
      %v395 = vpack.c.b16 %v387, %v386
      %v420 = vunpack.c.l.b16 %v340
      %v421 = vunpack.c.l.b16 %v341
      %v422 = vunpack.c.l.b16 %v342
      %v423 = vunpack.c.l.b16 %v343
      %v424 = vunpack.c.l.b16 %v344
      %v425 = vunpack.c.l.b16 %v345
      %v426 = vunpack.c.l.b16 %v346
      %v427 = vunpack.c.l.b16 %v347
      %v428 = vunpack.c.l.b16 %v348
      %v429 = vunpack.c.l.b16 %v349
      %v430 = vunpack.c.l.b16 %v350
      %v431 = vunpack.c.l.b16 %v351
      %v432 = vunpack.c.l.b16 %v352
      %v433 = vunpack.c.l.b16 %v353
      %v434 = vunpack.c.l.b16 %v354
      %v435 = vunpack.c.l.b16 %v355
      %v436 = vpack.c.b16 %v421, %v420
      %v437 = vpack.c.b16 %v423, %v422
      %v438 = vpack.c.b16 %v425, %v424
      %v439 = vpack.c.b16 %v427, %v426
      %v440 = vpack.c.b16 %v429, %v428
      %v441 = vpack.c.b16 %v431, %v430
      %v442 = vpack.c.b16 %v433, %v432
      %v443 = vpack.c.b16 %v435, %v434
      %452 = vmatprep.subr.bf16.mxu0 0
      %453 = vmatpush1.bf16.msra.mxu0 %v443
      %454 = vmatprep.subr.bf16.mxu0 0
      %455 = vmatpush1.bf16.msra.mxu0 %v442
      %456 = vmatprep.subr.bf16.mxu0 0
      %457 = vmatpush1.bf16.msra.mxu0 %v441
      %458 = vmatprep.subr.bf16.mxu0 0
      %459 = vmatpush1.bf16.msra.mxu0 %v440
      %460 = vmatprep.subr.bf16.mxu0 0
      %461 = vmatpush1.bf16.msra.mxu0 %v439
      %462 = vmatprep.subr.bf16.mxu0 0
      %463 = vmatpush1.bf16.msra.mxu0 %v438
      %464 = vmatprep.subr.bf16.mxu0 0
      %465 = vmatpush1.bf16.msra.mxu0 %v437
      %466 = vmatprep.subr.bf16.mxu0 0
      %467 = vmatpush1.bf16.msra.mxu0 %v436
      %468 = vmatprep.subr.bf16.mxu0 0
      %469 = vmatpush2.bf16.msra.mxu0 0
      %470 = vmatprep.subr.bf16.mxu0 0
      %471 = vmatpush2.bf16.msra.mxu0 0
      %472 = vmatprep.subr.bf16.mxu0 0
      %473 = vmatpush2.bf16.msra.mxu0 0
      %474 = vmatprep.subr.bf16.mxu0 0
      %475 = vmatpush2.bf16.msra.mxu0 0
      %476 = vmatprep.subr.bf16.mxu0 0
      %477 = vmatpush2.bf16.msra.mxu0 0
      %478 = vmatprep.subr.bf16.mxu0 0
      %479 = vmatpush2.bf16.msra.mxu0 0
      %480 = vmatprep.subr.bf16.mxu0 0
      %481 = vmatpush2.bf16.msra.mxu0 0
      %482 = vmatprep.subr.bf16.mxu0 0
      %483 = vmatpush2.bf16.msra.mxu0 0
      %484 = vmatprep.mubr.bf16.mxu0 0
      %485 = vmatmul.mubr.bf16.gmra.mxu0 %v388
      %v486 = vpop.f32.mrf.mxu0
      %v487 = vadd.f32 0.0, %v486
      %v488 = vpop.f32.mrf.mxu0
      %v489 = vpop.f32.mrf.mxu0
      %v490 = vadd.f32 0.0, %v489
      %v491 = vpop.f32.mrf.mxu0
      %492 = vmatprep.mubr.bf16.mxu0 0
      %493 = vmatmul.mubr.bf16.gmra.mxu0 %v389
      %v494 = vpop.f32.mrf.mxu0
      %v495 = vadd.f32 0.0, %v494
      %v496 = vpop.f32.mrf.mxu0
      %v497 = vpop.f32.mrf.mxu0
      %v498 = vadd.f32 0.0, %v497
      %v499 = vpop.f32.mrf.mxu0
      %500 = vmatprep.mubr.bf16.mxu0 0
      %501 = vmatmul.mubr.bf16.gmra.mxu0 %v390
      %v502 = vpop.f32.mrf.mxu0
      %v503 = vadd.f32 0.0, %v502
      %v504 = vpop.f32.mrf.mxu0
      %v505 = vpop.f32.mrf.mxu0
      %v506 = vadd.f32 0.0, %v505
      %v507 = vpop.f32.mrf.mxu0
      %508 = vmatprep.mubr.bf16.mxu0 0
      %509 = vmatmul.mubr.bf16.gmra.mxu0 %v391
      %v510 = vpop.f32.mrf.mxu0
      %v511 = vadd.f32 0.0, %v510
      %v512 = vpop.f32.mrf.mxu0
      %v513 = vpop.f32.mrf.mxu0
      %v514 = vadd.f32 0.0, %v513
      %v515 = vpop.f32.mrf.mxu0
      %516 = vmatprep.mubr.bf16.mxu0 0
      %517 = vmatmul.mubr.bf16.gmra.mxu0 %v392
      %v518 = vpop.f32.mrf.mxu0
      %v519 = vadd.f32 0.0, %v518
      %v520 = vpop.f32.mrf.mxu0
      %v521 = vpop.f32.mrf.mxu0
      %v522 = vadd.f32 0.0, %v521
      %v523 = vpop.f32.mrf.mxu0
      %524 = vmatprep.mubr.bf16.mxu0 0
      %525 = vmatmul.mubr.bf16.gmra.mxu0 %v393
      %v526 = vpop.f32.mrf.mxu0
      %v527 = vadd.f32 0.0, %v526
      %v528 = vpop.f32.mrf.mxu0
      %v529 = vpop.f32.mrf.mxu0
      %v530 = vadd.f32 0.0, %v529
      %v531 = vpop.f32.mrf.mxu0
      %532 = vmatprep.mubr.bf16.mxu0 0
      %533 = vmatmul.mubr.bf16.gmra.mxu0 %v394
      %v534 = vpop.f32.mrf.mxu0
      %v535 = vadd.f32 0.0, %v534
      %v536 = vpop.f32.mrf.mxu0
      %v537 = vpop.f32.mrf.mxu0
      %v538 = vadd.f32 0.0, %v537
      %v539 = vpop.f32.mrf.mxu0
      %540 = vmatprep.mubr.bf16.mxu0 0
      %541 = vmatmul.mubr.bf16.gmra.mxu0 %v395
      %v542 = vpop.f32.mrf.mxu0
      %v543 = vadd.f32 0.0, %v542
      %v544 = vpop.f32.mrf.mxu0
      %v545 = vpop.f32.mrf.mxu0
      %v546 = vadd.f32 0.0, %v545
      %v547 = vpop.f32.mrf.mxu0
      %548 = vdwg.mxu0
      %v565 = vunpack.c.l.b16 %v291
      %v566 = vunpack.c.l.b16 %v292
      %v567 = vunpack.c.l.b16 %v293
      %v568 = vunpack.c.l.b16 %v294
      %v569 = vunpack.c.l.b16 %v295
      %v570 = vunpack.c.l.b16 %v296
      %v571 = vunpack.c.l.b16 %v297
      %v572 = vunpack.c.l.b16 %v298
      %v573 = vunpack.c.l.b16 %v299
      %v574 = vunpack.c.l.b16 %v300
      %v575 = vunpack.c.l.b16 %v301
      %v576 = vunpack.c.l.b16 %v302
      %v577 = vunpack.c.l.b16 %v303
      %v578 = vunpack.c.l.b16 %v304
      %v579 = vunpack.c.l.b16 %v305
      %v580 = vunpack.c.l.b16 %v306
      %v581 = vpack.c.b16 %v566, %v565
      %v582 = vpack.c.b16 %v568, %v567
      %v583 = vpack.c.b16 %v570, %v569
      %v584 = vpack.c.b16 %v572, %v571
      %v585 = vpack.c.b16 %v574, %v573
      %v586 = vpack.c.b16 %v576, %v575
      %v587 = vpack.c.b16 %v578, %v577
      %v588 = vpack.c.b16 %v580, %v579
      %v613 = vunpack.c.l.b16 %v307
      %v614 = vunpack.c.l.b16 %v308
      %v615 = vunpack.c.l.b16 %v309
      %v616 = vunpack.c.l.b16 %v310
      %v617 = vunpack.c.l.b16 %v311
      %v618 = vunpack.c.l.b16 %v312
      %v619 = vunpack.c.l.b16 %v313
      %v620 = vunpack.c.l.b16 %v314
      %v621 = vunpack.c.l.b16 %v315
      %v622 = vunpack.c.l.b16 %v316
      %v623 = vunpack.c.l.b16 %v317
      %v624 = vunpack.c.l.b16 %v318
      %v625 = vunpack.c.l.b16 %v319
      %v626 = vunpack.c.l.b16 %v320
      %v627 = vunpack.c.l.b16 %v321
      %v628 = vunpack.c.l.b16 %v322
      %v629 = vpack.c.b16 %v614, %v613
      %v630 = vpack.c.b16 %v616, %v615
      %v631 = vpack.c.b16 %v618, %v617
      %v632 = vpack.c.b16 %v620, %v619
      %v633 = vpack.c.b16 %v622, %v621
      %v634 = vpack.c.b16 %v624, %v623
      %v635 = vpack.c.b16 %v626, %v625
      %v636 = vpack.c.b16 %v628, %v627
      %645 = vmatprep.subr.bf16.mxu0 0
      %646 = vmatpush1.bf16.msra.mxu0 %v636
      %647 = vmatprep.subr.bf16.mxu0 0
      %648 = vmatpush1.bf16.msra.mxu0 %v635
      %649 = vmatprep.subr.bf16.mxu0 0
      %650 = vmatpush1.bf16.msra.mxu0 %v634
      %651 = vmatprep.subr.bf16.mxu0 0
      %652 = vmatpush1.bf16.msra.mxu0 %v633
      %653 = vmatprep.subr.bf16.mxu0 0
      %654 = vmatpush1.bf16.msra.mxu0 %v632
      %655 = vmatprep.subr.bf16.mxu0 0
      %656 = vmatpush1.bf16.msra.mxu0 %v631
      %657 = vmatprep.subr.bf16.mxu0 0
      %658 = vmatpush1.bf16.msra.mxu0 %v630
      %659 = vmatprep.subr.bf16.mxu0 0
      %660 = vmatpush1.bf16.msra.mxu0 %v629
      %661 = vmatprep.subr.bf16.mxu0 0
      %662 = vmatpush2.bf16.msra.mxu0 0
      %663 = vmatprep.subr.bf16.mxu0 0
      %664 = vmatpush2.bf16.msra.mxu0 0
      %665 = vmatprep.subr.bf16.mxu0 0
      %666 = vmatpush2.bf16.msra.mxu0 0
      %667 = vmatprep.subr.bf16.mxu0 0
      %668 = vmatpush2.bf16.msra.mxu0 0
      %669 = vmatprep.subr.bf16.mxu0 0
      %670 = vmatpush2.bf16.msra.mxu0 0
      %671 = vmatprep.subr.bf16.mxu0 0
      %672 = vmatpush2.bf16.msra.mxu0 0
      %673 = vmatprep.subr.bf16.mxu0 0
      %674 = vmatpush2.bf16.msra.mxu0 0
      %675 = vmatprep.subr.bf16.mxu0 0
      %676 = vmatpush2.bf16.msra.mxu0 0
      %677 = vmatprep.mubr.bf16.mxu0 0
      %678 = vmatmul.mubr.bf16.gmra.mxu0 %v581
      %v679 = vpop.f32.mrf.mxu0
      %v680 = vadd.f32 %v487, %v679
      %v681 = vpop.f32.mrf.mxu0
      %v682 = vpop.f32.mrf.mxu0
      %v683 = vadd.f32 %v490, %v682
      %v684 = vpop.f32.mrf.mxu0
      %685 = vmatprep.mubr.bf16.mxu0 0
      %686 = vmatmul.mubr.bf16.gmra.mxu0 %v582
      %v687 = vpop.f32.mrf.mxu0
      %v688 = vadd.f32 %v495, %v687
      %v689 = vpop.f32.mrf.mxu0
      %v690 = vpop.f32.mrf.mxu0
      %v691 = vadd.f32 %v498, %v690
      %v692 = vpop.f32.mrf.mxu0
      %693 = vmatprep.mubr.bf16.mxu0 0
      %694 = vmatmul.mubr.bf16.gmra.mxu0 %v583
      %v695 = vpop.f32.mrf.mxu0
      %v696 = vadd.f32 %v503, %v695
      %v697 = vpop.f32.mrf.mxu0
      %v698 = vpop.f32.mrf.mxu0
      %v699 = vadd.f32 %v506, %v698
      %v700 = vpop.f32.mrf.mxu0
      %701 = vmatprep.mubr.bf16.mxu0 0
      %702 = vmatmul.mubr.bf16.gmra.mxu0 %v584
      %v703 = vpop.f32.mrf.mxu0
      %v704 = vadd.f32 %v511, %v703
      %v705 = vpop.f32.mrf.mxu0
      %v706 = vpop.f32.mrf.mxu0
      %v707 = vadd.f32 %v514, %v706
      %v708 = vpop.f32.mrf.mxu0
      %709 = vmatprep.mubr.bf16.mxu0 0
      %710 = vmatmul.mubr.bf16.gmra.mxu0 %v585
      %v711 = vpop.f32.mrf.mxu0
      %v712 = vadd.f32 %v519, %v711
      %v713 = vpop.f32.mrf.mxu0
      %v714 = vpop.f32.mrf.mxu0
      %v715 = vadd.f32 %v522, %v714
      %v716 = vpop.f32.mrf.mxu0
      %717 = vmatprep.mubr.bf16.mxu0 0
      %718 = vmatmul.mubr.bf16.gmra.mxu0 %v586
      %v719 = vpop.f32.mrf.mxu0
      %v720 = vadd.f32 %v527, %v719
      %v721 = vpop.f32.mrf.mxu0
      %v722 = vpop.f32.mrf.mxu0
      %v723 = vadd.f32 %v530, %v722
      %v724 = vpop.f32.mrf.mxu0
      %725 = vmatprep.mubr.bf16.mxu0 0
      %726 = vmatmul.mubr.bf16.gmra.mxu0 %v587
      %v727 = vpop.f32.mrf.mxu0
      %v728 = vadd.f32 %v535, %v727
      %v729 = vpop.f32.mrf.mxu0
      %v730 = vpop.f32.mrf.mxu0
      %v731 = vadd.f32 %v538, %v730
      %v732 = vpop.f32.mrf.mxu0
      %733 = vmatprep.mubr.bf16.mxu0 0
      %734 = vmatmul.mubr.bf16.gmra.mxu0 %v588
      %v735 = vpop.f32.mrf.mxu0
      %v736 = vadd.f32 %v543, %v735
      %v737 = vpop.f32.mrf.mxu0
      %v738 = vpop.f32.mrf.mxu0
      %v739 = vadd.f32 %v546, %v738
      %v740 = vpop.f32.mrf.mxu0
      %741 = vdwg.mxu0
      %v742 = vld [vmem:[%s273] sm:$0xf]
      %v743 = vld [vmem:[%s273 + $0x10] sm:$0xf]
      %v744 = vld [vmem:[%s273 + $0x20] sm:$0xf]
      %v745 = vld [vmem:[%s273 + $0x30] sm:$0xf]
      %v746 = vld [vmem:[%s273 + $0x40] sm:$0xf]
      %v747 = vld [vmem:[%s273 + $0x50] sm:$0xf]
      %v748 = vld [vmem:[%s273 + $0x60] sm:$0xf]
      %v749 = vld [vmem:[%s273 + $0x70] sm:$0xf]
      %v750 = vld [vmem:[%s273 + $0x80] sm:$0xf]
      %v751 = vld [vmem:[%s273 + $0x90] sm:$0xf]
      %v752 = vld [vmem:[%s273 + $0xa0] sm:$0xf]
      %v753 = vld [vmem:[%s273 + $0xb0] sm:$0xf]
      %v754 = vld [vmem:[%s273 + $0xc0] sm:$0xf]
      %v755 = vld [vmem:[%s273 + $0xd0] sm:$0xf]
      %v756 = vld [vmem:[%s273 + $0xe0] sm:$0xf]
      %v757 = vld [vmem:[%s273 + $0xf0] sm:$0xf]
      %v758 = vld [vmem:[%s273 + $0x100] sm:$0x1]
      %s759 = scalar_lea.vmem %s1, 128
      %v760 = vld [vmem:[%s759] sm:$0xf]
      %v761 = vld [vmem:[%s759 + $0x4] sm:$0xf]
      %v762 = vld [vmem:[%s759 + $0x8] sm:$0xf]
      %v763 = vld [vmem:[%s759 + $0xc] sm:$0xf]
      %v764 = vld [vmem:[%s759 + $0x10] sm:$0xf]
      %v765 = vld [vmem:[%s759 + $0x14] sm:$0xf]
      %v766 = vld [vmem:[%s759 + $0x18] sm:$0xf]
      %v767 = vld [vmem:[%s759 + $0x1c] sm:$0xf]
      %v768 = vld [vmem:[%s759 + $0x20] sm:$0xf]
      %v769 = vld [vmem:[%s759 + $0x24] sm:$0xf]
      %v770 = vld [vmem:[%s759 + $0x28] sm:$0xf]
      %v771 = vld [vmem:[%s759 + $0x2c] sm:$0xf]
      %v772 = vld [vmem:[%s759 + $0x30] sm:$0xf]
      %v773 = vld [vmem:[%s759 + $0x34] sm:$0xf]
      %v774 = vld [vmem:[%s759 + $0x38] sm:$0xf]
      %v775 = vld [vmem:[%s759 + $0x3c] sm:$0xf]
      %v793 = vunpack.c.l.b16 %v742
      %v794 = vunpack.c.l.b16 %v743
      %v795 = vunpack.c.l.b16 %v744
      %v796 = vunpack.c.l.b16 %v745
      %v797 = vunpack.c.l.b16 %v746
      %v798 = vunpack.c.l.b16 %v747
      %v799 = vunpack.c.l.b16 %v748
      %v800 = vunpack.c.l.b16 %v749
      %v801 = vunpack.c.l.b16 %v750
      %v802 = vunpack.c.l.b16 %v751
      %v803 = vunpack.c.l.b16 %v752
      %v804 = vunpack.c.l.b16 %v753
      %v805 = vunpack.c.l.b16 %v754
      %v806 = vunpack.c.l.b16 %v755
      %v807 = vunpack.c.l.b16 %v756
      %v808 = vunpack.c.l.b16 %v757
      %v809 = vunpack.c.l.b16 %v758
      %v810 = vpack.c.b16 %v794, %v793
      %v811 = vpack.c.b16 %v796, %v795
      %v812 = vpack.c.b16 %v798, %v797
      %v813 = vpack.c.b16 %v800, %v799
      %v814 = vpack.c.b16 %v802, %v801
      %v815 = vpack.c.b16 %v804, %v803
      %v816 = vpack.c.b16 %v806, %v805
      %v817 = vpack.c.b16 %v808, %v807
      %v818 = vpack.c.b16 %v809, %v809
      %vm819 = vsmask.f32 7424
      %v821 = vshrl.u32 %v810, 16
      %v823 = vshll.u32 %v810, 16
      %v825 = vrot.slane %v823, 1
      %v826 = vor.u32 %v821, %v825
      %v828 = vshll.u32 %v811, 16
      %v830 = vrot.slane %v828, 1
      %v831 = vsel %vm819, %v826, %v830
      %v832 = vshrl.u32 %v811, 16
      %v834 = vor.u32 %v832, %v830
      %v836 = vshll.u32 %v812, 16
      %v838 = vrot.slane %v836, 1
      %v839 = vsel %vm819, %v834, %v838
      %v840 = vshrl.u32 %v812, 16
      %v842 = vor.u32 %v840, %v838
      %v844 = vshll.u32 %v813, 16
      %v846 = vrot.slane %v844, 1
      %v847 = vsel %vm819, %v842, %v846
      %v848 = vshrl.u32 %v813, 16
      %v850 = vor.u32 %v848, %v846
      %v852 = vshll.u32 %v814, 16
      %v854 = vrot.slane %v852, 1
      %v855 = vsel %vm819, %v850, %v854
      %v856 = vshrl.u32 %v814, 16
      %v858 = vor.u32 %v856, %v854
      %v860 = vshll.u32 %v815, 16
      %v862 = vrot.slane %v860, 1
      %v863 = vsel %vm819, %v858, %v862
      %v864 = vshrl.u32 %v815, 16
      %v866 = vor.u32 %v864, %v862
      %v868 = vshll.u32 %v816, 16
      %v870 = vrot.slane %v868, 1
      %v871 = vsel %vm819, %v866, %v870
      %v872 = vshrl.u32 %v816, 16
      %v874 = vor.u32 %v872, %v870
      %v876 = vshll.u32 %v817, 16
      %v878 = vrot.slane %v876, 1
      %v879 = vsel %vm819, %v874, %v878
      %v880 = vshrl.u32 %v817, 16
      %v882 = vor.u32 %v880, %v878
      %v884 = vshll.u32 %v818, 16
      %v886 = vrot.slane %v884, 1
      %v887 = vsel %vm819, %v882, %v886
      %v912 = vunpack.c.l.b16 %v760
      %v913 = vunpack.c.l.b16 %v761
      %v914 = vunpack.c.l.b16 %v762
      %v915 = vunpack.c.l.b16 %v763
      %v916 = vunpack.c.l.b16 %v764
      %v917 = vunpack.c.l.b16 %v765
      %v918 = vunpack.c.l.b16 %v766
      %v919 = vunpack.c.l.b16 %v767
      %v920 = vunpack.c.l.b16 %v768
      %v921 = vunpack.c.l.b16 %v769
      %v922 = vunpack.c.l.b16 %v770
      %v923 = vunpack.c.l.b16 %v771
      %v924 = vunpack.c.l.b16 %v772
      %v925 = vunpack.c.l.b16 %v773
      %v926 = vunpack.c.l.b16 %v774
      %v927 = vunpack.c.l.b16 %v775
      %v928 = vpack.c.b16 %v913, %v912
      %v929 = vpack.c.b16 %v915, %v914
      %v930 = vpack.c.b16 %v917, %v916
      %v931 = vpack.c.b16 %v919, %v918
      %v932 = vpack.c.b16 %v921, %v920
      %v933 = vpack.c.b16 %v923, %v922
      %v934 = vpack.c.b16 %v925, %v924
      %v935 = vpack.c.b16 %v927, %v926
      %944 = vmatprep.subr.bf16.mxu0 0
      %945 = vmatpush1.bf16.msra.mxu0 %v935
      %946 = vmatprep.subr.bf16.mxu0 0
      %947 = vmatpush1.bf16.msra.mxu0 %v934
      %948 = vmatprep.subr.bf16.mxu0 0
      %949 = vmatpush1.bf16.msra.mxu0 %v933
      %950 = vmatprep.subr.bf16.mxu0 0
      %951 = vmatpush1.bf16.msra.mxu0 %v932
      %952 = vmatprep.subr.bf16.mxu0 0
      %953 = vmatpush1.bf16.msra.mxu0 %v931
      %954 = vmatprep.subr.bf16.mxu0 0
      %955 = vmatpush1.bf16.msra.mxu0 %v930
      %956 = vmatprep.subr.bf16.mxu0 0
      %957 = vmatpush1.bf16.msra.mxu0 %v929
      %958 = vmatprep.subr.bf16.mxu0 0
      %959 = vmatpush1.bf16.msra.mxu0 %v928
      %960 = vmatprep.subr.bf16.mxu0 0
      %961 = vmatpush2.bf16.msra.mxu0 0
      %962 = vmatprep.subr.bf16.mxu0 0
      %963 = vmatpush2.bf16.msra.mxu0 0
      %964 = vmatprep.subr.bf16.mxu0 0
      %965 = vmatpush2.bf16.msra.mxu0 0
      %966 = vmatprep.subr.bf16.mxu0 0
      %967 = vmatpush2.bf16.msra.mxu0 0
      %968 = vmatprep.subr.bf16.mxu0 0
      %969 = vmatpush2.bf16.msra.mxu0 0
      %970 = vmatprep.subr.bf16.mxu0 0
      %971 = vmatpush2.bf16.msra.mxu0 0
      %972 = vmatprep.subr.bf16.mxu0 0
      %973 = vmatpush2.bf16.msra.mxu0 0
      %974 = vmatprep.subr.bf16.mxu0 0
      %975 = vmatpush2.bf16.msra.mxu0 0
      %976 = vmatprep.mubr.bf16.mxu0 0
      %977 = vmatmul.mubr.bf16.gmra.mxu0 %v831
      %v978 = vpop.f32.mrf.mxu0
      %v979 = vadd.f32 0.0, %v978
      %v980 = vpop.f32.mrf.mxu0
      %v981 = vpop.f32.mrf.mxu0
      %v982 = vadd.f32 0.0, %v981
      %v983 = vpop.f32.mrf.mxu0
      %984 = vmatprep.mubr.bf16.mxu0 0
      %985 = vmatmul.mubr.bf16.gmra.mxu0 %v839
      %v986 = vpop.f32.mrf.mxu0
      %v987 = vadd.f32 0.0, %v986
      %v988 = vpop.f32.mrf.mxu0
      %v989 = vpop.f32.mrf.mxu0
      %v990 = vadd.f32 0.0, %v989
      %v991 = vpop.f32.mrf.mxu0
      %992 = vmatprep.mubr.bf16.mxu0 0
      %993 = vmatmul.mubr.bf16.gmra.mxu0 %v847
      %v994 = vpop.f32.mrf.mxu0
      %v995 = vadd.f32 0.0, %v994
      %v996 = vpop.f32.mrf.mxu0
      %v997 = vpop.f32.mrf.mxu0
      %v998 = vadd.f32 0.0, %v997
      %v999 = vpop.f32.mrf.mxu0
      %1000 = vmatprep.mubr.bf16.mxu0 0
      %1001 = vmatmul.mubr.bf16.gmra.mxu0 %v855
      %v1002 = vpop.f32.mrf.mxu0
      %v1003 = vadd.f32 0.0, %v1002
      %v1004 = vpop.f32.mrf.mxu0
      %v1005 = vpop.f32.mrf.mxu0
      %v1006 = vadd.f32 0.0, %v1005
      %v1007 = vpop.f32.mrf.mxu0
      %1008 = vmatprep.mubr.bf16.mxu0 0
      %1009 = vmatmul.mubr.bf16.gmra.mxu0 %v863
      %v1010 = vpop.f32.mrf.mxu0
      %v1011 = vadd.f32 0.0, %v1010
      %v1012 = vpop.f32.mrf.mxu0
      %v1013 = vpop.f32.mrf.mxu0
      %v1014 = vadd.f32 0.0, %v1013
      %v1015 = vpop.f32.mrf.mxu0
      %1016 = vmatprep.mubr.bf16.mxu0 0
      %1017 = vmatmul.mubr.bf16.gmra.mxu0 %v871
      %v1018 = vpop.f32.mrf.mxu0
      %v1019 = vadd.f32 0.0, %v1018
      %v1020 = vpop.f32.mrf.mxu0
      %v1021 = vpop.f32.mrf.mxu0
      %v1022 = vadd.f32 0.0, %v1021
      %v1023 = vpop.f32.mrf.mxu0
      %1024 = vmatprep.mubr.bf16.mxu0 0
      %1025 = vmatmul.mubr.bf16.gmra.mxu0 %v879
      %v1026 = vpop.f32.mrf.mxu0
      %v1027 = vadd.f32 0.0, %v1026
      %v1028 = vpop.f32.mrf.mxu0
      %v1029 = vpop.f32.mrf.mxu0
      %v1030 = vadd.f32 0.0, %v1029
      %v1031 = vpop.f32.mrf.mxu0
      %1032 = vmatprep.mubr.bf16.mxu0 0
      %1033 = vmatmul.mubr.bf16.gmra.mxu0 %v887
      %v1034 = vpop.f32.mrf.mxu0
      %v1035 = vadd.f32 0.0, %v1034
      %v1036 = vpop.f32.mrf.mxu0
      %v1037 = vpop.f32.mrf.mxu0
      %v1038 = vadd.f32 0.0, %v1037
      %v1039 = vpop.f32.mrf.mxu0
      %1040 = vdwg.mxu0
      %v1041 = vadd.f32 %v680, %v979
      %v1042 = vadd.f32 %v683, %v982
      %v1043 = vadd.f32 %v688, %v987
      %v1044 = vadd.f32 %v691, %v990
      %v1045 = vadd.f32 %v696, %v995
      %v1046 = vadd.f32 %v699, %v998
      %v1047 = vadd.f32 %v704, %v1003
      %v1048 = vadd.f32 %v707, %v1006
      %v1049 = vadd.f32 %v712, %v1011
      %v1050 = vadd.f32 %v715, %v1014
      %v1051 = vadd.f32 %v720, %v1019
      %v1052 = vadd.f32 %v723, %v1022
      %v1053 = vadd.f32 %v728, %v1027
      %v1054 = vadd.f32 %v731, %v1030
      %v1055 = vadd.f32 %v736, %v1035
      %v1056 = vadd.f32 %v739, %v1038
      %v1057 = vld [vmem:[%s273 + $0x8] sm:$0xf]
      %v1058 = vld [vmem:[%s273 + $0x18] sm:$0xf]
      %v1059 = vld [vmem:[%s273 + $0x28] sm:$0xf]
      %v1060 = vld [vmem:[%s273 + $0x38] sm:$0xf]
      %v1061 = vld [vmem:[%s273 + $0x48] sm:$0xf]
      %v1062 = vld [vmem:[%s273 + $0x58] sm:$0xf]
      %v1063 = vld [vmem:[%s273 + $0x68] sm:$0xf]
      %v1064 = vld [vmem:[%s273 + $0x78] sm:$0xf]
      %v1065 = vld [vmem:[%s273 + $0x88] sm:$0xf]
      %v1066 = vld [vmem:[%s273 + $0x98] sm:$0xf]
      %v1067 = vld [vmem:[%s273 + $0xa8] sm:$0xf]
      %v1068 = vld [vmem:[%s273 + $0xb8] sm:$0xf]
      %v1069 = vld [vmem:[%s273 + $0xc8] sm:$0xf]
      %v1070 = vld [vmem:[%s273 + $0xd8] sm:$0xf]
      %v1071 = vld [vmem:[%s273 + $0xe8] sm:$0xf]
      %v1072 = vld [vmem:[%s273 + $0xf8] sm:$0xf]
      %s1073 = scalar_lea.vmem %s1, 192
      %v1074 = vld [vmem:[%s1073] sm:$0xf]
      %v1075 = vld [vmem:[%s1073 + $0x4] sm:$0xf]
      %v1076 = vld [vmem:[%s1073 + $0x8] sm:$0xf]
      %v1077 = vld [vmem:[%s1073 + $0xc] sm:$0xf]
      %v1078 = vld [vmem:[%s1073 + $0x10] sm:$0xf]
      %v1079 = vld [vmem:[%s1073 + $0x14] sm:$0xf]
      %v1080 = vld [vmem:[%s1073 + $0x18] sm:$0xf]
      %v1081 = vld [vmem:[%s1073 + $0x1c] sm:$0xf]
      %v1082 = vld [vmem:[%s1073 + $0x20] sm:$0xf]
      %v1083 = vld [vmem:[%s1073 + $0x24] sm:$0xf]
      %v1084 = vld [vmem:[%s1073 + $0x28] sm:$0xf]
      %v1085 = vld [vmem:[%s1073 + $0x2c] sm:$0xf]
      %v1086 = vld [vmem:[%s1073 + $0x30] sm:$0xf]
      %v1087 = vld [vmem:[%s1073 + $0x34] sm:$0xf]
      %v1088 = vld [vmem:[%s1073 + $0x38] sm:$0xf]
      %v1089 = vld [vmem:[%s1073 + $0x3c] sm:$0xf]
      %v1106 = vunpack.c.l.b16 %v1057
      %v1107 = vunpack.c.l.b16 %v1058
      %v1108 = vunpack.c.l.b16 %v1059
      %v1109 = vunpack.c.l.b16 %v1060
      %v1110 = vunpack.c.l.b16 %v1061
      %v1111 = vunpack.c.l.b16 %v1062
      %v1112 = vunpack.c.l.b16 %v1063
      %v1113 = vunpack.c.l.b16 %v1064
      %v1114 = vunpack.c.l.b16 %v1065
      %v1115 = vunpack.c.l.b16 %v1066
      %v1116 = vunpack.c.l.b16 %v1067
      %v1117 = vunpack.c.l.b16 %v1068
      %v1118 = vunpack.c.l.b16 %v1069
      %v1119 = vunpack.c.l.b16 %v1070
      %v1120 = vunpack.c.l.b16 %v1071
      %v1121 = vunpack.c.l.b16 %v1072
      %v1122 = vpack.c.b16 %v1107, %v1106
      %v1123 = vpack.c.b16 %v1109, %v1108
      %v1124 = vpack.c.b16 %v1111, %v1110
      %v1125 = vpack.c.b16 %v1113, %v1112
      %v1126 = vpack.c.b16 %v1115, %v1114
      %v1127 = vpack.c.b16 %v1117, %v1116
      %v1128 = vpack.c.b16 %v1119, %v1118
      %v1129 = vpack.c.b16 %v1121, %v1120
      %v1154 = vunpack.c.l.b16 %v1074
      %v1155 = vunpack.c.l.b16 %v1075
      %v1156 = vunpack.c.l.b16 %v1076
      %v1157 = vunpack.c.l.b16 %v1077
      %v1158 = vunpack.c.l.b16 %v1078
      %v1159 = vunpack.c.l.b16 %v1079
      %v1160 = vunpack.c.l.b16 %v1080
      %v1161 = vunpack.c.l.b16 %v1081
      %v1162 = vunpack.c.l.b16 %v1082
      %v1163 = vunpack.c.l.b16 %v1083
      %v1164 = vunpack.c.l.b16 %v1084
      %v1165 = vunpack.c.l.b16 %v1085
      %v1166 = vunpack.c.l.b16 %v1086
      %v1167 = vunpack.c.l.b16 %v1087
      %v1168 = vunpack.c.l.b16 %v1088
      %v1169 = vunpack.c.l.b16 %v1089
      %v1170 = vpack.c.b16 %v1155, %v1154
      %v1171 = vpack.c.b16 %v1157, %v1156
      %v1172 = vpack.c.b16 %v1159, %v1158
      %v1173 = vpack.c.b16 %v1161, %v1160
      %v1174 = vpack.c.b16 %v1163, %v1162
      %v1175 = vpack.c.b16 %v1165, %v1164
      %v1176 = vpack.c.b16 %v1167, %v1166
      %v1177 = vpack.c.b16 %v1169, %v1168
      %1186 = vmatprep.subr.bf16.mxu0 0
      %1187 = vmatpush1.bf16.msra.mxu0 %v1177
      %1188 = vmatprep.subr.bf16.mxu0 0
      %1189 = vmatpush1.bf16.msra.mxu0 %v1176
      %1190 = vmatprep.subr.bf16.mxu0 0
      %1191 = vmatpush1.bf16.msra.mxu0 %v1175
      %1192 = vmatprep.subr.bf16.mxu0 0
      %1193 = vmatpush1.bf16.msra.mxu0 %v1174
      %1194 = vmatprep.subr.bf16.mxu0 0
      %1195 = vmatpush1.bf16.msra.mxu0 %v1173
      %1196 = vmatprep.subr.bf16.mxu0 0
      %1197 = vmatpush1.bf16.msra.mxu0 %v1172
      %1198 = vmatprep.subr.bf16.mxu0 0
      %1199 = vmatpush1.bf16.msra.mxu0 %v1171
      %1200 = vmatprep.subr.bf16.mxu0 0
      %1201 = vmatpush1.bf16.msra.mxu0 %v1170
      %1202 = vmatprep.subr.bf16.mxu0 0
      %1203 = vmatpush2.bf16.msra.mxu0 0
      %1204 = vmatprep.subr.bf16.mxu0 0
      %1205 = vmatpush2.bf16.msra.mxu0 0
      %1206 = vmatprep.subr.bf16.mxu0 0
      %1207 = vmatpush2.bf16.msra.mxu0 0
      %1208 = vmatprep.subr.bf16.mxu0 0
      %1209 = vmatpush2.bf16.msra.mxu0 0
      %1210 = vmatprep.subr.bf16.mxu0 0
      %1211 = vmatpush2.bf16.msra.mxu0 0
      %1212 = vmatprep.subr.bf16.mxu0 0
      %1213 = vmatpush2.bf16.msra.mxu0 0
      %1214 = vmatprep.subr.bf16.mxu0 0
      %1215 = vmatpush2.bf16.msra.mxu0 0
      %1216 = vmatprep.subr.bf16.mxu0 0
      %1217 = vmatpush2.bf16.msra.mxu0 0
      %1218 = vmatprep.mubr.bf16.mxu0 0
      %1219 = vmatmul.mubr.bf16.gmra.mxu0 %v1122
      %v1220 = vpop.f32.mrf.mxu0
      %v1221 = vadd.f32 0.0, %v1220
      %v1222 = vpop.f32.mrf.mxu0
      %v1223 = vpop.f32.mrf.mxu0
      %v1224 = vadd.f32 0.0, %v1223
      %v1225 = vpop.f32.mrf.mxu0
      %1226 = vmatprep.mubr.bf16.mxu0 0
      %1227 = vmatmul.mubr.bf16.gmra.mxu0 %v1123
      %v1228 = vpop.f32.mrf.mxu0
      %v1229 = vadd.f32 0.0, %v1228
      %v1230 = vpop.f32.mrf.mxu0
      %v1231 = vpop.f32.mrf.mxu0
      %v1232 = vadd.f32 0.0, %v1231
      %v1233 = vpop.f32.mrf.mxu0
      %1234 = vmatprep.mubr.bf16.mxu0 0
      %1235 = vmatmul.mubr.bf16.gmra.mxu0 %v1124
      %v1236 = vpop.f32.mrf.mxu0
      %v1237 = vadd.f32 0.0, %v1236
      %v1238 = vpop.f32.mrf.mxu0
      %v1239 = vpop.f32.mrf.mxu0
      %v1240 = vadd.f32 0.0, %v1239
      %v1241 = vpop.f32.mrf.mxu0
      %1242 = vmatprep.mubr.bf16.mxu0 0
      %1243 = vmatmul.mubr.bf16.gmra.mxu0 %v1125
      %v1244 = vpop.f32.mrf.mxu0
      %v1245 = vadd.f32 0.0, %v1244
      %v1246 = vpop.f32.mrf.mxu0
      %v1247 = vpop.f32.mrf.mxu0
      %v1248 = vadd.f32 0.0, %v1247
      %v1249 = vpop.f32.mrf.mxu0
      %1250 = vmatprep.mubr.bf16.mxu0 0
      %1251 = vmatmul.mubr.bf16.gmra.mxu0 %v1126
      %v1252 = vpop.f32.mrf.mxu0
      %v1253 = vadd.f32 0.0, %v1252
      %v1254 = vpop.f32.mrf.mxu0
      %v1255 = vpop.f32.mrf.mxu0
      %v1256 = vadd.f32 0.0, %v1255
      %v1257 = vpop.f32.mrf.mxu0
      %1258 = vmatprep.mubr.bf16.mxu0 0
      %1259 = vmatmul.mubr.bf16.gmra.mxu0 %v1127
      %v1260 = vpop.f32.mrf.mxu0
      %v1261 = vadd.f32 0.0, %v1260
      %v1262 = vpop.f32.mrf.mxu0
      %v1263 = vpop.f32.mrf.mxu0
      %v1264 = vadd.f32 0.0, %v1263
      %v1265 = vpop.f32.mrf.mxu0
      %1266 = vmatprep.mubr.bf16.mxu0 0
      %1267 = vmatmul.mubr.bf16.gmra.mxu0 %v1128
      %v1268 = vpop.f32.mrf.mxu0
      %v1269 = vadd.f32 0.0, %v1268
      %v1270 = vpop.f32.mrf.mxu0
      %v1271 = vpop.f32.mrf.mxu0
      %v1272 = vadd.f32 0.0, %v1271
      %v1273 = vpop.f32.mrf.mxu0
      %1274 = vmatprep.mubr.bf16.mxu0 0
      %1275 = vmatmul.mubr.bf16.gmra.mxu0 %v1129
      %v1276 = vpop.f32.mrf.mxu0
      %v1277 = vadd.f32 0.0, %v1276
      %v1278 = vpop.f32.mrf.mxu0
      %v1279 = vpop.f32.mrf.mxu0
      %v1280 = vadd.f32 0.0, %v1279
      %v1281 = vpop.f32.mrf.mxu0
      %1282 = vdwg.mxu0
      %v1283 = vadd.f32 %v1041, %v1221
      %v1284 = vadd.f32 %v1042, %v1224
      %v1285 = vadd.f32 %v1043, %v1229
      %v1286 = vadd.f32 %v1044, %v1232
      %v1287 = vadd.f32 %v1045, %v1237
      %v1288 = vadd.f32 %v1046, %v1240
      %v1289 = vadd.f32 %v1047, %v1245
      %v1290 = vadd.f32 %v1048, %v1248
      %v1291 = vadd.f32 %v1049, %v1253
      %v1292 = vadd.f32 %v1050, %v1256
      %v1293 = vadd.f32 %v1051, %v1261
      %v1294 = vadd.f32 %v1052, %v1264
      %v1295 = vadd.f32 %v1053, %v1269
      %v1296 = vadd.f32 %v1054, %v1272
      %v1297 = vadd.f32 %v1055, %v1277
      %v1298 = vadd.f32 %v1056, %v1280
      %v1299 = vld [vmem:[%s273 + $0xc] sm:$0xf]
      %v1300 = vld [vmem:[%s273 + $0x1c] sm:$0xf]
      %v1301 = vld [vmem:[%s273 + $0x2c] sm:$0xf]
      %v1302 = vld [vmem:[%s273 + $0x3c] sm:$0xf]
      %v1303 = vld [vmem:[%s273 + $0x4c] sm:$0xf]
      %v1304 = vld [vmem:[%s273 + $0x5c] sm:$0xf]
      %v1305 = vld [vmem:[%s273 + $0x6c] sm:$0xf]
      %v1306 = vld [vmem:[%s273 + $0x7c] sm:$0xf]
      %v1307 = vld [vmem:[%s273 + $0x8c] sm:$0xf]
      %v1308 = vld [vmem:[%s273 + $0x9c] sm:$0xf]
      %v1309 = vld [vmem:[%s273 + $0xac] sm:$0xf]
      %v1310 = vld [vmem:[%s273 + $0xbc] sm:$0xf]
      %v1311 = vld [vmem:[%s273 + $0xcc] sm:$0xf]
      %v1312 = vld [vmem:[%s273 + $0xdc] sm:$0xf]
      %v1313 = vld [vmem:[%s273 + $0xec] sm:$0xf]
      %v1314 = vld [vmem:[%s273 + $0xfc] sm:$0xf]
      %s1315 = scalar_lea.vmem %s1, 256
      %v1316 = vld [vmem:[%s1315] sm:$0xf]
      %v1317 = vld [vmem:[%s1315 + $0x4] sm:$0xf]
      %v1318 = vld [vmem:[%s1315 + $0x8] sm:$0xf]
      %v1319 = vld [vmem:[%s1315 + $0xc] sm:$0xf]
      %v1320 = vld [vmem:[%s1315 + $0x10] sm:$0xf]
      %v1321 = vld [vmem:[%s1315 + $0x14] sm:$0xf]
      %v1322 = vld [vmem:[%s1315 + $0x18] sm:$0xf]
      %v1323 = vld [vmem:[%s1315 + $0x1c] sm:$0xf]
      %v1324 = vld [vmem:[%s1315 + $0x20] sm:$0xf]
      %v1325 = vld [vmem:[%s1315 + $0x24] sm:$0xf]
      %v1326 = vld [vmem:[%s1315 + $0x28] sm:$0xf]
      %v1327 = vld [vmem:[%s1315 + $0x2c] sm:$0xf]
      %v1328 = vld [vmem:[%s1315 + $0x30] sm:$0xf]
      %v1329 = vld [vmem:[%s1315 + $0x34] sm:$0xf]
      %v1330 = vld [vmem:[%s1315 + $0x38] sm:$0xf]
      %v1331 = vld [vmem:[%s1315 + $0x3c] sm:$0xf]
      %v1348 = vunpack.c.l.b16 %v1299
      %v1349 = vunpack.c.l.b16 %v1300
      %v1350 = vunpack.c.l.b16 %v1301
      %v1351 = vunpack.c.l.b16 %v1302
      %v1352 = vunpack.c.l.b16 %v1303
      %v1353 = vunpack.c.l.b16 %v1304
      %v1354 = vunpack.c.l.b16 %v1305
      %v1355 = vunpack.c.l.b16 %v1306
      %v1356 = vunpack.c.l.b16 %v1307
      %v1357 = vunpack.c.l.b16 %v1308
      %v1358 = vunpack.c.l.b16 %v1309
      %v1359 = vunpack.c.l.b16 %v1310
      %v1360 = vunpack.c.l.b16 %v1311
      %v1361 = vunpack.c.l.b16 %v1312
      %v1362 = vunpack.c.l.b16 %v1313
      %v1363 = vunpack.c.l.b16 %v1314
      %v1364 = vpack.c.b16 %v1349, %v1348
      %v1365 = vpack.c.b16 %v1351, %v1350
      %v1366 = vpack.c.b16 %v1353, %v1352
      %v1367 = vpack.c.b16 %v1355, %v1354
      %v1368 = vpack.c.b16 %v1357, %v1356
      %v1369 = vpack.c.b16 %v1359, %v1358
      %v1370 = vpack.c.b16 %v1361, %v1360
      %v1371 = vpack.c.b16 %v1363, %v1362
      %v1396 = vunpack.c.l.b16 %v1316
      %v1397 = vunpack.c.l.b16 %v1317
      %v1398 = vunpack.c.l.b16 %v1318
      %v1399 = vunpack.c.l.b16 %v1319
      %v1400 = vunpack.c.l.b16 %v1320
      %v1401 = vunpack.c.l.b16 %v1321
      %v1402 = vunpack.c.l.b16 %v1322
      %v1403 = vunpack.c.l.b16 %v1323
      %v1404 = vunpack.c.l.b16 %v1324
      %v1405 = vunpack.c.l.b16 %v1325
      %v1406 = vunpack.c.l.b16 %v1326
      %v1407 = vunpack.c.l.b16 %v1327
      %v1408 = vunpack.c.l.b16 %v1328
      %v1409 = vunpack.c.l.b16 %v1329
      %v1410 = vunpack.c.l.b16 %v1330
      %v1411 = vunpack.c.l.b16 %v1331
      %v1412 = vpack.c.b16 %v1397, %v1396
      %v1413 = vpack.c.b16 %v1399, %v1398
      %v1414 = vpack.c.b16 %v1401, %v1400
      %v1415 = vpack.c.b16 %v1403, %v1402
      %v1416 = vpack.c.b16 %v1405, %v1404
      %v1417 = vpack.c.b16 %v1407, %v1406
      %v1418 = vpack.c.b16 %v1409, %v1408
      %v1419 = vpack.c.b16 %v1411, %v1410
      %1428 = vmatprep.subr.bf16.mxu0 0
      %1429 = vmatpush1.bf16.msra.mxu0 %v1419
      %1430 = vmatprep.subr.bf16.mxu0 0
      %1431 = vmatpush1.bf16.msra.mxu0 %v1418
      %1432 = vmatprep.subr.bf16.mxu0 0
      %1433 = vmatpush1.bf16.msra.mxu0 %v1417
      %1434 = vmatprep.subr.bf16.mxu0 0
      %1435 = vmatpush1.bf16.msra.mxu0 %v1416
      %1436 = vmatprep.subr.bf16.mxu0 0
      %1437 = vmatpush1.bf16.msra.mxu0 %v1415
      %1438 = vmatprep.subr.bf16.mxu0 0
      %1439 = vmatpush1.bf16.msra.mxu0 %v1414
      %1440 = vmatprep.subr.bf16.mxu0 0
      %1441 = vmatpush1.bf16.msra.mxu0 %v1413
      %1442 = vmatprep.subr.bf16.mxu0 0
      %1443 = vmatpush1.bf16.msra.mxu0 %v1412
      %1444 = vmatprep.subr.bf16.mxu0 0
      %1445 = vmatpush2.bf16.msra.mxu0 0
      %1446 = vmatprep.subr.bf16.mxu0 0
      %1447 = vmatpush2.bf16.msra.mxu0 0
      %1448 = vmatprep.subr.bf16.mxu0 0
      %1449 = vmatpush2.bf16.msra.mxu0 0
      %1450 = vmatprep.subr.bf16.mxu0 0
      %1451 = vmatpush2.bf16.msra.mxu0 0
      %1452 = vmatprep.subr.bf16.mxu0 0
      %1453 = vmatpush2.bf16.msra.mxu0 0
      %1454 = vmatprep.subr.bf16.mxu0 0
      %1455 = vmatpush2.bf16.msra.mxu0 0
      %1456 = vmatprep.subr.bf16.mxu0 0
      %1457 = vmatpush2.bf16.msra.mxu0 0
      %1458 = vmatprep.subr.bf16.mxu0 0
      %1459 = vmatpush2.bf16.msra.mxu0 0
      %1460 = vmatprep.mubr.bf16.mxu0 0
      %1461 = vmatmul.mubr.bf16.gmra.mxu0 %v1364
      %v1462 = vpop.f32.mrf.mxu0
      %v1463 = vadd.f32 0.0, %v1462
      %v1464 = vpop.f32.mrf.mxu0
      %v1465 = vpop.f32.mrf.mxu0
      %v1466 = vadd.f32 0.0, %v1465
      %v1467 = vpop.f32.mrf.mxu0
      %1468 = vmatprep.mubr.bf16.mxu0 0
      %1469 = vmatmul.mubr.bf16.gmra.mxu0 %v1365
      %v1470 = vpop.f32.mrf.mxu0
      %v1471 = vadd.f32 0.0, %v1470
      %v1472 = vpop.f32.mrf.mxu0
      %v1473 = vpop.f32.mrf.mxu0
      %v1474 = vadd.f32 0.0, %v1473
      %v1475 = vpop.f32.mrf.mxu0
      %1476 = vmatprep.mubr.bf16.mxu0 0
      %1477 = vmatmul.mubr.bf16.gmra.mxu0 %v1366
      %v1478 = vpop.f32.mrf.mxu0
      %v1479 = vadd.f32 0.0, %v1478
      %v1480 = vpop.f32.mrf.mxu0
      %v1481 = vpop.f32.mrf.mxu0
      %v1482 = vadd.f32 0.0, %v1481
      %v1483 = vpop.f32.mrf.mxu0
      %1484 = vmatprep.mubr.bf16.mxu0 0
      %1485 = vmatmul.mubr.bf16.gmra.mxu0 %v1367
      %v1486 = vpop.f32.mrf.mxu0
      %v1487 = vadd.f32 0.0, %v1486
      %v1488 = vpop.f32.mrf.mxu0
      %v1489 = vpop.f32.mrf.mxu0
      %v1490 = vadd.f32 0.0, %v1489
      %v1491 = vpop.f32.mrf.mxu0
      %1492 = vmatprep.mubr.bf16.mxu0 0
      %1493 = vmatmul.mubr.bf16.gmra.mxu0 %v1368
      %v1494 = vpop.f32.mrf.mxu0
      %v1495 = vadd.f32 0.0, %v1494
      %v1496 = vpop.f32.mrf.mxu0
      %v1497 = vpop.f32.mrf.mxu0
      %v1498 = vadd.f32 0.0, %v1497
      %v1499 = vpop.f32.mrf.mxu0
      %1500 = vmatprep.mubr.bf16.mxu0 0
      %1501 = vmatmul.mubr.bf16.gmra.mxu0 %v1369
      %v1502 = vpop.f32.mrf.mxu0
      %v1503 = vadd.f32 0.0, %v1502
      %v1504 = vpop.f32.mrf.mxu0
      %v1505 = vpop.f32.mrf.mxu0
      %v1506 = vadd.f32 0.0, %v1505
      %v1507 = vpop.f32.mrf.mxu0
      %1508 = vmatprep.mubr.bf16.mxu0 0
      %1509 = vmatmul.mubr.bf16.gmra.mxu0 %v1370
      %v1510 = vpop.f32.mrf.mxu0
      %v1511 = vadd.f32 0.0, %v1510
      %v1512 = vpop.f32.mrf.mxu0
      %v1513 = vpop.f32.mrf.mxu0
      %v1514 = vadd.f32 0.0, %v1513
      %v1515 = vpop.f32.mrf.mxu0
      %1516 = vmatprep.mubr.bf16.mxu0 0
      %1517 = vmatmul.mubr.bf16.gmra.mxu0 %v1371
      %v1518 = vpop.f32.mrf.mxu0
      %v1519 = vadd.f32 0.0, %v1518
      %v1520 = vpop.f32.mrf.mxu0
      %v1521 = vpop.f32.mrf.mxu0
      %v1522 = vadd.f32 0.0, %v1521
      %v1523 = vpop.f32.mrf.mxu0
      %1524 = vdwg.mxu0
      %v1525 = vadd.f32 %v1283, %v1463
      %v1526 = vadd.f32 %v1284, %v1466
      %v1527 = vadd.f32 %v1285, %v1471
      %v1528 = vadd.f32 %v1286, %v1474
      %v1529 = vadd.f32 %v1287, %v1479
      %v1530 = vadd.f32 %v1288, %v1482
      %v1531 = vadd.f32 %v1289, %v1487
      %v1532 = vadd.f32 %v1290, %v1490
      %v1533 = vadd.f32 %v1291, %v1495
      %v1534 = vadd.f32 %v1292, %v1498
      %v1535 = vadd.f32 %v1293, %v1503
      %v1536 = vadd.f32 %v1294, %v1506
      %v1537 = vadd.f32 %v1295, %v1511
      %v1538 = vadd.f32 %v1296, %v1514
      %v1539 = vadd.f32 %v1297, %v1519
      %v1540 = vadd.f32 %v1298, %v1522
      %v1541 = vld [vmem:[%s273 + $0x8] sm:$0xf]
      %v1542 = vld [vmem:[%s273 + $0x18] sm:$0xf]
      %v1543 = vld [vmem:[%s273 + $0x28] sm:$0xf]
      %v1544 = vld [vmem:[%s273 + $0x38] sm:$0xf]
      %v1545 = vld [vmem:[%s273 + $0x48] sm:$0xf]
      %v1546 = vld [vmem:[%s273 + $0x58] sm:$0xf]
      %v1547 = vld [vmem:[%s273 + $0x68] sm:$0xf]
      %v1548 = vld [vmem:[%s273 + $0x78] sm:$0xf]
      %v1549 = vld [vmem:[%s273 + $0x88] sm:$0xf]
      %v1550 = vld [vmem:[%s273 + $0x98] sm:$0xf]
      %v1551 = vld [vmem:[%s273 + $0xa8] sm:$0xf]
      %v1552 = vld [vmem:[%s273 + $0xb8] sm:$0xf]
      %v1553 = vld [vmem:[%s273 + $0xc8] sm:$0xf]
      %v1554 = vld [vmem:[%s273 + $0xd8] sm:$0xf]
      %v1555 = vld [vmem:[%s273 + $0xe8] sm:$0xf]
      %v1556 = vld [vmem:[%s273 + $0xf8] sm:$0xf]
      %v1557 = vld [vmem:[%s273 + $0x108] sm:$0x1]
      %s1558 = scalar_lea.vmem %s1, 320
      %v1559 = vld [vmem:[%s1558] sm:$0xf]
      %v1560 = vld [vmem:[%s1558 + $0x4] sm:$0xf]
      %v1561 = vld [vmem:[%s1558 + $0x8] sm:$0xf]
      %v1562 = vld [vmem:[%s1558 + $0xc] sm:$0xf]
      %v1563 = vld [vmem:[%s1558 + $0x10] sm:$0xf]
      %v1564 = vld [vmem:[%s1558 + $0x14] sm:$0xf]
      %v1565 = vld [vmem:[%s1558 + $0x18] sm:$0xf]
      %v1566 = vld [vmem:[%s1558 + $0x1c] sm:$0xf]
      %v1567 = vld [vmem:[%s1558 + $0x20] sm:$0xf]
      %v1568 = vld [vmem:[%s1558 + $0x24] sm:$0xf]
      %v1569 = vld [vmem:[%s1558 + $0x28] sm:$0xf]
      %v1570 = vld [vmem:[%s1558 + $0x2c] sm:$0xf]
      %v1571 = vld [vmem:[%s1558 + $0x30] sm:$0xf]
      %v1572 = vld [vmem:[%s1558 + $0x34] sm:$0xf]
      %v1573 = vld [vmem:[%s1558 + $0x38] sm:$0xf]
      %v1574 = vld [vmem:[%s1558 + $0x3c] sm:$0xf]
      %v1592 = vunpack.c.l.b16 %v1541
      %v1593 = vunpack.c.l.b16 %v1542
      %v1594 = vunpack.c.l.b16 %v1543
      %v1595 = vunpack.c.l.b16 %v1544
      %v1596 = vunpack.c.l.b16 %v1545
      %v1597 = vunpack.c.l.b16 %v1546
      %v1598 = vunpack.c.l.b16 %v1547
      %v1599 = vunpack.c.l.b16 %v1548
      %v1600 = vunpack.c.l.b16 %v1549
      %v1601 = vunpack.c.l.b16 %v1550
      %v1602 = vunpack.c.l.b16 %v1551
      %v1603 = vunpack.c.l.b16 %v1552
      %v1604 = vunpack.c.l.b16 %v1553
      %v1605 = vunpack.c.l.b16 %v1554
      %v1606 = vunpack.c.l.b16 %v1555
      %v1607 = vunpack.c.l.b16 %v1556
      %v1608 = vunpack.c.l.b16 %v1557
      %v1609 = vpack.c.b16 %v1593, %v1592
      %v1610 = vpack.c.b16 %v1595, %v1594
      %v1611 = vpack.c.b16 %v1597, %v1596
      %v1612 = vpack.c.b16 %v1599, %v1598
      %v1613 = vpack.c.b16 %v1601, %v1600
      %v1614 = vpack.c.b16 %v1603, %v1602
      %v1615 = vpack.c.b16 %v1605, %v1604
      %v1616 = vpack.c.b16 %v1607, %v1606
      %v1617 = vpack.c.b16 %v1608, %v1608
      %v1619 = vshrl.u32 %v1609, 16
      %v1621 = vshll.u32 %v1609, 16
      %v1623 = vrot.slane %v1621, 1
      %v1624 = vor.u32 %v1619, %v1623
      %v1626 = vshll.u32 %v1610, 16
      %v1628 = vrot.slane %v1626, 1
      %v1629 = vsel %vm819, %v1624, %v1628
      %v1630 = vshrl.u32 %v1610, 16
      %v1632 = vor.u32 %v1630, %v1628
      %v1634 = vshll.u32 %v1611, 16
      %v1636 = vrot.slane %v1634, 1
      %v1637 = vsel %vm819, %v1632, %v1636
      %v1638 = vshrl.u32 %v1611, 16
      %v1640 = vor.u32 %v1638, %v1636
      %v1642 = vshll.u32 %v1612, 16
      %v1644 = vrot.slane %v1642, 1
      %v1645 = vsel %vm819, %v1640, %v1644
      %v1646 = vshrl.u32 %v1612, 16
      %v1648 = vor.u32 %v1646, %v1644
      %v1650 = vshll.u32 %v1613, 16
      %v1652 = vrot.slane %v1650, 1
      %v1653 = vsel %vm819, %v1648, %v1652
      %v1654 = vshrl.u32 %v1613, 16
      %v1656 = vor.u32 %v1654, %v1652
      %v1658 = vshll.u32 %v1614, 16
      %v1660 = vrot.slane %v1658, 1
      %v1661 = vsel %vm819, %v1656, %v1660
      %v1662 = vshrl.u32 %v1614, 16
      %v1664 = vor.u32 %v1662, %v1660
      %v1666 = vshll.u32 %v1615, 16
      %v1668 = vrot.slane %v1666, 1
      %v1669 = vsel %vm819, %v1664, %v1668
      %v1670 = vshrl.u32 %v1615, 16
      %v1672 = vor.u32 %v1670, %v1668
      %v1674 = vshll.u32 %v1616, 16
      %v1676 = vrot.slane %v1674, 1
      %v1677 = vsel %vm819, %v1672, %v1676
      %v1678 = vshrl.u32 %v1616, 16
      %v1680 = vor.u32 %v1678, %v1676
      %v1682 = vshll.u32 %v1617, 16
      %v1684 = vrot.slane %v1682, 1
      %v1685 = vsel %vm819, %v1680, %v1684
      %v1710 = vunpack.c.l.b16 %v1559
      %v1711 = vunpack.c.l.b16 %v1560
      %v1712 = vunpack.c.l.b16 %v1561
      %v1713 = vunpack.c.l.b16 %v1562
      %v1714 = vunpack.c.l.b16 %v1563
      %v1715 = vunpack.c.l.b16 %v1564
      %v1716 = vunpack.c.l.b16 %v1565
      %v1717 = vunpack.c.l.b16 %v1566
      %v1718 = vunpack.c.l.b16 %v1567
      %v1719 = vunpack.c.l.b16 %v1568
      %v1720 = vunpack.c.l.b16 %v1569
      %v1721 = vunpack.c.l.b16 %v1570
      %v1722 = vunpack.c.l.b16 %v1571
      %v1723 = vunpack.c.l.b16 %v1572
      %v1724 = vunpack.c.l.b16 %v1573
      %v1725 = vunpack.c.l.b16 %v1574
      %v1726 = vpack.c.b16 %v1711, %v1710
      %v1727 = vpack.c.b16 %v1713, %v1712
      %v1728 = vpack.c.b16 %v1715, %v1714
      %v1729 = vpack.c.b16 %v1717, %v1716
      %v1730 = vpack.c.b16 %v1719, %v1718
      %v1731 = vpack.c.b16 %v1721, %v1720
      %v1732 = vpack.c.b16 %v1723, %v1722
      %v1733 = vpack.c.b16 %v1725, %v1724
      %1742 = vmatprep.subr.bf16.mxu0 0
      %1743 = vmatpush1.bf16.msra.mxu0 %v1733
      %1744 = vmatprep.subr.bf16.mxu0 0
      %1745 = vmatpush1.bf16.msra.mxu0 %v1732
      %1746 = vmatprep.subr.bf16.mxu0 0
      %1747 = vmatpush1.bf16.msra.mxu0 %v1731
      %1748 = vmatprep.subr.bf16.mxu0 0
      %1749 = vmatpush1.bf16.msra.mxu0 %v1730
      %1750 = vmatprep.subr.bf16.mxu0 0
      %1751 = vmatpush1.bf16.msra.mxu0 %v1729
      %1752 = vmatprep.subr.bf16.mxu0 0
      %1753 = vmatpush1.bf16.msra.mxu0 %v1728
      %1754 = vmatprep.subr.bf16.mxu0 0
      %1755 = vmatpush1.bf16.msra.mxu0 %v1727
      %1756 = vmatprep.subr.bf16.mxu0 0
      %1757 = vmatpush1.bf16.msra.mxu0 %v1726
      %1758 = vmatprep.subr.bf16.mxu0 0
      %1759 = vmatpush2.bf16.msra.mxu0 0
      %1760 = vmatprep.subr.bf16.mxu0 0
      %1761 = vmatpush2.bf16.msra.mxu0 0
      %1762 = vmatprep.subr.bf16.mxu0 0
      %1763 = vmatpush2.bf16.msra.mxu0 0
      %1764 = vmatprep.subr.bf16.mxu0 0
      %1765 = vmatpush2.bf16.msra.mxu0 0
      %1766 = vmatprep.subr.bf16.mxu0 0
      %1767 = vmatpush2.bf16.msra.mxu0 0
      %1768 = vmatprep.subr.bf16.mxu0 0
      %1769 = vmatpush2.bf16.msra.mxu0 0
      %1770 = vmatprep.subr.bf16.mxu0 0
      %1771 = vmatpush2.bf16.msra.mxu0 0
      %1772 = vmatprep.subr.bf16.mxu0 0
      %1773 = vmatpush2.bf16.msra.mxu0 0
      %1774 = vmatprep.mubr.bf16.mxu0 0
      %1775 = vmatmul.mubr.bf16.gmra.mxu0 %v1629
      %v1776 = vpop.f32.mrf.mxu0
      %v1777 = vadd.f32 0.0, %v1776
      %v1778 = vpop.f32.mrf.mxu0
      %v1779 = vpop.f32.mrf.mxu0
      %v1780 = vadd.f32 0.0, %v1779
      %v1781 = vpop.f32.mrf.mxu0
      %1782 = vmatprep.mubr.bf16.mxu0 0
      %1783 = vmatmul.mubr.bf16.gmra.mxu0 %v1637
      %v1784 = vpop.f32.mrf.mxu0
      %v1785 = vadd.f32 0.0, %v1784
      %v1786 = vpop.f32.mrf.mxu0
      %v1787 = vpop.f32.mrf.mxu0
      %v1788 = vadd.f32 0.0, %v1787
      %v1789 = vpop.f32.mrf.mxu0
      %1790 = vmatprep.mubr.bf16.mxu0 0
      %1791 = vmatmul.mubr.bf16.gmra.mxu0 %v1645
      %v1792 = vpop.f32.mrf.mxu0
      %v1793 = vadd.f32 0.0, %v1792
      %v1794 = vpop.f32.mrf.mxu0
      %v1795 = vpop.f32.mrf.mxu0
      %v1796 = vadd.f32 0.0, %v1795
      %v1797 = vpop.f32.mrf.mxu0
      %1798 = vmatprep.mubr.bf16.mxu0 0
      %1799 = vmatmul.mubr.bf16.gmra.mxu0 %v1653
      %v1800 = vpop.f32.mrf.mxu0
      %v1801 = vadd.f32 0.0, %v1800
      %v1802 = vpop.f32.mrf.mxu0
      %v1803 = vpop.f32.mrf.mxu0
      %v1804 = vadd.f32 0.0, %v1803
      %v1805 = vpop.f32.mrf.mxu0
      %1806 = vmatprep.mubr.bf16.mxu0 0
      %1807 = vmatmul.mubr.bf16.gmra.mxu0 %v1661
      %v1808 = vpop.f32.mrf.mxu0
      %v1809 = vadd.f32 0.0, %v1808
      %v1810 = vpop.f32.mrf.mxu0
      %v1811 = vpop.f32.mrf.mxu0
      %v1812 = vadd.f32 0.0, %v1811
      %v1813 = vpop.f32.mrf.mxu0
      %1814 = vmatprep.mubr.bf16.mxu0 0
      %1815 = vmatmul.mubr.bf16.gmra.mxu0 %v1669
      %v1816 = vpop.f32.mrf.mxu0
      %v1817 = vadd.f32 0.0, %v1816
      %v1818 = vpop.f32.mrf.mxu0
      %v1819 = vpop.f32.mrf.mxu0
      %v1820 = vadd.f32 0.0, %v1819
      %v1821 = vpop.f32.mrf.mxu0
      %1822 = vmatprep.mubr.bf16.mxu0 0
      %1823 = vmatmul.mubr.bf16.gmra.mxu0 %v1677
      %v1824 = vpop.f32.mrf.mxu0
      %v1825 = vadd.f32 0.0, %v1824
      %v1826 = vpop.f32.mrf.mxu0
      %v1827 = vpop.f32.mrf.mxu0
      %v1828 = vadd.f32 0.0, %v1827
      %v1829 = vpop.f32.mrf.mxu0
      %1830 = vmatprep.mubr.bf16.mxu0 0
      %1831 = vmatmul.mubr.bf16.gmra.mxu0 %v1685
      %v1832 = vpop.f32.mrf.mxu0
      %v1833 = vadd.f32 0.0, %v1832
      %v1834 = vpop.f32.mrf.mxu0
      %v1835 = vpop.f32.mrf.mxu0
      %v1836 = vadd.f32 0.0, %v1835
      %v1837 = vpop.f32.mrf.mxu0
      %1838 = vdwg.mxu0
      %v1839 = vadd.f32 %v1525, %v1777
      %v1840 = vadd.f32 %v1526, %v1780
      %v1841 = vadd.f32 %v1527, %v1785
      %v1842 = vadd.f32 %v1528, %v1788
      %v1843 = vadd.f32 %v1529, %v1793
      %v1844 = vadd.f32 %v1530, %v1796
      %v1845 = vadd.f32 %v1531, %v1801
      %v1846 = vadd.f32 %v1532, %v1804
      %v1847 = vadd.f32 %v1533, %v1809
      %v1848 = vadd.f32 %v1534, %v1812
      %v1849 = vadd.f32 %v1535, %v1817
      %v1850 = vadd.f32 %v1536, %v1820
      %v1851 = vadd.f32 %v1537, %v1825
      %v1852 = vadd.f32 %v1538, %v1828
      %v1853 = vadd.f32 %v1539, %v1833
      %v1854 = vadd.f32 %v1540, %v1836
      %v1855 = vld [vmem:[%s273 + $0x20] sm:$0xf]
      %v1856 = vld [vmem:[%s273 + $0x30] sm:$0xf]
      %v1857 = vld [vmem:[%s273 + $0x40] sm:$0xf]
      %v1858 = vld [vmem:[%s273 + $0x50] sm:$0xf]
      %v1859 = vld [vmem:[%s273 + $0x60] sm:$0xf]
      %v1860 = vld [vmem:[%s273 + $0x70] sm:$0xf]
      %v1861 = vld [vmem:[%s273 + $0x80] sm:$0xf]
      %v1862 = vld [vmem:[%s273 + $0x90] sm:$0xf]
      %v1863 = vld [vmem:[%s273 + $0xa0] sm:$0xf]
      %v1864 = vld [vmem:[%s273 + $0xb0] sm:$0xf]
      %v1865 = vld [vmem:[%s273 + $0xc0] sm:$0xf]
      %v1866 = vld [vmem:[%s273 + $0xd0] sm:$0xf]
      %v1867 = vld [vmem:[%s273 + $0xe0] sm:$0xf]
      %v1868 = vld [vmem:[%s273 + $0xf0] sm:$0xf]
      %v1869 = vld [vmem:[%s273 + $0x100] sm:$0xf]
      %v1870 = vld [vmem:[%s273 + $0x110] sm:$0xf]
      %s1871 = scalar_lea.vmem %s1, 384
      %v1872 = vld [vmem:[%s1871] sm:$0xf]
      %v1873 = vld [vmem:[%s1871 + $0x4] sm:$0xf]
      %v1874 = vld [vmem:[%s1871 + $0x8] sm:$0xf]
      %v1875 = vld [vmem:[%s1871 + $0xc] sm:$0xf]
      %v1876 = vld [vmem:[%s1871 + $0x10] sm:$0xf]
      %v1877 = vld [vmem:[%s1871 + $0x14] sm:$0xf]
      %v1878 = vld [vmem:[%s1871 + $0x18] sm:$0xf]
      %v1879 = vld [vmem:[%s1871 + $0x1c] sm:$0xf]
      %v1880 = vld [vmem:[%s1871 + $0x20] sm:$0xf]
      %v1881 = vld [vmem:[%s1871 + $0x24] sm:$0xf]
      %v1882 = vld [vmem:[%s1871 + $0x28] sm:$0xf]
      %v1883 = vld [vmem:[%s1871 + $0x2c] sm:$0xf]
      %v1884 = vld [vmem:[%s1871 + $0x30] sm:$0xf]
      %v1885 = vld [vmem:[%s1871 + $0x34] sm:$0xf]
      %v1886 = vld [vmem:[%s1871 + $0x38] sm:$0xf]
      %v1887 = vld [vmem:[%s1871 + $0x3c] sm:$0xf]
      %v1904 = vunpack.c.l.b16 %v1855
      %v1905 = vunpack.c.l.b16 %v1856
      %v1906 = vunpack.c.l.b16 %v1857
      %v1907 = vunpack.c.l.b16 %v1858
      %v1908 = vunpack.c.l.b16 %v1859
      %v1909 = vunpack.c.l.b16 %v1860
      %v1910 = vunpack.c.l.b16 %v1861
      %v1911 = vunpack.c.l.b16 %v1862
      %v1912 = vunpack.c.l.b16 %v1863
      %v1913 = vunpack.c.l.b16 %v1864
      %v1914 = vunpack.c.l.b16 %v1865
      %v1915 = vunpack.c.l.b16 %v1866
      %v1916 = vunpack.c.l.b16 %v1867
      %v1917 = vunpack.c.l.b16 %v1868
      %v1918 = vunpack.c.l.b16 %v1869
      %v1919 = vunpack.c.l.b16 %v1870
      %v1920 = vpack.c.b16 %v1905, %v1904
      %v1921 = vpack.c.b16 %v1907, %v1906
      %v1922 = vpack.c.b16 %v1909, %v1908
      %v1923 = vpack.c.b16 %v1911, %v1910
      %v1924 = vpack.c.b16 %v1913, %v1912
      %v1925 = vpack.c.b16 %v1915, %v1914
      %v1926 = vpack.c.b16 %v1917, %v1916
      %v1927 = vpack.c.b16 %v1919, %v1918
      %v1952 = vunpack.c.l.b16 %v1872
      %v1953 = vunpack.c.l.b16 %v1873
      %v1954 = vunpack.c.l.b16 %v1874
      %v1955 = vunpack.c.l.b16 %v1875
      %v1956 = vunpack.c.l.b16 %v1876
      %v1957 = vunpack.c.l.b16 %v1877
      %v1958 = vunpack.c.l.b16 %v1878
      %v1959 = vunpack.c.l.b16 %v1879
      %v1960 = vunpack.c.l.b16 %v1880
      %v1961 = vunpack.c.l.b16 %v1881
      %v1962 = vunpack.c.l.b16 %v1882
      %v1963 = vunpack.c.l.b16 %v1883
      %v1964 = vunpack.c.l.b16 %v1884
      %v1965 = vunpack.c.l.b16 %v1885
      %v1966 = vunpack.c.l.b16 %v1886
      %v1967 = vunpack.c.l.b16 %v1887
      %v1968 = vpack.c.b16 %v1953, %v1952
      %v1969 = vpack.c.b16 %v1955, %v1954
      %v1970 = vpack.c.b16 %v1957, %v1956
      %v1971 = vpack.c.b16 %v1959, %v1958
      %v1972 = vpack.c.b16 %v1961, %v1960
      %v1973 = vpack.c.b16 %v1963, %v1962
      %v1974 = vpack.c.b16 %v1965, %v1964
      %v1975 = vpack.c.b16 %v1967, %v1966
      %1984 = vmatprep.subr.bf16.mxu0 0
      %1985 = vmatpush1.bf16.msra.mxu0 %v1975
      %1986 = vmatprep.subr.bf16.mxu0 0
      %1987 = vmatpush1.bf16.msra.mxu0 %v1974
      %1988 = vmatprep.subr.bf16.mxu0 0
      %1989 = vmatpush1.bf16.msra.mxu0 %v1973
      %1990 = vmatprep.subr.bf16.mxu0 0
      %1991 = vmatpush1.bf16.msra.mxu0 %v1972
      %1992 = vmatprep.subr.bf16.mxu0 0
      %1993 = vmatpush1.bf16.msra.mxu0 %v1971
      %1994 = vmatprep.subr.bf16.mxu0 0
      %1995 = vmatpush1.bf16.msra.mxu0 %v1970
      %1996 = vmatprep.subr.bf16.mxu0 0
      %1997 = vmatpush1.bf16.msra.mxu0 %v1969
      %1998 = vmatprep.subr.bf16.mxu0 0
      %1999 = vmatpush1.bf16.msra.mxu0 %v1968
      %2000 = vmatprep.subr.bf16.mxu0 0
      %2001 = vmatpush2.bf16.msra.mxu0 0
      %2002 = vmatprep.subr.bf16.mxu0 0
      %2003 = vmatpush2.bf16.msra.mxu0 0
      %2004 = vmatprep.subr.bf16.mxu0 0
      %2005 = vmatpush2.bf16.msra.mxu0 0
      %2006 = vmatprep.subr.bf16.mxu0 0
      %2007 = vmatpush2.bf16.msra.mxu0 0
      %2008 = vmatprep.subr.bf16.mxu0 0
      %2009 = vmatpush2.bf16.msra.mxu0 0
      %2010 = vmatprep.subr.bf16.mxu0 0
      %2011 = vmatpush2.bf16.msra.mxu0 0
      %2012 = vmatprep.subr.bf16.mxu0 0
      %2013 = vmatpush2.bf16.msra.mxu0 0
      %2014 = vmatprep.subr.bf16.mxu0 0
      %2015 = vmatpush2.bf16.msra.mxu0 0
      %2016 = vmatprep.mubr.bf16.mxu0 0
      %2017 = vmatmul.mubr.bf16.gmra.mxu0 %v1920
      %v2018 = vpop.f32.mrf.mxu0
      %v2019 = vadd.f32 0.0, %v2018
      %v2020 = vpop.f32.mrf.mxu0
      %v2021 = vpop.f32.mrf.mxu0
      %v2022 = vadd.f32 0.0, %v2021
      %v2023 = vpop.f32.mrf.mxu0
      %2024 = vmatprep.mubr.bf16.mxu0 0
      %2025 = vmatmul.mubr.bf16.gmra.mxu0 %v1921
      %v2026 = vpop.f32.mrf.mxu0
      %v2027 = vadd.f32 0.0, %v2026
      %v2028 = vpop.f32.mrf.mxu0
      %v2029 = vpop.f32.mrf.mxu0
      %v2030 = vadd.f32 0.0, %v2029
      %v2031 = vpop.f32.mrf.mxu0
      %2032 = vmatprep.mubr.bf16.mxu0 0
      %2033 = vmatmul.mubr.bf16.gmra.mxu0 %v1922
      %v2034 = vpop.f32.mrf.mxu0
      %v2035 = vadd.f32 0.0, %v2034
      %v2036 = vpop.f32.mrf.mxu0
      %v2037 = vpop.f32.mrf.mxu0
      %v2038 = vadd.f32 0.0, %v2037
      %v2039 = vpop.f32.mrf.mxu0
      %2040 = vmatprep.mubr.bf16.mxu0 0
      %2041 = vmatmul.mubr.bf16.gmra.mxu0 %v1923
      %v2042 = vpop.f32.mrf.mxu0
      %v2043 = vadd.f32 0.0, %v2042
      %v2044 = vpop.f32.mrf.mxu0
      %v2045 = vpop.f32.mrf.mxu0
      %v2046 = vadd.f32 0.0, %v2045
      %v2047 = vpop.f32.mrf.mxu0
      %2048 = vmatprep.mubr.bf16.mxu0 0
      %2049 = vmatmul.mubr.bf16.gmra.mxu0 %v1924
      %v2050 = vpop.f32.mrf.mxu0
      %v2051 = vadd.f32 0.0, %v2050
      %v2052 = vpop.f32.mrf.mxu0
      %v2053 = vpop.f32.mrf.mxu0
      %v2054 = vadd.f32 0.0, %v2053
      %v2055 = vpop.f32.mrf.mxu0
      %2056 = vmatprep.mubr.bf16.mxu0 0
      %2057 = vmatmul.mubr.bf16.gmra.mxu0 %v1925
      %v2058 = vpop.f32.mrf.mxu0
      %v2059 = vadd.f32 0.0, %v2058
      %v2060 = vpop.f32.mrf.mxu0
      %v2061 = vpop.f32.mrf.mxu0
      %v2062 = vadd.f32 0.0, %v2061
      %v2063 = vpop.f32.mrf.mxu0
      %2064 = vmatprep.mubr.bf16.mxu0 0
      %2065 = vmatmul.mubr.bf16.gmra.mxu0 %v1926
      %v2066 = vpop.f32.mrf.mxu0
      %v2067 = vadd.f32 0.0, %v2066
      %v2068 = vpop.f32.mrf.mxu0
      %v2069 = vpop.f32.mrf.mxu0
      %v2070 = vadd.f32 0.0, %v2069
      %v2071 = vpop.f32.mrf.mxu0
      %2072 = vmatprep.mubr.bf16.mxu0 0
      %2073 = vmatmul.mubr.bf16.gmra.mxu0 %v1927
      %v2074 = vpop.f32.mrf.mxu0
      %v2075 = vadd.f32 0.0, %v2074
      %v2076 = vpop.f32.mrf.mxu0
      %v2077 = vpop.f32.mrf.mxu0
      %v2078 = vadd.f32 0.0, %v2077
      %v2079 = vpop.f32.mrf.mxu0
      %2080 = vdwg.mxu0
      %v2081 = vadd.f32 %v1839, %v2019
      %v2082 = vadd.f32 %v1840, %v2022
      %v2083 = vadd.f32 %v1841, %v2027
      %v2084 = vadd.f32 %v1842, %v2030
      %v2085 = vadd.f32 %v1843, %v2035
      %v2086 = vadd.f32 %v1844, %v2038
      %v2087 = vadd.f32 %v1845, %v2043
      %v2088 = vadd.f32 %v1846, %v2046
      %v2089 = vadd.f32 %v1847, %v2051
      %v2090 = vadd.f32 %v1848, %v2054
      %v2091 = vadd.f32 %v1849, %v2059
      %v2092 = vadd.f32 %v1850, %v2062
      %v2093 = vadd.f32 %v1851, %v2067
      %v2094 = vadd.f32 %v1852, %v2070
      %v2095 = vadd.f32 %v1853, %v2075
      %v2096 = vadd.f32 %v1854, %v2078
      %v2097 = vld [vmem:[%s273 + $0x24] sm:$0xf]
      %v2098 = vld [vmem:[%s273 + $0x34] sm:$0xf]
      %v2099 = vld [vmem:[%s273 + $0x44] sm:$0xf]
      %v2100 = vld [vmem:[%s273 + $0x54] sm:$0xf]
      %v2101 = vld [vmem:[%s273 + $0x64] sm:$0xf]
      %v2102 = vld [vmem:[%s273 + $0x74] sm:$0xf]
      %v2103 = vld [vmem:[%s273 + $0x84] sm:$0xf]
      %v2104 = vld [vmem:[%s273 + $0x94] sm:$0xf]
      %v2105 = vld [vmem:[%s273 + $0xa4] sm:$0xf]
      %v2106 = vld [vmem:[%s273 + $0xb4] sm:$0xf]
      %v2107 = vld [vmem:[%s273 + $0xc4] sm:$0xf]
      %v2108 = vld [vmem:[%s273 + $0xd4] sm:$0xf]
      %v2109 = vld [vmem:[%s273 + $0xe4] sm:$0xf]
      %v2110 = vld [vmem:[%s273 + $0xf4] sm:$0xf]
      %v2111 = vld [vmem:[%s273 + $0x104] sm:$0xf]
      %v2112 = vld [vmem:[%s273 + $0x114] sm:$0xf]
      %s2113 = scalar_lea.vmem %s1, 448
      %v2114 = vld [vmem:[%s2113] sm:$0xf]
      %v2115 = vld [vmem:[%s2113 + $0x4] sm:$0xf]
      %v2116 = vld [vmem:[%s2113 + $0x8] sm:$0xf]
      %v2117 = vld [vmem:[%s2113 + $0xc] sm:$0xf]
      %v2118 = vld [vmem:[%s2113 + $0x10] sm:$0xf]
      %v2119 = vld [vmem:[%s2113 + $0x14] sm:$0xf]
      %v2120 = vld [vmem:[%s2113 + $0x18] sm:$0xf]
      %v2121 = vld [vmem:[%s2113 + $0x1c] sm:$0xf]
      %v2122 = vld [vmem:[%s2113 + $0x20] sm:$0xf]
      %v2123 = vld [vmem:[%s2113 + $0x24] sm:$0xf]
      %v2124 = vld [vmem:[%s2113 + $0x28] sm:$0xf]
      %v2125 = vld [vmem:[%s2113 + $0x2c] sm:$0xf]
      %v2126 = vld [vmem:[%s2113 + $0x30] sm:$0xf]
      %v2127 = vld [vmem:[%s2113 + $0x34] sm:$0xf]
      %v2128 = vld [vmem:[%s2113 + $0x38] sm:$0xf]
      %v2129 = vld [vmem:[%s2113 + $0x3c] sm:$0xf]
      %v2146 = vunpack.c.l.b16 %v2097
      %v2147 = vunpack.c.l.b16 %v2098
      %v2148 = vunpack.c.l.b16 %v2099
      %v2149 = vunpack.c.l.b16 %v2100
      %v2150 = vunpack.c.l.b16 %v2101
      %v2151 = vunpack.c.l.b16 %v2102
      %v2152 = vunpack.c.l.b16 %v2103
      %v2153 = vunpack.c.l.b16 %v2104
      %v2154 = vunpack.c.l.b16 %v2105
      %v2155 = vunpack.c.l.b16 %v2106
      %v2156 = vunpack.c.l.b16 %v2107
      %v2157 = vunpack.c.l.b16 %v2108
      %v2158 = vunpack.c.l.b16 %v2109
      %v2159 = vunpack.c.l.b16 %v2110
      %v2160 = vunpack.c.l.b16 %v2111
      %v2161 = vunpack.c.l.b16 %v2112
      %v2162 = vpack.c.b16 %v2147, %v2146
      %v2163 = vpack.c.b16 %v2149, %v2148
      %v2164 = vpack.c.b16 %v2151, %v2150
      %v2165 = vpack.c.b16 %v2153, %v2152
      %v2166 = vpack.c.b16 %v2155, %v2154
      %v2167 = vpack.c.b16 %v2157, %v2156
      %v2168 = vpack.c.b16 %v2159, %v2158
      %v2169 = vpack.c.b16 %v2161, %v2160
      %v2194 = vunpack.c.l.b16 %v2114
      %v2195 = vunpack.c.l.b16 %v2115
      %v2196 = vunpack.c.l.b16 %v2116
      %v2197 = vunpack.c.l.b16 %v2117
      %v2198 = vunpack.c.l.b16 %v2118
      %v2199 = vunpack.c.l.b16 %v2119
      %v2200 = vunpack.c.l.b16 %v2120
      %v2201 = vunpack.c.l.b16 %v2121
      %v2202 = vunpack.c.l.b16 %v2122
      %v2203 = vunpack.c.l.b16 %v2123
      %v2204 = vunpack.c.l.b16 %v2124
      %v2205 = vunpack.c.l.b16 %v2125
      %v2206 = vunpack.c.l.b16 %v2126
      %v2207 = vunpack.c.l.b16 %v2127
      %v2208 = vunpack.c.l.b16 %v2128
      %v2209 = vunpack.c.l.b16 %v2129
      %v2210 = vpack.c.b16 %v2195, %v2194
      %v2211 = vpack.c.b16 %v2197, %v2196
      %v2212 = vpack.c.b16 %v2199, %v2198
      %v2213 = vpack.c.b16 %v2201, %v2200
      %v2214 = vpack.c.b16 %v2203, %v2202
      %v2215 = vpack.c.b16 %v2205, %v2204
      %v2216 = vpack.c.b16 %v2207, %v2206
      %v2217 = vpack.c.b16 %v2209, %v2208
      %2226 = vmatprep.subr.bf16.mxu0 0
      %2227 = vmatpush1.bf16.msra.mxu0 %v2217
      %2228 = vmatprep.subr.bf16.mxu0 0
      %2229 = vmatpush1.bf16.msra.mxu0 %v2216
      %2230 = vmatprep.subr.bf16.mxu0 0
      %2231 = vmatpush1.bf16.msra.mxu0 %v2215
      %2232 = vmatprep.subr.bf16.mxu0 0
      %2233 = vmatpush1.bf16.msra.mxu0 %v2214
      %2234 = vmatprep.subr.bf16.mxu0 0
      %2235 = vmatpush1.bf16.msra.mxu0 %v2213
      %2236 = vmatprep.subr.bf16.mxu0 0
      %2237 = vmatpush1.bf16.msra.mxu0 %v2212
      %2238 = vmatprep.subr.bf16.mxu0 0
      %2239 = vmatpush1.bf16.msra.mxu0 %v2211
      %2240 = vmatprep.subr.bf16.mxu0 0
      %2241 = vmatpush1.bf16.msra.mxu0 %v2210
      %2242 = vmatprep.subr.bf16.mxu0 0
      %2243 = vmatpush2.bf16.msra.mxu0 0
      %2244 = vmatprep.subr.bf16.mxu0 0
      %2245 = vmatpush2.bf16.msra.mxu0 0
      %2246 = vmatprep.subr.bf16.mxu0 0
      %2247 = vmatpush2.bf16.msra.mxu0 0
      %2248 = vmatprep.subr.bf16.mxu0 0
      %2249 = vmatpush2.bf16.msra.mxu0 0
      %2250 = vmatprep.subr.bf16.mxu0 0
      %2251 = vmatpush2.bf16.msra.mxu0 0
      %2252 = vmatprep.subr.bf16.mxu0 0
      %2253 = vmatpush2.bf16.msra.mxu0 0
      %2254 = vmatprep.subr.bf16.mxu0 0
      %2255 = vmatpush2.bf16.msra.mxu0 0
      %2256 = vmatprep.subr.bf16.mxu0 0
      %2257 = vmatpush2.bf16.msra.mxu0 0
      %2258 = vmatprep.mubr.bf16.mxu0 0
      %2259 = vmatmul.mubr.bf16.gmra.mxu0 %v2162
      %v2260 = vpop.f32.mrf.mxu0
      %v2261 = vadd.f32 0.0, %v2260
      %v2262 = vpop.f32.mrf.mxu0
      %v2263 = vpop.f32.mrf.mxu0
      %v2264 = vadd.f32 0.0, %v2263
      %v2265 = vpop.f32.mrf.mxu0
      %2266 = vmatprep.mubr.bf16.mxu0 0
      %2267 = vmatmul.mubr.bf16.gmra.mxu0 %v2163
      %v2268 = vpop.f32.mrf.mxu0
      %v2269 = vadd.f32 0.0, %v2268
      %v2270 = vpop.f32.mrf.mxu0
      %v2271 = vpop.f32.mrf.mxu0
      %v2272 = vadd.f32 0.0, %v2271
      %v2273 = vpop.f32.mrf.mxu0
      %2274 = vmatprep.mubr.bf16.mxu0 0
      %2275 = vmatmul.mubr.bf16.gmra.mxu0 %v2164
      %v2276 = vpop.f32.mrf.mxu0
      %v2277 = vadd.f32 0.0, %v2276
      %v2278 = vpop.f32.mrf.mxu0
      %v2279 = vpop.f32.mrf.mxu0
      %v2280 = vadd.f32 0.0, %v2279
      %v2281 = vpop.f32.mrf.mxu0
      %2282 = vmatprep.mubr.bf16.mxu0 0
      %2283 = vmatmul.mubr.bf16.gmra.mxu0 %v2165
      %v2284 = vpop.f32.mrf.mxu0
      %v2285 = vadd.f32 0.0, %v2284
      %v2286 = vpop.f32.mrf.mxu0
      %v2287 = vpop.f32.mrf.mxu0
      %v2288 = vadd.f32 0.0, %v2287
      %v2289 = vpop.f32.mrf.mxu0
      %2290 = vmatprep.mubr.bf16.mxu0 0
      %2291 = vmatmul.mubr.bf16.gmra.mxu0 %v2166
      %v2292 = vpop.f32.mrf.mxu0
      %v2293 = vadd.f32 0.0, %v2292
      %v2294 = vpop.f32.mrf.mxu0
      %v2295 = vpop.f32.mrf.mxu0
      %v2296 = vadd.f32 0.0, %v2295
      %v2297 = vpop.f32.mrf.mxu0
      %2298 = vmatprep.mubr.bf16.mxu0 0
      %2299 = vmatmul.mubr.bf16.gmra.mxu0 %v2167
      %v2300 = vpop.f32.mrf.mxu0
      %v2301 = vadd.f32 0.0, %v2300
      %v2302 = vpop.f32.mrf.mxu0
      %v2303 = vpop.f32.mrf.mxu0
      %v2304 = vadd.f32 0.0, %v2303
      %v2305 = vpop.f32.mrf.mxu0
      %2306 = vmatprep.mubr.bf16.mxu0 0
      %2307 = vmatmul.mubr.bf16.gmra.mxu0 %v2168
      %v2308 = vpop.f32.mrf.mxu0
      %v2309 = vadd.f32 0.0, %v2308
      %v2310 = vpop.f32.mrf.mxu0
      %v2311 = vpop.f32.mrf.mxu0
      %v2312 = vadd.f32 0.0, %v2311
      %v2313 = vpop.f32.mrf.mxu0
      %2314 = vmatprep.mubr.bf16.mxu0 0
      %2315 = vmatmul.mubr.bf16.gmra.mxu0 %v2169
      %v2316 = vpop.f32.mrf.mxu0
      %v2317 = vadd.f32 0.0, %v2316
      %v2318 = vpop.f32.mrf.mxu0
      %v2319 = vpop.f32.mrf.mxu0
      %v2320 = vadd.f32 0.0, %v2319
      %v2321 = vpop.f32.mrf.mxu0
      %2322 = vdwg.mxu0
      %v2323 = vadd.f32 %v2081, %v2261
      %v2324 = vadd.f32 %v2082, %v2264
      %v2325 = vadd.f32 %v2083, %v2269
      %v2326 = vadd.f32 %v2084, %v2272
      %v2327 = vadd.f32 %v2085, %v2277
      %v2328 = vadd.f32 %v2086, %v2280
      %v2329 = vadd.f32 %v2087, %v2285
      %v2330 = vadd.f32 %v2088, %v2288
      %v2331 = vadd.f32 %v2089, %v2293
      %v2332 = vadd.f32 %v2090, %v2296
      %v2333 = vadd.f32 %v2091, %v2301
      %v2334 = vadd.f32 %v2092, %v2304
      %v2335 = vadd.f32 %v2093, %v2309
      %v2336 = vadd.f32 %v2094, %v2312
      %v2337 = vadd.f32 %v2095, %v2317
      %v2338 = vadd.f32 %v2096, %v2320
      %v2339 = vld [vmem:[%s273 + $0x20] sm:$0xf]
      %v2340 = vld [vmem:[%s273 + $0x30] sm:$0xf]
      %v2341 = vld [vmem:[%s273 + $0x40] sm:$0xf]
      %v2342 = vld [vmem:[%s273 + $0x50] sm:$0xf]
      %v2343 = vld [vmem:[%s273 + $0x60] sm:$0xf]
      %v2344 = vld [vmem:[%s273 + $0x70] sm:$0xf]
      %v2345 = vld [vmem:[%s273 + $0x80] sm:$0xf]
      %v2346 = vld [vmem:[%s273 + $0x90] sm:$0xf]
      %v2347 = vld [vmem:[%s273 + $0xa0] sm:$0xf]
      %v2348 = vld [vmem:[%s273 + $0xb0] sm:$0xf]
      %v2349 = vld [vmem:[%s273 + $0xc0] sm:$0xf]
      %v2350 = vld [vmem:[%s273 + $0xd0] sm:$0xf]
      %v2351 = vld [vmem:[%s273 + $0xe0] sm:$0xf]
      %v2352 = vld [vmem:[%s273 + $0xf0] sm:$0xf]
      %v2353 = vld [vmem:[%s273 + $0x100] sm:$0xf]
      %v2354 = vld [vmem:[%s273 + $0x110] sm:$0xf]
      %v2355 = vld [vmem:[%s273 + $0x120] sm:$0x1]
      %s2356 = scalar_lea.vmem %s1, 512
      %v2357 = vld [vmem:[%s2356] sm:$0xf]
      %v2358 = vld [vmem:[%s2356 + $0x4] sm:$0xf]
      %v2359 = vld [vmem:[%s2356 + $0x8] sm:$0xf]
      %v2360 = vld [vmem:[%s2356 + $0xc] sm:$0xf]
      %v2361 = vld [vmem:[%s2356 + $0x10] sm:$0xf]
      %v2362 = vld [vmem:[%s2356 + $0x14] sm:$0xf]
      %v2363 = vld [vmem:[%s2356 + $0x18] sm:$0xf]
      %v2364 = vld [vmem:[%s2356 + $0x1c] sm:$0xf]
      %v2365 = vld [vmem:[%s2356 + $0x20] sm:$0xf]
      %v2366 = vld [vmem:[%s2356 + $0x24] sm:$0xf]
      %v2367 = vld [vmem:[%s2356 + $0x28] sm:$0xf]
      %v2368 = vld [vmem:[%s2356 + $0x2c] sm:$0xf]
      %v2369 = vld [vmem:[%s2356 + $0x30] sm:$0xf]
      %v2370 = vld [vmem:[%s2356 + $0x34] sm:$0xf]
      %v2371 = vld [vmem:[%s2356 + $0x38] sm:$0xf]
      %v2372 = vld [vmem:[%s2356 + $0x3c] sm:$0xf]
      %v2390 = vunpack.c.l.b16 %v2339
      %v2391 = vunpack.c.l.b16 %v2340
      %v2392 = vunpack.c.l.b16 %v2341
      %v2393 = vunpack.c.l.b16 %v2342
      %v2394 = vunpack.c.l.b16 %v2343
      %v2395 = vunpack.c.l.b16 %v2344
      %v2396 = vunpack.c.l.b16 %v2345
      %v2397 = vunpack.c.l.b16 %v2346
      %v2398 = vunpack.c.l.b16 %v2347
      %v2399 = vunpack.c.l.b16 %v2348
      %v2400 = vunpack.c.l.b16 %v2349
      %v2401 = vunpack.c.l.b16 %v2350
      %v2402 = vunpack.c.l.b16 %v2351
      %v2403 = vunpack.c.l.b16 %v2352
      %v2404 = vunpack.c.l.b16 %v2353
      %v2405 = vunpack.c.l.b16 %v2354
      %v2406 = vunpack.c.l.b16 %v2355
      %v2407 = vpack.c.b16 %v2391, %v2390
      %v2408 = vpack.c.b16 %v2393, %v2392
      %v2409 = vpack.c.b16 %v2395, %v2394
      %v2410 = vpack.c.b16 %v2397, %v2396
      %v2411 = vpack.c.b16 %v2399, %v2398
      %v2412 = vpack.c.b16 %v2401, %v2400
      %v2413 = vpack.c.b16 %v2403, %v2402
      %v2414 = vpack.c.b16 %v2405, %v2404
      %v2415 = vpack.c.b16 %v2406, %v2406
      %v2417 = vshrl.u32 %v2407, 16
      %v2419 = vshll.u32 %v2407, 16
      %v2421 = vrot.slane %v2419, 1
      %v2422 = vor.u32 %v2417, %v2421
      %v2424 = vshll.u32 %v2408, 16
      %v2426 = vrot.slane %v2424, 1
      %v2427 = vsel %vm819, %v2422, %v2426
      %v2428 = vshrl.u32 %v2408, 16
      %v2430 = vor.u32 %v2428, %v2426
      %v2432 = vshll.u32 %v2409, 16
      %v2434 = vrot.slane %v2432, 1
      %v2435 = vsel %vm819, %v2430, %v2434
      %v2436 = vshrl.u32 %v2409, 16
      %v2438 = vor.u32 %v2436, %v2434
      %v2440 = vshll.u32 %v2410, 16
      %v2442 = vrot.slane %v2440, 1
      %v2443 = vsel %vm819, %v2438, %v2442
      %v2444 = vshrl.u32 %v2410, 16
      %v2446 = vor.u32 %v2444, %v2442
      %v2448 = vshll.u32 %v2411, 16
      %v2450 = vrot.slane %v2448, 1
      %v2451 = vsel %vm819, %v2446, %v2450
      %v2452 = vshrl.u32 %v2411, 16
      %v2454 = vor.u32 %v2452, %v2450
      %v2456 = vshll.u32 %v2412, 16
      %v2458 = vrot.slane %v2456, 1
      %v2459 = vsel %vm819, %v2454, %v2458
      %v2460 = vshrl.u32 %v2412, 16
      %v2462 = vor.u32 %v2460, %v2458
      %v2464 = vshll.u32 %v2413, 16
      %v2466 = vrot.slane %v2464, 1
      %v2467 = vsel %vm819, %v2462, %v2466
      %v2468 = vshrl.u32 %v2413, 16
      %v2470 = vor.u32 %v2468, %v2466
      %v2472 = vshll.u32 %v2414, 16
      %v2474 = vrot.slane %v2472, 1
      %v2475 = vsel %vm819, %v2470, %v2474
      %v2476 = vshrl.u32 %v2414, 16
      %v2478 = vor.u32 %v2476, %v2474
      %v2480 = vshll.u32 %v2415, 16
      %v2482 = vrot.slane %v2480, 1
      %v2483 = vsel %vm819, %v2478, %v2482
      %v2508 = vunpack.c.l.b16 %v2357
      %v2509 = vunpack.c.l.b16 %v2358
      %v2510 = vunpack.c.l.b16 %v2359
      %v2511 = vunpack.c.l.b16 %v2360
      %v2512 = vunpack.c.l.b16 %v2361
      %v2513 = vunpack.c.l.b16 %v2362
      %v2514 = vunpack.c.l.b16 %v2363
      %v2515 = vunpack.c.l.b16 %v2364
      %v2516 = vunpack.c.l.b16 %v2365
      %v2517 = vunpack.c.l.b16 %v2366
      %v2518 = vunpack.c.l.b16 %v2367
      %v2519 = vunpack.c.l.b16 %v2368
      %v2520 = vunpack.c.l.b16 %v2369
      %v2521 = vunpack.c.l.b16 %v2370
      %v2522 = vunpack.c.l.b16 %v2371
      %v2523 = vunpack.c.l.b16 %v2372
      %v2524 = vpack.c.b16 %v2509, %v2508
      %v2525 = vpack.c.b16 %v2511, %v2510
      %v2526 = vpack.c.b16 %v2513, %v2512
      %v2527 = vpack.c.b16 %v2515, %v2514
      %v2528 = vpack.c.b16 %v2517, %v2516
      %v2529 = vpack.c.b16 %v2519, %v2518
      %v2530 = vpack.c.b16 %v2521, %v2520
      %v2531 = vpack.c.b16 %v2523, %v2522
      %2540 = vmatprep.subr.bf16.mxu0 0
      %2541 = vmatpush1.bf16.msra.mxu0 %v2531
      %2542 = vmatprep.subr.bf16.mxu0 0
      %2543 = vmatpush1.bf16.msra.mxu0 %v2530
      %2544 = vmatprep.subr.bf16.mxu0 0
      %2545 = vmatpush1.bf16.msra.mxu0 %v2529
      %2546 = vmatprep.subr.bf16.mxu0 0
      %2547 = vmatpush1.bf16.msra.mxu0 %v2528
      %2548 = vmatprep.subr.bf16.mxu0 0
      %2549 = vmatpush1.bf16.msra.mxu0 %v2527
      %2550 = vmatprep.subr.bf16.mxu0 0
      %2551 = vmatpush1.bf16.msra.mxu0 %v2526
      %2552 = vmatprep.subr.bf16.mxu0 0
      %2553 = vmatpush1.bf16.msra.mxu0 %v2525
      %2554 = vmatprep.subr.bf16.mxu0 0
      %2555 = vmatpush1.bf16.msra.mxu0 %v2524
      %2556 = vmatprep.subr.bf16.mxu0 0
      %2557 = vmatpush2.bf16.msra.mxu0 0
      %2558 = vmatprep.subr.bf16.mxu0 0
      %2559 = vmatpush2.bf16.msra.mxu0 0
      %2560 = vmatprep.subr.bf16.mxu0 0
      %2561 = vmatpush2.bf16.msra.mxu0 0
      %2562 = vmatprep.subr.bf16.mxu0 0
      %2563 = vmatpush2.bf16.msra.mxu0 0
      %2564 = vmatprep.subr.bf16.mxu0 0
      %2565 = vmatpush2.bf16.msra.mxu0 0
      %2566 = vmatprep.subr.bf16.mxu0 0
      %2567 = vmatpush2.bf16.msra.mxu0 0
      %2568 = vmatprep.subr.bf16.mxu0 0
      %2569 = vmatpush2.bf16.msra.mxu0 0
      %2570 = vmatprep.subr.bf16.mxu0 0
      %2571 = vmatpush2.bf16.msra.mxu0 0
      %2572 = vmatprep.mubr.bf16.mxu0 0
      %2573 = vmatmul.mubr.bf16.gmra.mxu0 %v2427
      %v2574 = vpop.f32.mrf.mxu0
      %v2575 = vadd.f32 0.0, %v2574
      %v2576 = vpop.f32.mrf.mxu0
      %v2577 = vpop.f32.mrf.mxu0
      %v2578 = vadd.f32 0.0, %v2577
      %v2579 = vpop.f32.mrf.mxu0
      %2580 = vmatprep.mubr.bf16.mxu0 0
      %2581 = vmatmul.mubr.bf16.gmra.mxu0 %v2435
      %v2582 = vpop.f32.mrf.mxu0
      %v2583 = vadd.f32 0.0, %v2582
      %v2584 = vpop.f32.mrf.mxu0
      %v2585 = vpop.f32.mrf.mxu0
      %v2586 = vadd.f32 0.0, %v2585
      %v2587 = vpop.f32.mrf.mxu0
      %2588 = vmatprep.mubr.bf16.mxu0 0
      %2589 = vmatmul.mubr.bf16.gmra.mxu0 %v2443
      %v2590 = vpop.f32.mrf.mxu0
      %v2591 = vadd.f32 0.0, %v2590
      %v2592 = vpop.f32.mrf.mxu0
      %v2593 = vpop.f32.mrf.mxu0
      %v2594 = vadd.f32 0.0, %v2593
      %v2595 = vpop.f32.mrf.mxu0
      %2596 = vmatprep.mubr.bf16.mxu0 0
      %2597 = vmatmul.mubr.bf16.gmra.mxu0 %v2451
      %v2598 = vpop.f32.mrf.mxu0
      %v2599 = vadd.f32 0.0, %v2598
      %v2600 = vpop.f32.mrf.mxu0
      %v2601 = vpop.f32.mrf.mxu0
      %v2602 = vadd.f32 0.0, %v2601
      %v2603 = vpop.f32.mrf.mxu0
      %2604 = vmatprep.mubr.bf16.mxu0 0
      %2605 = vmatmul.mubr.bf16.gmra.mxu0 %v2459
      %v2606 = vpop.f32.mrf.mxu0
      %v2607 = vadd.f32 0.0, %v2606
      %v2608 = vpop.f32.mrf.mxu0
      %v2609 = vpop.f32.mrf.mxu0
      %v2610 = vadd.f32 0.0, %v2609
      %v2611 = vpop.f32.mrf.mxu0
      %2612 = vmatprep.mubr.bf16.mxu0 0
      %2613 = vmatmul.mubr.bf16.gmra.mxu0 %v2467
      %v2614 = vpop.f32.mrf.mxu0
      %v2615 = vadd.f32 0.0, %v2614
      %v2616 = vpop.f32.mrf.mxu0
      %v2617 = vpop.f32.mrf.mxu0
      %v2618 = vadd.f32 0.0, %v2617
      %v2619 = vpop.f32.mrf.mxu0
      %2620 = vmatprep.mubr.bf16.mxu0 0
      %2621 = vmatmul.mubr.bf16.gmra.mxu0 %v2475
      %v2622 = vpop.f32.mrf.mxu0
      %v2623 = vadd.f32 0.0, %v2622
      %v2624 = vpop.f32.mrf.mxu0
      %v2625 = vpop.f32.mrf.mxu0
      %v2626 = vadd.f32 0.0, %v2625
      %v2627 = vpop.f32.mrf.mxu0
      %2628 = vmatprep.mubr.bf16.mxu0 0
      %2629 = vmatmul.mubr.bf16.gmra.mxu0 %v2483
      %v2630 = vpop.f32.mrf.mxu0
      %v2631 = vadd.f32 0.0, %v2630
      %v2632 = vpop.f32.mrf.mxu0
      %v2633 = vpop.f32.mrf.mxu0
      %v2634 = vadd.f32 0.0, %v2633
      %v2635 = vpop.f32.mrf.mxu0
      %2636 = vdwg.mxu0
      %v2637 = vadd.f32 %v2323, %v2575
      %v2638 = vadd.f32 %v2324, %v2578
      %v2639 = vadd.f32 %v2325, %v2583
      %v2640 = vadd.f32 %v2326, %v2586
      %v2641 = vadd.f32 %v2327, %v2591
      %v2642 = vadd.f32 %v2328, %v2594
      %v2643 = vadd.f32 %v2329, %v2599
      %v2644 = vadd.f32 %v2330, %v2602
      %v2645 = vadd.f32 %v2331, %v2607
      %v2646 = vadd.f32 %v2332, %v2610
      %v2647 = vadd.f32 %v2333, %v2615
      %v2648 = vadd.f32 %v2334, %v2618
      %v2649 = vadd.f32 %v2335, %v2623
      %v2650 = vadd.f32 %v2336, %v2626
      %v2651 = vadd.f32 %v2337, %v2631
      %v2652 = vadd.f32 %v2338, %v2634
      %v2653 = vld [vmem:[%s2] sm:$0x1]
      %v2655 = vlaneseq
      %v2656 = vshrl.u32 %v2655, 7
      %v2657 = vsub.s32 0, %v2656
      %v2658 = vrot.slane %v2653, %v2657
      %v2660 = vadd.f32 %v2637, %v2658
      %v2661 = vadd.f32 %v2638, %v2658
      %v2662 = vadd.f32 %v2639, %v2658
      %v2663 = vadd.f32 %v2640, %v2658
      %v2664 = vadd.f32 %v2641, %v2658
      %v2665 = vadd.f32 %v2642, %v2658
      %v2666 = vadd.f32 %v2643, %v2658
      %v2667 = vadd.f32 %v2644, %v2658
      %v2668 = vadd.f32 %v2645, %v2658
      %v2669 = vadd.f32 %v2646, %v2658
      %v2670 = vadd.f32 %v2647, %v2658
      %v2671 = vadd.f32 %v2648, %v2658
      %v2672 = vadd.f32 %v2649, %v2658
      %v2673 = vadd.f32 %v2650, %v2658
      %v2674 = vadd.f32 %v2651, %v2658
      %v2675 = vadd.f32 %v2652, %v2658
      %v2676 = vmax.f32 %v2660, 0.0
      %v2677 = vmax.f32 %v2661, 0.0
      %v2678 = vmax.f32 %v2662, 0.0
      %v2679 = vmax.f32 %v2663, 0.0
      %v2680 = vmax.f32 %v2664, 0.0
      %v2681 = vmax.f32 %v2665, 0.0
      %v2682 = vmax.f32 %v2666, 0.0
      %v2683 = vmax.f32 %v2667, 0.0
      %v2684 = vmax.f32 %v2668, 0.0
      %v2685 = vmax.f32 %v2669, 0.0
      %v2686 = vmax.f32 %v2670, 0.0
      %v2687 = vmax.f32 %v2671, 0.0
      %v2688 = vmax.f32 %v2672, 0.0
      %v2689 = vmax.f32 %v2673, 0.0
      %v2690 = vmax.f32 %v2674, 0.0
      %v2691 = vmax.f32 %v2675, 0.0
      %v2692 = vsel %vm289, 1, 0
      %v2693 = vsel %vm290, 1, 0
      %vm2694 = vcmp.eq.s32.totalorder %v2692, 1
      %vm2695 = vcmp.eq.s32.totalorder %v2693, 1
      %v2696 = vsel %vm2694, %v2676, 0.0
      %v2697 = vsel %vm2695, %v2677, 0.0
      %v2698 = vsel %vm2694, %v2678, 0.0
      %v2699 = vsel %vm2695, %v2679, 0.0
      %v2700 = vsel %vm2694, %v2680, 0.0
      %v2701 = vsel %vm2695, %v2681, 0.0
      %v2702 = vsel %vm2694, %v2682, 0.0
      %v2703 = vsel %vm2695, %v2683, 0.0
      %v2704 = vsel %vm2694, %v2684, 0.0
      %v2705 = vsel %vm2695, %v2685, 0.0
      %v2706 = vsel %vm2694, %v2686, 0.0
      %v2707 = vsel %vm2695, %v2687, 0.0
      %v2708 = vsel %vm2694, %v2688, 0.0
      %v2709 = vsel %vm2695, %v2689, 0.0
      %v2710 = vsel %vm2694, %v2690, 0.0
      %v2711 = vsel %vm2695, %v2691, 0.0
      %v2712 = vpack.c.bf16 %v2697, %v2696
      %v2713 = vpack.c.bf16 %v2699, %v2698
      %v2714 = vpack.c.bf16 %v2701, %v2700
      %v2715 = vpack.c.bf16 %v2703, %v2702
      %v2716 = vpack.c.bf16 %v2705, %v2704
      %v2717 = vpack.c.bf16 %v2707, %v2706
      %v2718 = vpack.c.bf16 %v2709, %v2708
      %v2719 = vpack.c.bf16 %v2711, %v2710
      %v2728 = vunpack.c.l.b16 %v2712
      %v2729 = vunpack.c.h.b16 %v2712
      %v2730 = vunpack.c.l.b16 %v2713
      %v2731 = vunpack.c.h.b16 %v2713
      %v2732 = vunpack.c.l.b16 %v2714
      %v2733 = vunpack.c.h.b16 %v2714
      %v2734 = vunpack.c.l.b16 %v2715
      %v2735 = vunpack.c.h.b16 %v2715
      %v2736 = vunpack.c.l.b16 %v2716
      %v2737 = vunpack.c.h.b16 %v2716
      %v2738 = vunpack.c.l.b16 %v2717
      %v2739 = vunpack.c.h.b16 %v2717
      %v2740 = vunpack.c.l.b16 %v2718
      %v2741 = vunpack.c.h.b16 %v2718
      %v2742 = vunpack.c.l.b16 %v2719
      %v2743 = vunpack.c.h.b16 %v2719
      %v2744 = vpack.c.b16 %v2728, %v2728
      %v2745 = vpack.c.b16 %v2729, %v2729
      %v2746 = vpack.c.b16 %v2730, %v2730
      %v2747 = vpack.c.b16 %v2731, %v2731
      %v2748 = vpack.c.b16 %v2732, %v2732
      %v2749 = vpack.c.b16 %v2733, %v2733
      %v2750 = vpack.c.b16 %v2734, %v2734
      %v2751 = vpack.c.b16 %v2735, %v2735
      %v2752 = vpack.c.b16 %v2736, %v2736
      %v2753 = vpack.c.b16 %v2737, %v2737
      %v2754 = vpack.c.b16 %v2738, %v2738
      %v2755 = vpack.c.b16 %v2739, %v2739
      %v2756 = vpack.c.b16 %v2740, %v2740
      %v2757 = vpack.c.b16 %v2741, %v2741
      %v2758 = vpack.c.b16 %v2742, %v2742
      %v2759 = vpack.c.b16 %v2743, %v2743
      %vm2760 = vsmask.f32 256
      %vm2761 = vsmask.f32 4368
      %vm2762 = vmor %vm2760, %vm2761
      %v2764 = vshrl.u32 %v2744, 16
      %v2766 = vrot.slane %v2764, 7
      %v2767 = vshll.u32 %v2744, 16
      %v2769 = vor.u32 %v2766, %v2767
      %v2770 = vrot.slane %v2766, 4
      %v2772 = vshrl.u32 %v2745, 16
      %v2774 = vrot.slane %v2772, 7
      %v2775 = vshll.u32 %v2745, 16
      %v2777 = vor.u32 %v2774, %v2775
      %v2778 = vsel %vm2762, %v2770, %v2777
      %v2779 = vrot.slane %v2774, 4
      %v2781 = vshrl.u32 %v2746, 16
      %v2783 = vrot.slane %v2781, 7
      %v2784 = vshll.u32 %v2746, 16
      %v2786 = vor.u32 %v2783, %v2784
      %v2787 = vsel %vm2762, %v2779, %v2786
      %v2788 = vrot.slane %v2783, 4
      %v2790 = vshrl.u32 %v2747, 16
      %v2792 = vrot.slane %v2790, 7
      %v2793 = vshll.u32 %v2747, 16
      %v2795 = vor.u32 %v2792, %v2793
      %v2796 = vsel %vm2762, %v2788, %v2795
      %v2797 = vrot.slane %v2792, 4
      %v2799 = vshrl.u32 %v2748, 16
      %v2801 = vrot.slane %v2799, 7
      %v2802 = vshll.u32 %v2748, 16
      %v2804 = vor.u32 %v2801, %v2802
      %v2805 = vsel %vm2762, %v2797, %v2804
      %v2806 = vrot.slane %v2801, 4
      %v2808 = vshrl.u32 %v2749, 16
      %v2810 = vrot.slane %v2808, 7
      %v2811 = vshll.u32 %v2749, 16
      %v2813 = vor.u32 %v2810, %v2811
      %v2814 = vsel %vm2762, %v2806, %v2813
      %v2815 = vrot.slane %v2810, 4
      %v2817 = vshrl.u32 %v2750, 16
      %v2819 = vrot.slane %v2817, 7
      %v2820 = vshll.u32 %v2750, 16
      %v2822 = vor.u32 %v2819, %v2820
      %v2823 = vsel %vm2762, %v2815, %v2822
      %v2824 = vrot.slane %v2819, 4
      %v2826 = vshrl.u32 %v2751, 16
      %v2828 = vrot.slane %v2826, 7
      %v2829 = vshll.u32 %v2751, 16
      %v2831 = vor.u32 %v2828, %v2829
      %v2832 = vsel %vm2762, %v2824, %v2831
      %v2833 = vrot.slane %v2828, 4
      %v2835 = vshrl.u32 %v2752, 16
      %v2837 = vrot.slane %v2835, 7
      %v2838 = vshll.u32 %v2752, 16
      %v2840 = vor.u32 %v2837, %v2838
      %v2841 = vsel %vm2762, %v2833, %v2840
      %v2842 = vrot.slane %v2837, 4
      %v2844 = vshrl.u32 %v2753, 16
      %v2846 = vrot.slane %v2844, 7
      %v2847 = vshll.u32 %v2753, 16
      %v2849 = vor.u32 %v2846, %v2847
      %v2850 = vsel %vm2762, %v2842, %v2849
      %v2851 = vrot.slane %v2846, 4
      %v2853 = vshrl.u32 %v2754, 16
      %v2855 = vrot.slane %v2853, 7
      %v2856 = vshll.u32 %v2754, 16
      %v2858 = vor.u32 %v2855, %v2856
      %v2859 = vsel %vm2762, %v2851, %v2858
      %v2860 = vrot.slane %v2855, 4
      %v2862 = vshrl.u32 %v2755, 16
      %v2864 = vrot.slane %v2862, 7
      %v2865 = vshll.u32 %v2755, 16
      %v2867 = vor.u32 %v2864, %v2865
      %v2868 = vsel %vm2762, %v2860, %v2867
      %v2869 = vrot.slane %v2864, 4
      %v2871 = vshrl.u32 %v2756, 16
      %v2873 = vrot.slane %v2871, 7
      %v2874 = vshll.u32 %v2756, 16
      %v2876 = vor.u32 %v2873, %v2874
      %v2877 = vsel %vm2762, %v2869, %v2876
      %v2878 = vrot.slane %v2873, 4
      %v2880 = vshrl.u32 %v2757, 16
      %v2882 = vrot.slane %v2880, 7
      %v2883 = vshll.u32 %v2757, 16
      %v2885 = vor.u32 %v2882, %v2883
      %v2886 = vsel %vm2762, %v2878, %v2885
      %v2887 = vrot.slane %v2882, 4
      %v2889 = vshrl.u32 %v2758, 16
      %v2891 = vrot.slane %v2889, 7
      %v2892 = vshll.u32 %v2758, 16
      %v2894 = vor.u32 %v2891, %v2892
      %v2895 = vsel %vm2762, %v2887, %v2894
      %v2896 = vrot.slane %v2891, 4
      %v2898 = vshrl.u32 %v2759, 16
      %v2900 = vrot.slane %v2898, 7
      %v2901 = vshll.u32 %v2759, 16
      %v2903 = vor.u32 %v2900, %v2901
      %v2904 = vsel %vm2762, %v2896, %v2903
      %v2905 = vrot.slane %v2900, 4
      %vm2923 = vcmask 1043456
      %vm2924 = vsmask.f32 7938
      %vm2925 = vmand %vm2923, %vm2924
      %v2926 = vld [vmem:[#allocation2 + $0x8] sm:$0xf]
      %v2927 = vsel %vm2925, %v2769, %v2926
      %2928 = vst [vmem:[#allocation2 + $0x8] sm:$0xf] %v2927
      %2929 = vst [vmem:[#allocation2 + $0xc] sm:$0xf] %v2778
      %2930 = vst [vmem:[#allocation2 + $0x10] sm:$0xf] %v2787
      %2931 = vst [vmem:[#allocation2 + $0x14] sm:$0xf] %v2796
      %2932 = vst [vmem:[#allocation2 + $0x18] sm:$0xf] %v2805
      %2933 = vst [vmem:[#allocation2 + $0x1c] sm:$0xf] %v2814
      %2934 = vst [vmem:[#allocation2 + $0x20] sm:$0xf] %v2823
      %2935 = vst [vmem:[#allocation2 + $0x24] sm:$0xf] %v2832
      %2936 = vst [vmem:[#allocation2 + $0x28] sm:$0xf] %v2841
      %2937 = vst [vmem:[#allocation2 + $0x2c] sm:$0xf] %v2850
      %2938 = vst [vmem:[#allocation2 + $0x30] sm:$0xf] %v2859
      %2939 = vst [vmem:[#allocation2 + $0x34] sm:$0xf] %v2868
      %2940 = vst [vmem:[#allocation2 + $0x38] sm:$0xf] %v2877
      %2941 = vst [vmem:[#allocation2 + $0x3c] sm:$0xf] %v2886
      %2942 = vst [vmem:[#allocation2 + $0x40] sm:$0xf] %v2895
      %2943 = vst [vmem:[#allocation2 + $0x44] sm:$0xf] %v2904
      %vm2944 = vcmask 1040384
      %vm2945 = vmand %vm2944, %vm2760
      %v2946 = vld [vmem:[#allocation2 + $0x48] sm:$0x1]
      %v2947 = vsel %vm2945, %v2905, %v2946
      %2948 = vst [vmem:[#allocation2 + $0x48] sm:$0x1] %v2947
      %v2949 = vld [vmem:[#allocation2] sm:$0xf]
      %v2950 = vld [vmem:[#allocation2 + $0x4] sm:$0xf]
      %v2951 = vld [vmem:[#allocation2 + $0x8] sm:$0xf]
      %v2952 = vld [vmem:[#allocation2 + $0xc] sm:$0xf]
      %v2953 = vld [vmem:[#allocation2 + $0x10] sm:$0xf]
      %v2954 = vld [vmem:[#allocation2 + $0x14] sm:$0xf]
      %v2955 = vld [vmem:[#allocation2 + $0x18] sm:$0xf]
      %v2956 = vld [vmem:[#allocation2 + $0x1c] sm:$0xf]
      %v2957 = vld [vmem:[#allocation2 + $0x20] sm:$0xf]
      %v2958 = vld [vmem:[#allocation2 + $0x24] sm:$0xf]
      %v2959 = vld [vmem:[#allocation2 + $0x28] sm:$0xf]
      %v2960 = vld [vmem:[#allocation2 + $0x2c] sm:$0xf]
      %v2961 = vld [vmem:[#allocation2 + $0x30] sm:$0xf]
      %v2962 = vld [vmem:[#allocation2 + $0x34] sm:$0xf]
      %v2963 = vld [vmem:[#allocation2 + $0x38] sm:$0xf]
      %v2964 = vld [vmem:[#allocation2 + $0x3c] sm:$0xf]
      %v2965 = vld [vmem:[%s3] sm:$0xf]
      %v2966 = vld [vmem:[%s3 + $0x4] sm:$0xf]
      %v2967 = vld [vmem:[%s3 + $0x8] sm:$0xf]
      %v2968 = vld [vmem:[%s3 + $0xc] sm:$0xf]
      %v2969 = vld [vmem:[%s3 + $0x10] sm:$0xf]
      %v2970 = vld [vmem:[%s3 + $0x14] sm:$0xf]
      %v2971 = vld [vmem:[%s3 + $0x18] sm:$0xf]
      %v2972 = vld [vmem:[%s3 + $0x1c] sm:$0xf]
      %v2973 = vld [vmem:[%s3 + $0x20] sm:$0xf]
      %v2974 = vld [vmem:[%s3 + $0x24] sm:$0xf]
      %v2975 = vld [vmem:[%s3 + $0x28] sm:$0xf]
      %v2976 = vld [vmem:[%s3 + $0x2c] sm:$0xf]
      %v2977 = vld [vmem:[%s3 + $0x30] sm:$0xf]
      %v2978 = vld [vmem:[%s3 + $0x34] sm:$0xf]
      %v2979 = vld [vmem:[%s3 + $0x38] sm:$0xf]
      %v2980 = vld [vmem:[%s3 + $0x3c] sm:$0xf]
      %v2981 = vld [vmem:[#allocation2 + $0x40] sm:$0x1]
      %s2982 = scalar_lea.vmem %s3, 64
      %v2983 = vld [vmem:[%s2982] sm:$0xf]
      %v2984 = vld [vmem:[%s2982 + $0x4] sm:$0xf]
      %v2985 = vld [vmem:[%s2982 + $0x8] sm:$0xf]
      %v2986 = vld [vmem:[%s2982 + $0xc] sm:$0xf]
      %v2987 = vld [vmem:[%s2982 + $0x10] sm:$0xf]
      %v2988 = vld [vmem:[%s2982 + $0x14] sm:$0xf]
      %v2989 = vld [vmem:[%s2982 + $0x18] sm:$0xf]
      %v2990 = vld [vmem:[%s2982 + $0x1c] sm:$0xf]
      %v2991 = vld [vmem:[%s2982 + $0x20] sm:$0xf]
      %v2992 = vld [vmem:[%s2982 + $0x24] sm:$0xf]
      %v2993 = vld [vmem:[%s2982 + $0x28] sm:$0xf]
      %v2994 = vld [vmem:[%s2982 + $0x2c] sm:$0xf]
      %v2995 = vld [vmem:[%s2982 + $0x30] sm:$0xf]
      %v2996 = vld [vmem:[%s2982 + $0x34] sm:$0xf]
      %v2997 = vld [vmem:[%s2982 + $0x38] sm:$0xf]
      %v2998 = vld [vmem:[%s2982 + $0x3c] sm:$0xf]
      %v3016 = vunpack.c.l.b16 %v2949
      %v3017 = vunpack.c.l.b16 %v2950
      %v3018 = vunpack.c.l.b16 %v2951
      %v3019 = vunpack.c.l.b16 %v2952
      %v3020 = vunpack.c.l.b16 %v2953
      %v3021 = vunpack.c.l.b16 %v2954
      %v3022 = vunpack.c.l.b16 %v2955
      %v3023 = vunpack.c.l.b16 %v2956
      %v3024 = vunpack.c.l.b16 %v2957
      %v3025 = vunpack.c.l.b16 %v2958
      %v3026 = vunpack.c.l.b16 %v2959
      %v3027 = vunpack.c.l.b16 %v2960
      %v3028 = vunpack.c.l.b16 %v2961
      %v3029 = vunpack.c.l.b16 %v2962
      %v3030 = vunpack.c.l.b16 %v2963
      %v3031 = vunpack.c.l.b16 %v2964
      %v3032 = vunpack.c.l.b16 %v2981
      %v3033 = vpack.c.b16 %v3017, %v3016
      %v3034 = vpack.c.b16 %v3019, %v3018
      %v3035 = vpack.c.b16 %v3021, %v3020
      %v3036 = vpack.c.b16 %v3023, %v3022
      %v3037 = vpack.c.b16 %v3025, %v3024
      %v3038 = vpack.c.b16 %v3027, %v3026
      %v3039 = vpack.c.b16 %v3029, %v3028
      %v3040 = vpack.c.b16 %v3031, %v3030
      %v3041 = vpack.c.b16 %v3032, %v3032
      %v3043 = vshrl.u32 %v3033, 16
      %v3045 = vshll.u32 %v3033, 16
      %v3047 = vrot.slane %v3045, 1
      %v3048 = vor.u32 %v3043, %v3047
      %v3050 = vshll.u32 %v3034, 16
      %v3052 = vrot.slane %v3050, 1
      %v3053 = vsel %vm819, %v3048, %v3052
      %v3054 = vshrl.u32 %v3034, 16
      %v3056 = vor.u32 %v3054, %v3052
      %v3058 = vshll.u32 %v3035, 16
      %v3060 = vrot.slane %v3058, 1
      %v3061 = vsel %vm819, %v3056, %v3060
      %v3062 = vshrl.u32 %v3035, 16
      %v3064 = vor.u32 %v3062, %v3060
      %v3066 = vshll.u32 %v3036, 16
      %v3068 = vrot.slane %v3066, 1
      %v3069 = vsel %vm819, %v3064, %v3068
      %v3070 = vshrl.u32 %v3036, 16
      %v3072 = vor.u32 %v3070, %v3068
      %v3074 = vshll.u32 %v3037, 16
      %v3076 = vrot.slane %v3074, 1
      %v3077 = vsel %vm819, %v3072, %v3076
      %v3078 = vshrl.u32 %v3037, 16
      %v3080 = vor.u32 %v3078, %v3076
      %v3082 = vshll.u32 %v3038, 16
      %v3084 = vrot.slane %v3082, 1
      %v3085 = vsel %vm819, %v3080, %v3084
      %v3086 = vshrl.u32 %v3038, 16
      %v3088 = vor.u32 %v3086, %v3084
      %v3090 = vshll.u32 %v3039, 16
      %v3092 = vrot.slane %v3090, 1
      %v3093 = vsel %vm819, %v3088, %v3092
      %v3094 = vshrl.u32 %v3039, 16
      %v3096 = vor.u32 %v3094, %v3092
      %v3098 = vshll.u32 %v3040, 16
      %v3100 = vrot.slane %v3098, 1
      %v3101 = vsel %vm819, %v3096, %v3100
      %v3102 = vshrl.u32 %v3040, 16
      %v3104 = vor.u32 %v3102, %v3100
      %v3106 = vshll.u32 %v3041, 16
      %v3108 = vrot.slane %v3106, 1
      %v3109 = vsel %vm819, %v3104, %v3108
      %v3134 = vunpack.c.l.b16 %v2983
      %v3135 = vunpack.c.l.b16 %v2984
      %v3136 = vunpack.c.l.b16 %v2985
      %v3137 = vunpack.c.l.b16 %v2986
      %v3138 = vunpack.c.l.b16 %v2987
      %v3139 = vunpack.c.l.b16 %v2988
      %v3140 = vunpack.c.l.b16 %v2989
      %v3141 = vunpack.c.l.b16 %v2990
      %v3142 = vunpack.c.l.b16 %v2991
      %v3143 = vunpack.c.l.b16 %v2992
      %v3144 = vunpack.c.l.b16 %v2993
      %v3145 = vunpack.c.l.b16 %v2994
      %v3146 = vunpack.c.l.b16 %v2995
      %v3147 = vunpack.c.l.b16 %v2996
      %v3148 = vunpack.c.l.b16 %v2997
      %v3149 = vunpack.c.l.b16 %v2998
      %v3150 = vpack.c.b16 %v3135, %v3134
      %v3151 = vpack.c.b16 %v3137, %v3136
      %v3152 = vpack.c.b16 %v3139, %v3138
      %v3153 = vpack.c.b16 %v3141, %v3140
      %v3154 = vpack.c.b16 %v3143, %v3142
      %v3155 = vpack.c.b16 %v3145, %v3144
      %v3156 = vpack.c.b16 %v3147, %v3146
      %v3157 = vpack.c.b16 %v3149, %v3148
      %3166 = vmatprep.subr.bf16.mxu0 0
      %3167 = vmatpush1.bf16.msra.mxu0 %v3157
      %3168 = vmatprep.subr.bf16.mxu0 0
      %3169 = vmatpush1.bf16.msra.mxu0 %v3156
      %3170 = vmatprep.subr.bf16.mxu0 0
      %3171 = vmatpush1.bf16.msra.mxu0 %v3155
      %3172 = vmatprep.subr.bf16.mxu0 0
      %3173 = vmatpush1.bf16.msra.mxu0 %v3154
      %3174 = vmatprep.subr.bf16.mxu0 0
      %3175 = vmatpush1.bf16.msra.mxu0 %v3153
      %3176 = vmatprep.subr.bf16.mxu0 0
      %3177 = vmatpush1.bf16.msra.mxu0 %v3152
      %3178 = vmatprep.subr.bf16.mxu0 0
      %3179 = vmatpush1.bf16.msra.mxu0 %v3151
      %3180 = vmatprep.subr.bf16.mxu0 0
      %3181 = vmatpush1.bf16.msra.mxu0 %v3150
      %3182 = vmatprep.subr.bf16.mxu0 0
      %3183 = vmatpush2.bf16.msra.mxu0 0
      %3184 = vmatprep.subr.bf16.mxu0 0
      %3185 = vmatpush2.bf16.msra.mxu0 0
      %3186 = vmatprep.subr.bf16.mxu0 0
      %3187 = vmatpush2.bf16.msra.mxu0 0
      %3188 = vmatprep.subr.bf16.mxu0 0
      %3189 = vmatpush2.bf16.msra.mxu0 0
      %3190 = vmatprep.subr.bf16.mxu0 0
      %3191 = vmatpush2.bf16.msra.mxu0 0
      %3192 = vmatprep.subr.bf16.mxu0 0
      %3193 = vmatpush2.bf16.msra.mxu0 0
      %3194 = vmatprep.subr.bf16.mxu0 0
      %3195 = vmatpush2.bf16.msra.mxu0 0
      %3196 = vmatprep.subr.bf16.mxu0 0
      %3197 = vmatpush2.bf16.msra.mxu0 0
      %3198 = vmatprep.mubr.bf16.mxu0 0
      %3199 = vmatmul.mubr.bf16.gmra.mxu0 %v3053
      %v3200 = vpop.f32.mrf.mxu0
      %v3201 = vadd.f32 0.0, %v3200
      %v3202 = vpop.f32.mrf.mxu0
      %v3203 = vpop.f32.mrf.mxu0
      %v3204 = vpop.f32.mrf.mxu0
      %3205 = vmatprep.mubr.bf16.mxu0 0
      %3206 = vmatmul.mubr.bf16.gmra.mxu0 %v3061
      %v3207 = vpop.f32.mrf.mxu0
      %v3208 = vadd.f32 0.0, %v3207
      %v3209 = vpop.f32.mrf.mxu0
      %v3210 = vpop.f32.mrf.mxu0
      %v3211 = vpop.f32.mrf.mxu0
      %3212 = vmatprep.mubr.bf16.mxu0 0
      %3213 = vmatmul.mubr.bf16.gmra.mxu0 %v3069
      %v3214 = vpop.f32.mrf.mxu0
      %v3215 = vadd.f32 0.0, %v3214
      %v3216 = vpop.f32.mrf.mxu0
      %v3217 = vpop.f32.mrf.mxu0
      %v3218 = vpop.f32.mrf.mxu0
      %3219 = vmatprep.mubr.bf16.mxu0 0
      %3220 = vmatmul.mubr.bf16.gmra.mxu0 %v3077
      %v3221 = vpop.f32.mrf.mxu0
      %v3222 = vadd.f32 0.0, %v3221
      %v3223 = vpop.f32.mrf.mxu0
      %v3224 = vpop.f32.mrf.mxu0
      %v3225 = vpop.f32.mrf.mxu0
      %3226 = vmatprep.mubr.bf16.mxu0 0
      %3227 = vmatmul.mubr.bf16.gmra.mxu0 %v3085
      %v3228 = vpop.f32.mrf.mxu0
      %v3229 = vadd.f32 0.0, %v3228
      %v3230 = vpop.f32.mrf.mxu0
      %v3231 = vpop.f32.mrf.mxu0
      %v3232 = vpop.f32.mrf.mxu0
      %3233 = vmatprep.mubr.bf16.mxu0 0
      %3234 = vmatmul.mubr.bf16.gmra.mxu0 %v3093
      %v3235 = vpop.f32.mrf.mxu0
      %v3236 = vadd.f32 0.0, %v3235
      %v3237 = vpop.f32.mrf.mxu0
      %v3238 = vpop.f32.mrf.mxu0
      %v3239 = vpop.f32.mrf.mxu0
      %3240 = vmatprep.mubr.bf16.mxu0 0
      %3241 = vmatmul.mubr.bf16.gmra.mxu0 %v3101
      %v3242 = vpop.f32.mrf.mxu0
      %v3243 = vadd.f32 0.0, %v3242
      %v3244 = vpop.f32.mrf.mxu0
      %v3245 = vpop.f32.mrf.mxu0
      %v3246 = vpop.f32.mrf.mxu0
      %3247 = vmatprep.mubr.bf16.mxu0 0
      %3248 = vmatmul.mubr.bf16.gmra.mxu0 %v3109
      %v3249 = vpop.f32.mrf.mxu0
      %v3250 = vadd.f32 0.0, %v3249
      %v3251 = vpop.f32.mrf.mxu0
      %v3252 = vpop.f32.mrf.mxu0
      %v3253 = vpop.f32.mrf.mxu0
      %3254 = vdwg.mxu0
      %v3279 = vunpack.c.l.b16 %v2965
      %v3280 = vunpack.c.l.b16 %v2966
      %v3281 = vunpack.c.l.b16 %v2967
      %v3282 = vunpack.c.l.b16 %v2968
      %v3283 = vunpack.c.l.b16 %v2969
      %v3284 = vunpack.c.l.b16 %v2970
      %v3285 = vunpack.c.l.b16 %v2971
      %v3286 = vunpack.c.l.b16 %v2972
      %v3287 = vunpack.c.l.b16 %v2973
      %v3288 = vunpack.c.l.b16 %v2974
      %v3289 = vunpack.c.l.b16 %v2975
      %v3290 = vunpack.c.l.b16 %v2976
      %v3291 = vunpack.c.l.b16 %v2977
      %v3292 = vunpack.c.l.b16 %v2978
      %v3293 = vunpack.c.l.b16 %v2979
      %v3294 = vunpack.c.l.b16 %v2980
      %v3295 = vpack.c.b16 %v3280, %v3279
      %v3296 = vpack.c.b16 %v3282, %v3281
      %v3297 = vpack.c.b16 %v3284, %v3283
      %v3298 = vpack.c.b16 %v3286, %v3285
      %v3299 = vpack.c.b16 %v3288, %v3287
      %v3300 = vpack.c.b16 %v3290, %v3289
      %v3301 = vpack.c.b16 %v3292, %v3291
      %v3302 = vpack.c.b16 %v3294, %v3293
      %3311 = vmatprep.subr.bf16.mxu0 0
      %3312 = vmatpush1.bf16.msra.mxu0 %v3302
      %3313 = vmatprep.subr.bf16.mxu0 0
      %3314 = vmatpush1.bf16.msra.mxu0 %v3301
      %3315 = vmatprep.subr.bf16.mxu0 0
      %3316 = vmatpush1.bf16.msra.mxu0 %v3300
      %3317 = vmatprep.subr.bf16.mxu0 0
      %3318 = vmatpush1.bf16.msra.mxu0 %v3299
      %3319 = vmatprep.subr.bf16.mxu0 0
      %3320 = vmatpush1.bf16.msra.mxu0 %v3298
      %3321 = vmatprep.subr.bf16.mxu0 0
      %3322 = vmatpush1.bf16.msra.mxu0 %v3297
      %3323 = vmatprep.subr.bf16.mxu0 0
      %3324 = vmatpush1.bf16.msra.mxu0 %v3296
      %3325 = vmatprep.subr.bf16.mxu0 0
      %3326 = vmatpush1.bf16.msra.mxu0 %v3295
      %3327 = vmatprep.subr.bf16.mxu0 0
      %3328 = vmatpush2.bf16.msra.mxu0 0
      %3329 = vmatprep.subr.bf16.mxu0 0
      %3330 = vmatpush2.bf16.msra.mxu0 0
      %3331 = vmatprep.subr.bf16.mxu0 0
      %3332 = vmatpush2.bf16.msra.mxu0 0
      %3333 = vmatprep.subr.bf16.mxu0 0
      %3334 = vmatpush2.bf16.msra.mxu0 0
      %3335 = vmatprep.subr.bf16.mxu0 0
      %3336 = vmatpush2.bf16.msra.mxu0 0
      %3337 = vmatprep.subr.bf16.mxu0 0
      %3338 = vmatpush2.bf16.msra.mxu0 0
      %3339 = vmatprep.subr.bf16.mxu0 0
      %3340 = vmatpush2.bf16.msra.mxu0 0
      %3341 = vmatprep.subr.bf16.mxu0 0
      %3342 = vmatpush2.bf16.msra.mxu0 0
      %3343 = vmatprep.mubr.bf16.mxu0 0
      %3344 = vmatmul.mubr.bf16.gmra.mxu0 %v3033
      %v3345 = vpop.f32.mrf.mxu0
      %v3346 = vadd.f32 %v3201, %v3345
      %v3347 = vpop.f32.mrf.mxu0
      %v3348 = vpop.f32.mrf.mxu0
      %v3349 = vpop.f32.mrf.mxu0
      %3350 = vmatprep.mubr.bf16.mxu0 0
      %3351 = vmatmul.mubr.bf16.gmra.mxu0 %v3034
      %v3352 = vpop.f32.mrf.mxu0
      %v3353 = vadd.f32 %v3208, %v3352
      %v3354 = vpop.f32.mrf.mxu0
      %v3355 = vpop.f32.mrf.mxu0
      %v3356 = vpop.f32.mrf.mxu0
      %3357 = vmatprep.mubr.bf16.mxu0 0
      %3358 = vmatmul.mubr.bf16.gmra.mxu0 %v3035
      %v3359 = vpop.f32.mrf.mxu0
      %v3360 = vadd.f32 %v3215, %v3359
      %v3361 = vpop.f32.mrf.mxu0
      %v3362 = vpop.f32.mrf.mxu0
      %v3363 = vpop.f32.mrf.mxu0
      %3364 = vmatprep.mubr.bf16.mxu0 0
      %3365 = vmatmul.mubr.bf16.gmra.mxu0 %v3036
      %v3366 = vpop.f32.mrf.mxu0
      %v3367 = vadd.f32 %v3222, %v3366
      %v3368 = vpop.f32.mrf.mxu0
      %v3369 = vpop.f32.mrf.mxu0
      %v3370 = vpop.f32.mrf.mxu0
      %3371 = vmatprep.mubr.bf16.mxu0 0
      %3372 = vmatmul.mubr.bf16.gmra.mxu0 %v3037
      %v3373 = vpop.f32.mrf.mxu0
      %v3374 = vadd.f32 %v3229, %v3373
      %v3375 = vpop.f32.mrf.mxu0
      %v3376 = vpop.f32.mrf.mxu0
      %v3377 = vpop.f32.mrf.mxu0
      %3378 = vmatprep.mubr.bf16.mxu0 0
      %3379 = vmatmul.mubr.bf16.gmra.mxu0 %v3038
      %v3380 = vpop.f32.mrf.mxu0
      %v3381 = vadd.f32 %v3236, %v3380
      %v3382 = vpop.f32.mrf.mxu0
      %v3383 = vpop.f32.mrf.mxu0
      %v3384 = vpop.f32.mrf.mxu0
      %3385 = vmatprep.mubr.bf16.mxu0 0
      %3386 = vmatmul.mubr.bf16.gmra.mxu0 %v3039
      %v3387 = vpop.f32.mrf.mxu0
      %v3388 = vadd.f32 %v3243, %v3387
      %v3389 = vpop.f32.mrf.mxu0
      %v3390 = vpop.f32.mrf.mxu0
      %v3391 = vpop.f32.mrf.mxu0
      %3392 = vmatprep.mubr.bf16.mxu0 0
      %3393 = vmatmul.mubr.bf16.gmra.mxu0 %v3040
      %v3394 = vpop.f32.mrf.mxu0
      %v3395 = vadd.f32 %v3250, %v3394
      %v3396 = vpop.f32.mrf.mxu0
      %v3397 = vpop.f32.mrf.mxu0
      %v3398 = vpop.f32.mrf.mxu0
      %3399 = vdwg.mxu0
      %v3400 = vld [vmem:[#allocation2] sm:$0xe]
      %s3401 = scalar_lea.vmem %s3, 128
      %v3402 = vld [vmem:[%s3401] sm:$0xf]
      %v3403 = vld [vmem:[%s3401 + $0x4] sm:$0xf]
      %v3404 = vld [vmem:[%s3401 + $0x8] sm:$0xf]
      %v3405 = vld [vmem:[%s3401 + $0xc] sm:$0xf]
      %v3406 = vld [vmem:[%s3401 + $0x10] sm:$0xf]
      %v3407 = vld [vmem:[%s3401 + $0x14] sm:$0xf]
      %v3408 = vld [vmem:[%s3401 + $0x18] sm:$0xf]
      %v3409 = vld [vmem:[%s3401 + $0x1c] sm:$0xf]
      %v3410 = vld [vmem:[%s3401 + $0x20] sm:$0xf]
      %v3411 = vld [vmem:[%s3401 + $0x24] sm:$0xf]
      %v3412 = vld [vmem:[%s3401 + $0x28] sm:$0xf]
      %v3413 = vld [vmem:[%s3401 + $0x2c] sm:$0xf]
      %v3414 = vld [vmem:[%s3401 + $0x30] sm:$0xf]
      %v3415 = vld [vmem:[%s3401 + $0x34] sm:$0xf]
      %v3416 = vld [vmem:[%s3401 + $0x38] sm:$0xf]
      %v3417 = vld [vmem:[%s3401 + $0x3c] sm:$0xf]
      %v3419 = vunpack.c.l.b16 %v3400
      %v3420 = vpack.c.b16 %v3017, %v3419
      %vm3421 = vcmask 1046528
      %v3422 = vrot.slane %v3420, 1
      %v3423 = vrot.slane %v3034, 1
      %v3424 = vsel %vm3421, %v3422, %v3423
      %v3425 = vrot.slane %v3035, 1
      %v3426 = vsel %vm3421, %v3423, %v3425
      %v3427 = vrot.slane %v3036, 1
      %v3428 = vsel %vm3421, %v3425, %v3427
      %v3429 = vrot.slane %v3037, 1
      %v3430 = vsel %vm3421, %v3427, %v3429
      %v3431 = vrot.slane %v3038, 1
      %v3432 = vsel %vm3421, %v3429, %v3431
      %v3433 = vrot.slane %v3039, 1
      %v3434 = vsel %vm3421, %v3431, %v3433
      %v3435 = vrot.slane %v3040, 1
      %v3436 = vsel %vm3421, %v3433, %v3435
      %v3437 = vrot.slane %v3041, 1
      %v3438 = vsel %vm3421, %v3435, %v3437
      %v3463 = vunpack.c.l.b16 %v3402
      %v3464 = vunpack.c.l.b16 %v3403
      %v3465 = vunpack.c.l.b16 %v3404
      %v3466 = vunpack.c.l.b16 %v3405
      %v3467 = vunpack.c.l.b16 %v3406
      %v3468 = vunpack.c.l.b16 %v3407
      %v3469 = vunpack.c.l.b16 %v3408
      %v3470 = vunpack.c.l.b16 %v3409
      %v3471 = vunpack.c.l.b16 %v3410
      %v3472 = vunpack.c.l.b16 %v3411
      %v3473 = vunpack.c.l.b16 %v3412
      %v3474 = vunpack.c.l.b16 %v3413
      %v3475 = vunpack.c.l.b16 %v3414
      %v3476 = vunpack.c.l.b16 %v3415
      %v3477 = vunpack.c.l.b16 %v3416
      %v3478 = vunpack.c.l.b16 %v3417
      %v3479 = vpack.c.b16 %v3464, %v3463
      %v3480 = vpack.c.b16 %v3466, %v3465
      %v3481 = vpack.c.b16 %v3468, %v3467
      %v3482 = vpack.c.b16 %v3470, %v3469
      %v3483 = vpack.c.b16 %v3472, %v3471
      %v3484 = vpack.c.b16 %v3474, %v3473
      %v3485 = vpack.c.b16 %v3476, %v3475
      %v3486 = vpack.c.b16 %v3478, %v3477
      %3495 = vmatprep.subr.bf16.mxu0 0
      %3496 = vmatpush1.bf16.msra.mxu0 %v3486
      %3497 = vmatprep.subr.bf16.mxu0 0
      %3498 = vmatpush1.bf16.msra.mxu0 %v3485
      %3499 = vmatprep.subr.bf16.mxu0 0
      %3500 = vmatpush1.bf16.msra.mxu0 %v3484
      %3501 = vmatprep.subr.bf16.mxu0 0
      %3502 = vmatpush1.bf16.msra.mxu0 %v3483
      %3503 = vmatprep.subr.bf16.mxu0 0
      %3504 = vmatpush1.bf16.msra.mxu0 %v3482
      %3505 = vmatprep.subr.bf16.mxu0 0
      %3506 = vmatpush1.bf16.msra.mxu0 %v3481
      %3507 = vmatprep.subr.bf16.mxu0 0
      %3508 = vmatpush1.bf16.msra.mxu0 %v3480
      %3509 = vmatprep.subr.bf16.mxu0 0
      %3510 = vmatpush1.bf16.msra.mxu0 %v3479
      %3511 = vmatprep.subr.bf16.mxu0 0
      %3512 = vmatpush2.bf16.msra.mxu0 0
      %3513 = vmatprep.subr.bf16.mxu0 0
      %3514 = vmatpush2.bf16.msra.mxu0 0
      %3515 = vmatprep.subr.bf16.mxu0 0
      %3516 = vmatpush2.bf16.msra.mxu0 0
      %3517 = vmatprep.subr.bf16.mxu0 0
      %3518 = vmatpush2.bf16.msra.mxu0 0
      %3519 = vmatprep.subr.bf16.mxu0 0
      %3520 = vmatpush2.bf16.msra.mxu0 0
      %3521 = vmatprep.subr.bf16.mxu0 0
      %3522 = vmatpush2.bf16.msra.mxu0 0
      %3523 = vmatprep.subr.bf16.mxu0 0
      %3524 = vmatpush2.bf16.msra.mxu0 0
      %3525 = vmatprep.subr.bf16.mxu0 0
      %3526 = vmatpush2.bf16.msra.mxu0 0
      %3527 = vmatprep.mubr.bf16.mxu0 0
      %3528 = vmatmul.mubr.bf16.gmra.mxu0 %v3424
      %v3529 = vpop.f32.mrf.mxu0
      %v3530 = vadd.f32 0.0, %v3529
      %v3531 = vpop.f32.mrf.mxu0
      %v3532 = vpop.f32.mrf.mxu0
      %v3533 = vpop.f32.mrf.mxu0
      %3534 = vmatprep.mubr.bf16.mxu0 0
      %3535 = vmatmul.mubr.bf16.gmra.mxu0 %v3426
      %v3536 = vpop.f32.mrf.mxu0
      %v3537 = vadd.f32 0.0, %v3536
      %v3538 = vpop.f32.mrf.mxu0
      %v3539 = vpop.f32.mrf.mxu0
      %v3540 = vpop.f32.mrf.mxu0
      %3541 = vmatprep.mubr.bf16.mxu0 0
      %3542 = vmatmul.mubr.bf16.gmra.mxu0 %v3428
      %v3543 = vpop.f32.mrf.mxu0
      %v3544 = vadd.f32 0.0, %v3543
      %v3545 = vpop.f32.mrf.mxu0
      %v3546 = vpop.f32.mrf.mxu0
      %v3547 = vpop.f32.mrf.mxu0
      %3548 = vmatprep.mubr.bf16.mxu0 0
      %3549 = vmatmul.mubr.bf16.gmra.mxu0 %v3430
      %v3550 = vpop.f32.mrf.mxu0
      %v3551 = vadd.f32 0.0, %v3550
      %v3552 = vpop.f32.mrf.mxu0
      %v3553 = vpop.f32.mrf.mxu0
      %v3554 = vpop.f32.mrf.mxu0
      %3555 = vmatprep.mubr.bf16.mxu0 0
      %3556 = vmatmul.mubr.bf16.gmra.mxu0 %v3432
      %v3557 = vpop.f32.mrf.mxu0
      %v3558 = vadd.f32 0.0, %v3557
      %v3559 = vpop.f32.mrf.mxu0
      %v3560 = vpop.f32.mrf.mxu0
      %v3561 = vpop.f32.mrf.mxu0
      %3562 = vmatprep.mubr.bf16.mxu0 0
      %3563 = vmatmul.mubr.bf16.gmra.mxu0 %v3434
      %v3564 = vpop.f32.mrf.mxu0
      %v3565 = vadd.f32 0.0, %v3564
      %v3566 = vpop.f32.mrf.mxu0
      %v3567 = vpop.f32.mrf.mxu0
      %v3568 = vpop.f32.mrf.mxu0
      %3569 = vmatprep.mubr.bf16.mxu0 0
      %3570 = vmatmul.mubr.bf16.gmra.mxu0 %v3436
      %v3571 = vpop.f32.mrf.mxu0
      %v3572 = vadd.f32 0.0, %v3571
      %v3573 = vpop.f32.mrf.mxu0
      %v3574 = vpop.f32.mrf.mxu0
      %v3575 = vpop.f32.mrf.mxu0
      %3576 = vmatprep.mubr.bf16.mxu0 0
      %3577 = vmatmul.mubr.bf16.gmra.mxu0 %v3438
      %v3578 = vpop.f32.mrf.mxu0
      %v3579 = vadd.f32 0.0, %v3578
      %v3580 = vpop.f32.mrf.mxu0
      %v3581 = vpop.f32.mrf.mxu0
      %v3582 = vpop.f32.mrf.mxu0
      %3583 = vdwg.mxu0
      %v3584 = vadd.f32 %v3346, %v3530
      %v3585 = vadd.f32 %v3353, %v3537
      %v3586 = vadd.f32 %v3360, %v3544
      %v3587 = vadd.f32 %v3367, %v3551
      %v3588 = vadd.f32 %v3374, %v3558
      %v3589 = vadd.f32 %v3381, %v3565
      %v3590 = vadd.f32 %v3388, %v3572
      %v3591 = vadd.f32 %v3395, %v3579
      %v3592 = vld [vmem:[#allocation2 + $0x8] sm:$0xf]
      %v3593 = vld [vmem:[#allocation2 + $0xc] sm:$0xf]
      %v3594 = vld [vmem:[#allocation2 + $0x10] sm:$0xf]
      %v3595 = vld [vmem:[#allocation2 + $0x14] sm:$0xf]
      %v3596 = vld [vmem:[#allocation2 + $0x18] sm:$0xf]
      %v3597 = vld [vmem:[#allocation2 + $0x1c] sm:$0xf]
      %v3598 = vld [vmem:[#allocation2 + $0x20] sm:$0xf]
      %v3599 = vld [vmem:[#allocation2 + $0x24] sm:$0xf]
      %v3600 = vld [vmem:[#allocation2 + $0x28] sm:$0xf]
      %v3601 = vld [vmem:[#allocation2 + $0x2c] sm:$0xf]
      %v3602 = vld [vmem:[#allocation2 + $0x30] sm:$0xf]
      %v3603 = vld [vmem:[#allocation2 + $0x34] sm:$0xf]
      %v3604 = vld [vmem:[#allocation2 + $0x38] sm:$0xf]
      %v3605 = vld [vmem:[#allocation2 + $0x3c] sm:$0xf]
      %v3606 = vld [vmem:[#allocation2 + $0x40] sm:$0xf]
      %v3607 = vld [vmem:[#allocation2 + $0x44] sm:$0xf]
      %s3608 = scalar_lea.vmem %s3, 192
      %v3609 = vld [vmem:[%s3608] sm:$0xf]
      %v3610 = vld [vmem:[%s3608 + $0x4] sm:$0xf]
      %v3611 = vld [vmem:[%s3608 + $0x8] sm:$0xf]
      %v3612 = vld [vmem:[%s3608 + $0xc] sm:$0xf]
      %v3613 = vld [vmem:[%s3608 + $0x10] sm:$0xf]
      %v3614 = vld [vmem:[%s3608 + $0x14] sm:$0xf]
      %v3615 = vld [vmem:[%s3608 + $0x18] sm:$0xf]
      %v3616 = vld [vmem:[%s3608 + $0x1c] sm:$0xf]
      %v3617 = vld [vmem:[%s3608 + $0x20] sm:$0xf]
      %v3618 = vld [vmem:[%s3608 + $0x24] sm:$0xf]
      %v3619 = vld [vmem:[%s3608 + $0x28] sm:$0xf]
      %v3620 = vld [vmem:[%s3608 + $0x2c] sm:$0xf]
      %v3621 = vld [vmem:[%s3608 + $0x30] sm:$0xf]
      %v3622 = vld [vmem:[%s3608 + $0x34] sm:$0xf]
      %v3623 = vld [vmem:[%s3608 + $0x38] sm:$0xf]
      %v3624 = vld [vmem:[%s3608 + $0x3c] sm:$0xf]
      %v3641 = vunpack.c.l.b16 %v3592
      %v3642 = vunpack.c.l.b16 %v3593
      %v3643 = vunpack.c.l.b16 %v3594
      %v3644 = vunpack.c.l.b16 %v3595
      %v3645 = vunpack.c.l.b16 %v3596
      %v3646 = vunpack.c.l.b16 %v3597
      %v3647 = vunpack.c.l.b16 %v3598
      %v3648 = vunpack.c.l.b16 %v3599
      %v3649 = vunpack.c.l.b16 %v3600
      %v3650 = vunpack.c.l.b16 %v3601
      %v3651 = vunpack.c.l.b16 %v3602
      %v3652 = vunpack.c.l.b16 %v3603
      %v3653 = vunpack.c.l.b16 %v3604
      %v3654 = vunpack.c.l.b16 %v3605
      %v3655 = vunpack.c.l.b16 %v3606
      %v3656 = vunpack.c.l.b16 %v3607
      %v3657 = vpack.c.b16 %v3642, %v3641
      %v3658 = vpack.c.b16 %v3644, %v3643
      %v3659 = vpack.c.b16 %v3646, %v3645
      %v3660 = vpack.c.b16 %v3648, %v3647
      %v3661 = vpack.c.b16 %v3650, %v3649
      %v3662 = vpack.c.b16 %v3652, %v3651
      %v3663 = vpack.c.b16 %v3654, %v3653
      %v3664 = vpack.c.b16 %v3656, %v3655
      %v3689 = vunpack.c.l.b16 %v3609
      %v3690 = vunpack.c.l.b16 %v3610
      %v3691 = vunpack.c.l.b16 %v3611
      %v3692 = vunpack.c.l.b16 %v3612
      %v3693 = vunpack.c.l.b16 %v3613
      %v3694 = vunpack.c.l.b16 %v3614
      %v3695 = vunpack.c.l.b16 %v3615
      %v3696 = vunpack.c.l.b16 %v3616
      %v3697 = vunpack.c.l.b16 %v3617
      %v3698 = vunpack.c.l.b16 %v3618
      %v3699 = vunpack.c.l.b16 %v3619
      %v3700 = vunpack.c.l.b16 %v3620
      %v3701 = vunpack.c.l.b16 %v3621
      %v3702 = vunpack.c.l.b16 %v3622
      %v3703 = vunpack.c.l.b16 %v3623
      %v3704 = vunpack.c.l.b16 %v3624
      %v3705 = vpack.c.b16 %v3690, %v3689
      %v3706 = vpack.c.b16 %v3692, %v3691
      %v3707 = vpack.c.b16 %v3694, %v3693
      %v3708 = vpack.c.b16 %v3696, %v3695
      %v3709 = vpack.c.b16 %v3698, %v3697
      %v3710 = vpack.c.b16 %v3700, %v3699
      %v3711 = vpack.c.b16 %v3702, %v3701
      %v3712 = vpack.c.b16 %v3704, %v3703
      %3721 = vmatprep.subr.bf16.mxu0 0
      %3722 = vmatpush1.bf16.msra.mxu0 %v3712
      %3723 = vmatprep.subr.bf16.mxu0 0
      %3724 = vmatpush1.bf16.msra.mxu0 %v3711
      %3725 = vmatprep.subr.bf16.mxu0 0
      %3726 = vmatpush1.bf16.msra.mxu0 %v3710
      %3727 = vmatprep.subr.bf16.mxu0 0
      %3728 = vmatpush1.bf16.msra.mxu0 %v3709
      %3729 = vmatprep.subr.bf16.mxu0 0
      %3730 = vmatpush1.bf16.msra.mxu0 %v3708
      %3731 = vmatprep.subr.bf16.mxu0 0
      %3732 = vmatpush1.bf16.msra.mxu0 %v3707
      %3733 = vmatprep.subr.bf16.mxu0 0
      %3734 = vmatpush1.bf16.msra.mxu0 %v3706
      %3735 = vmatprep.subr.bf16.mxu0 0
      %3736 = vmatpush1.bf16.msra.mxu0 %v3705
      %3737 = vmatprep.subr.bf16.mxu0 0
      %3738 = vmatpush2.bf16.msra.mxu0 0
      %3739 = vmatprep.subr.bf16.mxu0 0
      %3740 = vmatpush2.bf16.msra.mxu0 0
      %3741 = vmatprep.subr.bf16.mxu0 0
      %3742 = vmatpush2.bf16.msra.mxu0 0
      %3743 = vmatprep.subr.bf16.mxu0 0
      %3744 = vmatpush2.bf16.msra.mxu0 0
      %3745 = vmatprep.subr.bf16.mxu0 0
      %3746 = vmatpush2.bf16.msra.mxu0 0
      %3747 = vmatprep.subr.bf16.mxu0 0
      %3748 = vmatpush2.bf16.msra.mxu0 0
      %3749 = vmatprep.subr.bf16.mxu0 0
      %3750 = vmatpush2.bf16.msra.mxu0 0
      %3751 = vmatprep.subr.bf16.mxu0 0
      %3752 = vmatpush2.bf16.msra.mxu0 0
      %3753 = vmatprep.mubr.bf16.mxu0 0
      %3754 = vmatmul.mubr.bf16.gmra.mxu0 %v3657
      %v3755 = vpop.f32.mrf.mxu0
      %v3756 = vadd.f32 0.0, %v3755
      %v3757 = vpop.f32.mrf.mxu0
      %v3758 = vpop.f32.mrf.mxu0
      %v3759 = vpop.f32.mrf.mxu0
      %3760 = vmatprep.mubr.bf16.mxu0 0
      %3761 = vmatmul.mubr.bf16.gmra.mxu0 %v3658
      %v3762 = vpop.f32.mrf.mxu0
      %v3763 = vadd.f32 0.0, %v3762
      %v3764 = vpop.f32.mrf.mxu0
      %v3765 = vpop.f32.mrf.mxu0
      %v3766 = vpop.f32.mrf.mxu0
      %3767 = vmatprep.mubr.bf16.mxu0 0
      %3768 = vmatmul.mubr.bf16.gmra.mxu0 %v3659
      %v3769 = vpop.f32.mrf.mxu0
      %v3770 = vadd.f32 0.0, %v3769
      %v3771 = vpop.f32.mrf.mxu0
      %v3772 = vpop.f32.mrf.mxu0
      %v3773 = vpop.f32.mrf.mxu0
      %3774 = vmatprep.mubr.bf16.mxu0 0
      %3775 = vmatmul.mubr.bf16.gmra.mxu0 %v3660
      %v3776 = vpop.f32.mrf.mxu0
      %v3777 = vadd.f32 0.0, %v3776
      %v3778 = vpop.f32.mrf.mxu0
      %v3779 = vpop.f32.mrf.mxu0
      %v3780 = vpop.f32.mrf.mxu0
      %3781 = vmatprep.mubr.bf16.mxu0 0
      %3782 = vmatmul.mubr.bf16.gmra.mxu0 %v3661
      %v3783 = vpop.f32.mrf.mxu0
      %v3784 = vadd.f32 0.0, %v3783
      %v3785 = vpop.f32.mrf.mxu0
      %v3786 = vpop.f32.mrf.mxu0
      %v3787 = vpop.f32.mrf.mxu0
      %3788 = vmatprep.mubr.bf16.mxu0 0
      %3789 = vmatmul.mubr.bf16.gmra.mxu0 %v3662
      %v3790 = vpop.f32.mrf.mxu0
      %v3791 = vadd.f32 0.0, %v3790
      %v3792 = vpop.f32.mrf.mxu0
      %v3793 = vpop.f32.mrf.mxu0
      %v3794 = vpop.f32.mrf.mxu0
      %3795 = vmatprep.mubr.bf16.mxu0 0
      %3796 = vmatmul.mubr.bf16.gmra.mxu0 %v3663
      %v3797 = vpop.f32.mrf.mxu0
      %v3798 = vadd.f32 0.0, %v3797
      %v3799 = vpop.f32.mrf.mxu0
      %v3800 = vpop.f32.mrf.mxu0
      %v3801 = vpop.f32.mrf.mxu0
      %3802 = vmatprep.mubr.bf16.mxu0 0
      %3803 = vmatmul.mubr.bf16.gmra.mxu0 %v3664
      %v3804 = vpop.f32.mrf.mxu0
      %v3805 = vadd.f32 0.0, %v3804
      %v3806 = vpop.f32.mrf.mxu0
      %v3807 = vpop.f32.mrf.mxu0
      %v3808 = vpop.f32.mrf.mxu0
      %3809 = vdwg.mxu0
      %v3810 = vadd.f32 %v3584, %v3756
      %v3811 = vadd.f32 %v3585, %v3763
      %v3812 = vadd.f32 %v3586, %v3770
      %v3813 = vadd.f32 %v3587, %v3777
      %v3814 = vadd.f32 %v3588, %v3784
      %v3815 = vadd.f32 %v3589, %v3791
      %v3816 = vadd.f32 %v3590, %v3798
      %v3817 = vadd.f32 %v3591, %v3805
      %v3818 = vld [vmem:[#allocation2 + $0x8] sm:$0xf]
      %v3819 = vld [vmem:[#allocation2 + $0xc] sm:$0xf]
      %v3820 = vld [vmem:[#allocation2 + $0x10] sm:$0xf]
      %v3821 = vld [vmem:[#allocation2 + $0x14] sm:$0xf]
      %v3822 = vld [vmem:[#allocation2 + $0x18] sm:$0xf]
      %v3823 = vld [vmem:[#allocation2 + $0x1c] sm:$0xf]
      %v3824 = vld [vmem:[#allocation2 + $0x20] sm:$0xf]
      %v3825 = vld [vmem:[#allocation2 + $0x24] sm:$0xf]
      %v3826 = vld [vmem:[#allocation2 + $0x28] sm:$0xf]
      %v3827 = vld [vmem:[#allocation2 + $0x2c] sm:$0xf]
      %v3828 = vld [vmem:[#allocation2 + $0x30] sm:$0xf]
      %v3829 = vld [vmem:[#allocation2 + $0x34] sm:$0xf]
      %v3830 = vld [vmem:[#allocation2 + $0x38] sm:$0xf]
      %v3831 = vld [vmem:[#allocation2 + $0x3c] sm:$0xf]
      %v3832 = vld [vmem:[#allocation2 + $0x40] sm:$0xf]
      %v3833 = vld [vmem:[#allocation2 + $0x44] sm:$0xf]
      %v3834 = vld [vmem:[#allocation2 + $0x48] sm:$0x1]
      %s3835 = scalar_lea.vmem %s3, 256
      %v3836 = vld [vmem:[%s3835] sm:$0xf]
      %v3837 = vld [vmem:[%s3835 + $0x4] sm:$0xf]
      %v3838 = vld [vmem:[%s3835 + $0x8] sm:$0xf]
      %v3839 = vld [vmem:[%s3835 + $0xc] sm:$0xf]
      %v3840 = vld [vmem:[%s3835 + $0x10] sm:$0xf]
      %v3841 = vld [vmem:[%s3835 + $0x14] sm:$0xf]
      %v3842 = vld [vmem:[%s3835 + $0x18] sm:$0xf]
      %v3843 = vld [vmem:[%s3835 + $0x1c] sm:$0xf]
      %v3844 = vld [vmem:[%s3835 + $0x20] sm:$0xf]
      %v3845 = vld [vmem:[%s3835 + $0x24] sm:$0xf]
      %v3846 = vld [vmem:[%s3835 + $0x28] sm:$0xf]
      %v3847 = vld [vmem:[%s3835 + $0x2c] sm:$0xf]
      %v3848 = vld [vmem:[%s3835 + $0x30] sm:$0xf]
      %v3849 = vld [vmem:[%s3835 + $0x34] sm:$0xf]
      %v3850 = vld [vmem:[%s3835 + $0x38] sm:$0xf]
      %v3851 = vld [vmem:[%s3835 + $0x3c] sm:$0xf]
      %v3869 = vunpack.c.l.b16 %v3818
      %v3870 = vunpack.c.l.b16 %v3819
      %v3871 = vunpack.c.l.b16 %v3820
      %v3872 = vunpack.c.l.b16 %v3821
      %v3873 = vunpack.c.l.b16 %v3822
      %v3874 = vunpack.c.l.b16 %v3823
      %v3875 = vunpack.c.l.b16 %v3824
      %v3876 = vunpack.c.l.b16 %v3825
      %v3877 = vunpack.c.l.b16 %v3826
      %v3878 = vunpack.c.l.b16 %v3827
      %v3879 = vunpack.c.l.b16 %v3828
      %v3880 = vunpack.c.l.b16 %v3829
      %v3881 = vunpack.c.l.b16 %v3830
      %v3882 = vunpack.c.l.b16 %v3831
      %v3883 = vunpack.c.l.b16 %v3832
      %v3884 = vunpack.c.l.b16 %v3833
      %v3885 = vunpack.c.l.b16 %v3834
      %v3886 = vpack.c.b16 %v3870, %v3869
      %v3887 = vpack.c.b16 %v3872, %v3871
      %v3888 = vpack.c.b16 %v3874, %v3873
      %v3889 = vpack.c.b16 %v3876, %v3875
      %v3890 = vpack.c.b16 %v3878, %v3877
      %v3891 = vpack.c.b16 %v3880, %v3879
      %v3892 = vpack.c.b16 %v3882, %v3881
      %v3893 = vpack.c.b16 %v3884, %v3883
      %v3894 = vpack.c.b16 %v3885, %v3885
      %v3896 = vshrl.u32 %v3886, 16
      %v3898 = vshll.u32 %v3886, 16
      %v3900 = vrot.slane %v3898, 1
      %v3901 = vor.u32 %v3896, %v3900
      %v3903 = vshll.u32 %v3887, 16
      %v3905 = vrot.slane %v3903, 1
      %v3906 = vsel %vm819, %v3901, %v3905
      %v3907 = vshrl.u32 %v3887, 16
      %v3909 = vor.u32 %v3907, %v3905
      %v3911 = vshll.u32 %v3888, 16
      %v3913 = vrot.slane %v3911, 1
      %v3914 = vsel %vm819, %v3909, %v3913
      %v3915 = vshrl.u32 %v3888, 16
      %v3917 = vor.u32 %v3915, %v3913
      %v3919 = vshll.u32 %v3889, 16
      %v3921 = vrot.slane %v3919, 1
      %v3922 = vsel %vm819, %v3917, %v3921
      %v3923 = vshrl.u32 %v3889, 16
      %v3925 = vor.u32 %v3923, %v3921
      %v3927 = vshll.u32 %v3890, 16
      %v3929 = vrot.slane %v3927, 1
      %v3930 = vsel %vm819, %v3925, %v3929
      %v3931 = vshrl.u32 %v3890, 16
      %v3933 = vor.u32 %v3931, %v3929
      %v3935 = vshll.u32 %v3891, 16
      %v3937 = vrot.slane %v3935, 1
      %v3938 = vsel %vm819, %v3933, %v3937
      %v3939 = vshrl.u32 %v3891, 16
      %v3941 = vor.u32 %v3939, %v3937
      %v3943 = vshll.u32 %v3892, 16
      %v3945 = vrot.slane %v3943, 1
      %v3946 = vsel %vm819, %v3941, %v3945
      %v3947 = vshrl.u32 %v3892, 16
      %v3949 = vor.u32 %v3947, %v3945
      %v3951 = vshll.u32 %v3893, 16
      %v3953 = vrot.slane %v3951, 1
      %v3954 = vsel %vm819, %v3949, %v3953
      %v3955 = vshrl.u32 %v3893, 16
      %v3957 = vor.u32 %v3955, %v3953
      %v3959 = vshll.u32 %v3894, 16
      %v3961 = vrot.slane %v3959, 1
      %v3962 = vsel %vm819, %v3957, %v3961
      %v3987 = vunpack.c.l.b16 %v3836
      %v3988 = vunpack.c.l.b16 %v3837
      %v3989 = vunpack.c.l.b16 %v3838
      %v3990 = vunpack.c.l.b16 %v3839
      %v3991 = vunpack.c.l.b16 %v3840
      %v3992 = vunpack.c.l.b16 %v3841
      %v3993 = vunpack.c.l.b16 %v3842
      %v3994 = vunpack.c.l.b16 %v3843
      %v3995 = vunpack.c.l.b16 %v3844
      %v3996 = vunpack.c.l.b16 %v3845
      %v3997 = vunpack.c.l.b16 %v3846
      %v3998 = vunpack.c.l.b16 %v3847
      %v3999 = vunpack.c.l.b16 %v3848
      %v4000 = vunpack.c.l.b16 %v3849
      %v4001 = vunpack.c.l.b16 %v3850
      %v4002 = vunpack.c.l.b16 %v3851
      %v4003 = vpack.c.b16 %v3988, %v3987
      %v4004 = vpack.c.b16 %v3990, %v3989
      %v4005 = vpack.c.b16 %v3992, %v3991
      %v4006 = vpack.c.b16 %v3994, %v3993
      %v4007 = vpack.c.b16 %v3996, %v3995
      %v4008 = vpack.c.b16 %v3998, %v3997
      %v4009 = vpack.c.b16 %v4000, %v3999
      %v4010 = vpack.c.b16 %v4002, %v4001
      %4019 = vmatprep.subr.bf16.mxu0 0
      %4020 = vmatpush1.bf16.msra.mxu0 %v4010
      %4021 = vmatprep.subr.bf16.mxu0 0
      %4022 = vmatpush1.bf16.msra.mxu0 %v4009
      %4023 = vmatprep.subr.bf16.mxu0 0
      %4024 = vmatpush1.bf16.msra.mxu0 %v4008
      %4025 = vmatprep.subr.bf16.mxu0 0
      %4026 = vmatpush1.bf16.msra.mxu0 %v4007
      %4027 = vmatprep.subr.bf16.mxu0 0
      %4028 = vmatpush1.bf16.msra.mxu0 %v4006
      %4029 = vmatprep.subr.bf16.mxu0 0
      %4030 = vmatpush1.bf16.msra.mxu0 %v4005
      %4031 = vmatprep.subr.bf16.mxu0 0
      %4032 = vmatpush1.bf16.msra.mxu0 %v4004
      %4033 = vmatprep.subr.bf16.mxu0 0
      %4034 = vmatpush1.bf16.msra.mxu0 %v4003
      %4035 = vmatprep.subr.bf16.mxu0 0
      %4036 = vmatpush2.bf16.msra.mxu0 0
      %4037 = vmatprep.subr.bf16.mxu0 0
      %4038 = vmatpush2.bf16.msra.mxu0 0
      %4039 = vmatprep.subr.bf16.mxu0 0
      %4040 = vmatpush2.bf16.msra.mxu0 0
      %4041 = vmatprep.subr.bf16.mxu0 0
      %4042 = vmatpush2.bf16.msra.mxu0 0
      %4043 = vmatprep.subr.bf16.mxu0 0
      %4044 = vmatpush2.bf16.msra.mxu0 0
      %4045 = vmatprep.subr.bf16.mxu0 0
      %4046 = vmatpush2.bf16.msra.mxu0 0
      %4047 = vmatprep.subr.bf16.mxu0 0
      %4048 = vmatpush2.bf16.msra.mxu0 0
      %4049 = vmatprep.subr.bf16.mxu0 0
      %4050 = vmatpush2.bf16.msra.mxu0 0
      %4051 = vmatprep.mubr.bf16.mxu0 0
      %4052 = vmatmul.mubr.bf16.gmra.mxu0 %v3906
      %v4053 = vpop.f32.mrf.mxu0
      %v4054 = vadd.f32 0.0, %v4053
      %v4055 = vpop.f32.mrf.mxu0
      %v4056 = vpop.f32.mrf.mxu0
      %v4057 = vpop.f32.mrf.mxu0
      %4058 = vmatprep.mubr.bf16.mxu0 0
      %4059 = vmatmul.mubr.bf16.gmra.mxu0 %v3914
      %v4060 = vpop.f32.mrf.mxu0
      %v4061 = vadd.f32 0.0, %v4060
      %v4062 = vpop.f32.mrf.mxu0
      %v4063 = vpop.f32.mrf.mxu0
      %v4064 = vpop.f32.mrf.mxu0
      %4065 = vmatprep.mubr.bf16.mxu0 0
      %4066 = vmatmul.mubr.bf16.gmra.mxu0 %v3922
      %v4067 = vpop.f32.mrf.mxu0
      %v4068 = vadd.f32 0.0, %v4067
      %v4069 = vpop.f32.mrf.mxu0
      %v4070 = vpop.f32.mrf.mxu0
      %v4071 = vpop.f32.mrf.mxu0
      %4072 = vmatprep.mubr.bf16.mxu0 0
      %4073 = vmatmul.mubr.bf16.gmra.mxu0 %v3930
      %v4074 = vpop.f32.mrf.mxu0
      %v4075 = vadd.f32 0.0, %v4074
      %v4076 = vpop.f32.mrf.mxu0
      %v4077 = vpop.f32.mrf.mxu0
      %v4078 = vpop.f32.mrf.mxu0
      %4079 = vmatprep.mubr.bf16.mxu0 0
      %4080 = vmatmul.mubr.bf16.gmra.mxu0 %v3938
      %v4081 = vpop.f32.mrf.mxu0
      %v4082 = vadd.f32 0.0, %v4081
      %v4083 = vpop.f32.mrf.mxu0
      %v4084 = vpop.f32.mrf.mxu0
      %v4085 = vpop.f32.mrf.mxu0
      %4086 = vmatprep.mubr.bf16.mxu0 0
      %4087 = vmatmul.mubr.bf16.gmra.mxu0 %v3946
      %v4088 = vpop.f32.mrf.mxu0
      %v4089 = vadd.f32 0.0, %v4088
      %v4090 = vpop.f32.mrf.mxu0
      %v4091 = vpop.f32.mrf.mxu0
      %v4092 = vpop.f32.mrf.mxu0
      %4093 = vmatprep.mubr.bf16.mxu0 0
      %4094 = vmatmul.mubr.bf16.gmra.mxu0 %v3954
      %v4095 = vpop.f32.mrf.mxu0
      %v4096 = vadd.f32 0.0, %v4095
      %v4097 = vpop.f32.mrf.mxu0
      %v4098 = vpop.f32.mrf.mxu0
      %v4099 = vpop.f32.mrf.mxu0
      %4100 = vmatprep.mubr.bf16.mxu0 0
      %4101 = vmatmul.mubr.bf16.gmra.mxu0 %v3962
      %v4102 = vpop.f32.mrf.mxu0
      %v4103 = vadd.f32 0.0, %v4102
      %v4104 = vpop.f32.mrf.mxu0
      %v4105 = vpop.f32.mrf.mxu0
      %v4106 = vpop.f32.mrf.mxu0
      %4107 = vdwg.mxu0
      %v4108 = vadd.f32 %v3810, %v4054
      %v4109 = vadd.f32 %v3811, %v4061
      %v4110 = vadd.f32 %v3812, %v4068
      %v4111 = vadd.f32 %v3813, %v4075
      %v4112 = vadd.f32 %v3814, %v4082
      %v4113 = vadd.f32 %v3815, %v4089
      %v4114 = vadd.f32 %v3816, %v4096
      %v4115 = vadd.f32 %v3817, %v4103
      %v4116 = vld [vmem:[#allocation2 + $0x8] sm:$0xe]
      %s4117 = scalar_lea.vmem %s3, 320
      %v4118 = vld [vmem:[%s4117] sm:$0xf]
      %v4119 = vld [vmem:[%s4117 + $0x4] sm:$0xf]
      %v4120 = vld [vmem:[%s4117 + $0x8] sm:$0xf]
      %v4121 = vld [vmem:[%s4117 + $0xc] sm:$0xf]
      %v4122 = vld [vmem:[%s4117 + $0x10] sm:$0xf]
      %v4123 = vld [vmem:[%s4117 + $0x14] sm:$0xf]
      %v4124 = vld [vmem:[%s4117 + $0x18] sm:$0xf]
      %v4125 = vld [vmem:[%s4117 + $0x1c] sm:$0xf]
      %v4126 = vld [vmem:[%s4117 + $0x20] sm:$0xf]
      %v4127 = vld [vmem:[%s4117 + $0x24] sm:$0xf]
      %v4128 = vld [vmem:[%s4117 + $0x28] sm:$0xf]
      %v4129 = vld [vmem:[%s4117 + $0x2c] sm:$0xf]
      %v4130 = vld [vmem:[%s4117 + $0x30] sm:$0xf]
      %v4131 = vld [vmem:[%s4117 + $0x34] sm:$0xf]
      %v4132 = vld [vmem:[%s4117 + $0x38] sm:$0xf]
      %v4133 = vld [vmem:[%s4117 + $0x3c] sm:$0xf]
      %v4135 = vunpack.c.l.b16 %v4116
      %v4136 = vpack.c.b16 %v3870, %v4135
      %v4137 = vrot.slane %v4136, 1
      %v4138 = vrot.slane %v3887, 1
      %v4139 = vsel %vm3421, %v4137, %v4138
      %v4140 = vrot.slane %v3888, 1
      %v4141 = vsel %vm3421, %v4138, %v4140
      %v4142 = vrot.slane %v3889, 1
      %v4143 = vsel %vm3421, %v4140, %v4142
      %v4144 = vrot.slane %v3890, 1
      %v4145 = vsel %vm3421, %v4142, %v4144
      %v4146 = vrot.slane %v3891, 1
      %v4147 = vsel %vm3421, %v4144, %v4146
      %v4148 = vrot.slane %v3892, 1
      %v4149 = vsel %vm3421, %v4146, %v4148
      %v4150 = vrot.slane %v3893, 1
      %v4151 = vsel %vm3421, %v4148, %v4150
      %v4152 = vrot.slane %v3894, 1
      %v4153 = vsel %vm3421, %v4150, %v4152
      %v4178 = vunpack.c.l.b16 %v4118
      %v4179 = vunpack.c.l.b16 %v4119
      %v4180 = vunpack.c.l.b16 %v4120
      %v4181 = vunpack.c.l.b16 %v4121
      %v4182 = vunpack.c.l.b16 %v4122
      %v4183 = vunpack.c.l.b16 %v4123
      %v4184 = vunpack.c.l.b16 %v4124
      %v4185 = vunpack.c.l.b16 %v4125
      %v4186 = vunpack.c.l.b16 %v4126
      %v4187 = vunpack.c.l.b16 %v4127
      %v4188 = vunpack.c.l.b16 %v4128
      %v4189 = vunpack.c.l.b16 %v4129
      %v4190 = vunpack.c.l.b16 %v4130
      %v4191 = vunpack.c.l.b16 %v4131
      %v4192 = vunpack.c.l.b16 %v4132
      %v4193 = vunpack.c.l.b16 %v4133
      %v4194 = vpack.c.b16 %v4179, %v4178
      %v4195 = vpack.c.b16 %v4181, %v4180
      %v4196 = vpack.c.b16 %v4183, %v4182
      %v4197 = vpack.c.b16 %v4185, %v4184
      %v4198 = vpack.c.b16 %v4187, %v4186
      %v4199 = vpack.c.b16 %v4189, %v4188
      %v4200 = vpack.c.b16 %v4191, %v4190
      %v4201 = vpack.c.b16 %v4193, %v4192
      %4210 = vmatprep.subr.bf16.mxu0 0
      %4211 = vmatpush1.bf16.msra.mxu0 %v4201
      %4212 = vmatprep.subr.bf16.mxu0 0
      %4213 = vmatpush1.bf16.msra.mxu0 %v4200
      %4214 = vmatprep.subr.bf16.mxu0 0
      %4215 = vmatpush1.bf16.msra.mxu0 %v4199
      %4216 = vmatprep.subr.bf16.mxu0 0
      %4217 = vmatpush1.bf16.msra.mxu0 %v4198
      %4218 = vmatprep.subr.bf16.mxu0 0
      %4219 = vmatpush1.bf16.msra.mxu0 %v4197
      %4220 = vmatprep.subr.bf16.mxu0 0
      %4221 = vmatpush1.bf16.msra.mxu0 %v4196
      %4222 = vmatprep.subr.bf16.mxu0 0
      %4223 = vmatpush1.bf16.msra.mxu0 %v4195
      %4224 = vmatprep.subr.bf16.mxu0 0
      %4225 = vmatpush1.bf16.msra.mxu0 %v4194
      %4226 = vmatprep.subr.bf16.mxu0 0
      %4227 = vmatpush2.bf16.msra.mxu0 0
      %4228 = vmatprep.subr.bf16.mxu0 0
      %4229 = vmatpush2.bf16.msra.mxu0 0
      %4230 = vmatprep.subr.bf16.mxu0 0
      %4231 = vmatpush2.bf16.msra.mxu0 0
      %4232 = vmatprep.subr.bf16.mxu0 0
      %4233 = vmatpush2.bf16.msra.mxu0 0
      %4234 = vmatprep.subr.bf16.mxu0 0
      %4235 = vmatpush2.bf16.msra.mxu0 0
      %4236 = vmatprep.subr.bf16.mxu0 0
      %4237 = vmatpush2.bf16.msra.mxu0 0
      %4238 = vmatprep.subr.bf16.mxu0 0
      %4239 = vmatpush2.bf16.msra.mxu0 0
      %4240 = vmatprep.subr.bf16.mxu0 0
      %4241 = vmatpush2.bf16.msra.mxu0 0
      %4242 = vmatprep.mubr.bf16.mxu0 0
      %4243 = vmatmul.mubr.bf16.gmra.mxu0 %v4139
      %v4244 = vpop.f32.mrf.mxu0
      %v4245 = vadd.f32 0.0, %v4244
      %v4246 = vpop.f32.mrf.mxu0
      %v4247 = vpop.f32.mrf.mxu0
      %v4248 = vpop.f32.mrf.mxu0
      %4249 = vmatprep.mubr.bf16.mxu0 0
      %4250 = vmatmul.mubr.bf16.gmra.mxu0 %v4141
      %v4251 = vpop.f32.mrf.mxu0
      %v4252 = vadd.f32 0.0, %v4251
      %v4253 = vpop.f32.mrf.mxu0
      %v4254 = vpop.f32.mrf.mxu0
      %v4255 = vpop.f32.mrf.mxu0
      %4256 = vmatprep.mubr.bf16.mxu0 0
      %4257 = vmatmul.mubr.bf16.gmra.mxu0 %v4143
      %v4258 = vpop.f32.mrf.mxu0
      %v4259 = vadd.f32 0.0, %v4258
      %v4260 = vpop.f32.mrf.mxu0
      %v4261 = vpop.f32.mrf.mxu0
      %v4262 = vpop.f32.mrf.mxu0
      %4263 = vmatprep.mubr.bf16.mxu0 0
      %4264 = vmatmul.mubr.bf16.gmra.mxu0 %v4145
      %v4265 = vpop.f32.mrf.mxu0
      %v4266 = vadd.f32 0.0, %v4265
      %v4267 = vpop.f32.mrf.mxu0
      %v4268 = vpop.f32.mrf.mxu0
      %v4269 = vpop.f32.mrf.mxu0
      %4270 = vmatprep.mubr.bf16.mxu0 0
      %4271 = vmatmul.mubr.bf16.gmra.mxu0 %v4147
      %v4272 = vpop.f32.mrf.mxu0
      %v4273 = vadd.f32 0.0, %v4272
      %v4274 = vpop.f32.mrf.mxu0
      %v4275 = vpop.f32.mrf.mxu0
      %v4276 = vpop.f32.mrf.mxu0
      %4277 = vmatprep.mubr.bf16.mxu0 0
      %4278 = vmatmul.mubr.bf16.gmra.mxu0 %v4149
      %v4279 = vpop.f32.mrf.mxu0
      %v4280 = vadd.f32 0.0, %v4279
      %v4281 = vpop.f32.mrf.mxu0
      %v4282 = vpop.f32.mrf.mxu0
      %v4283 = vpop.f32.mrf.mxu0
      %4284 = vmatprep.mubr.bf16.mxu0 0
      %4285 = vmatmul.mubr.bf16.gmra.mxu0 %v4151
      %v4286 = vpop.f32.mrf.mxu0
      %v4287 = vadd.f32 0.0, %v4286
      %v4288 = vpop.f32.mrf.mxu0
      %v4289 = vpop.f32.mrf.mxu0
      %v4290 = vpop.f32.mrf.mxu0
      %4291 = vmatprep.mubr.bf16.mxu0 0
      %4292 = vmatmul.mubr.bf16.gmra.mxu0 %v4153
      %v4293 = vpop.f32.mrf.mxu0
      %v4294 = vadd.f32 0.0, %v4293
      %v4295 = vpop.f32.mrf.mxu0
      %v4296 = vpop.f32.mrf.mxu0
      %v4297 = vpop.f32.mrf.mxu0
      %4298 = vdwg.mxu0
      %v4299 = vadd.f32 %v4108, %v4245
      %v4300 = vadd.f32 %v4109, %v4252
      %v4301 = vadd.f32 %v4110, %v4259
      %v4302 = vadd.f32 %v4111, %v4266
      %v4303 = vadd.f32 %v4112, %v4273
      %v4304 = vadd.f32 %v4113, %v4280
      %v4305 = vadd.f32 %v4114, %v4287
      %v4306 = vadd.f32 %v4115, %v4294
      %v4307 = vld [vmem:[#allocation2 + $0x10] sm:$0xf]
      %v4308 = vld [vmem:[#allocation2 + $0x14] sm:$0xf]
      %v4309 = vld [vmem:[#allocation2 + $0x18] sm:$0xf]
      %v4310 = vld [vmem:[#allocation2 + $0x1c] sm:$0xf]
      %v4311 = vld [vmem:[#allocation2 + $0x20] sm:$0xf]
      %v4312 = vld [vmem:[#allocation2 + $0x24] sm:$0xf]
      %v4313 = vld [vmem:[#allocation2 + $0x28] sm:$0xf]
      %v4314 = vld [vmem:[#allocation2 + $0x2c] sm:$0xf]
      %v4315 = vld [vmem:[#allocation2 + $0x30] sm:$0xf]
      %v4316 = vld [vmem:[#allocation2 + $0x34] sm:$0xf]
      %v4317 = vld [vmem:[#allocation2 + $0x38] sm:$0xf]
      %v4318 = vld [vmem:[#allocation2 + $0x3c] sm:$0xf]
      %v4319 = vld [vmem:[#allocation2 + $0x40] sm:$0xf]
      %v4320 = vld [vmem:[#allocation2 + $0x44] sm:$0xf]
      %v4321 = vld [vmem:[#allocation2 + $0x48] sm:$0xf]
      %v4322 = vld [vmem:[#allocation2 + $0x4c] sm:$0xf]
      %s4323 = scalar_lea.vmem %s3, 384
      %v4324 = vld [vmem:[%s4323] sm:$0xf]
      %v4325 = vld [vmem:[%s4323 + $0x4] sm:$0xf]
      %v4326 = vld [vmem:[%s4323 + $0x8] sm:$0xf]
      %v4327 = vld [vmem:[%s4323 + $0xc] sm:$0xf]
      %v4328 = vld [vmem:[%s4323 + $0x10] sm:$0xf]
      %v4329 = vld [vmem:[%s4323 + $0x14] sm:$0xf]
      %v4330 = vld [vmem:[%s4323 + $0x18] sm:$0xf]
      %v4331 = vld [vmem:[%s4323 + $0x1c] sm:$0xf]
      %v4332 = vld [vmem:[%s4323 + $0x20] sm:$0xf]
      %v4333 = vld [vmem:[%s4323 + $0x24] sm:$0xf]
      %v4334 = vld [vmem:[%s4323 + $0x28] sm:$0xf]
      %v4335 = vld [vmem:[%s4323 + $0x2c] sm:$0xf]
      %v4336 = vld [vmem:[%s4323 + $0x30] sm:$0xf]
      %v4337 = vld [vmem:[%s4323 + $0x34] sm:$0xf]
      %v4338 = vld [vmem:[%s4323 + $0x38] sm:$0xf]
      %v4339 = vld [vmem:[%s4323 + $0x3c] sm:$0xf]
      %v4356 = vunpack.c.l.b16 %v4307
      %v4357 = vunpack.c.l.b16 %v4308
      %v4358 = vunpack.c.l.b16 %v4309
      %v4359 = vunpack.c.l.b16 %v4310
      %v4360 = vunpack.c.l.b16 %v4311
      %v4361 = vunpack.c.l.b16 %v4312
      %v4362 = vunpack.c.l.b16 %v4313
      %v4363 = vunpack.c.l.b16 %v4314
      %v4364 = vunpack.c.l.b16 %v4315
      %v4365 = vunpack.c.l.b16 %v4316
      %v4366 = vunpack.c.l.b16 %v4317
      %v4367 = vunpack.c.l.b16 %v4318
      %v4368 = vunpack.c.l.b16 %v4319
      %v4369 = vunpack.c.l.b16 %v4320
      %v4370 = vunpack.c.l.b16 %v4321
      %v4371 = vunpack.c.l.b16 %v4322
      %v4372 = vpack.c.b16 %v4357, %v4356
      %v4373 = vpack.c.b16 %v4359, %v4358
      %v4374 = vpack.c.b16 %v4361, %v4360
      %v4375 = vpack.c.b16 %v4363, %v4362
      %v4376 = vpack.c.b16 %v4365, %v4364
      %v4377 = vpack.c.b16 %v4367, %v4366
      %v4378 = vpack.c.b16 %v4369, %v4368
      %v4379 = vpack.c.b16 %v4371, %v4370
      %v4404 = vunpack.c.l.b16 %v4324
      %v4405 = vunpack.c.l.b16 %v4325
      %v4406 = vunpack.c.l.b16 %v4326
      %v4407 = vunpack.c.l.b16 %v4327
      %v4408 = vunpack.c.l.b16 %v4328
      %v4409 = vunpack.c.l.b16 %v4329
      %v4410 = vunpack.c.l.b16 %v4330
      %v4411 = vunpack.c.l.b16 %v4331
      %v4412 = vunpack.c.l.b16 %v4332
      %v4413 = vunpack.c.l.b16 %v4333
      %v4414 = vunpack.c.l.b16 %v4334
      %v4415 = vunpack.c.l.b16 %v4335
      %v4416 = vunpack.c.l.b16 %v4336
      %v4417 = vunpack.c.l.b16 %v4337
      %v4418 = vunpack.c.l.b16 %v4338
      %v4419 = vunpack.c.l.b16 %v4339
      %v4420 = vpack.c.b16 %v4405, %v4404
      %v4421 = vpack.c.b16 %v4407, %v4406
      %v4422 = vpack.c.b16 %v4409, %v4408
      %v4423 = vpack.c.b16 %v4411, %v4410
      %v4424 = vpack.c.b16 %v4413, %v4412
      %v4425 = vpack.c.b16 %v4415, %v4414
      %v4426 = vpack.c.b16 %v4417, %v4416
      %v4427 = vpack.c.b16 %v4419, %v4418
      %4436 = vmatprep.subr.bf16.mxu0 0
      %4437 = vmatpush1.bf16.msra.mxu0 %v4427
      %4438 = vmatprep.subr.bf16.mxu0 0
      %4439 = vmatpush1.bf16.msra.mxu0 %v4426
      %4440 = vmatprep.subr.bf16.mxu0 0
      %4441 = vmatpush1.bf16.msra.mxu0 %v4425
      %4442 = vmatprep.subr.bf16.mxu0 0
      %4443 = vmatpush1.bf16.msra.mxu0 %v4424
      %4444 = vmatprep.subr.bf16.mxu0 0
      %4445 = vmatpush1.bf16.msra.mxu0 %v4423
      %4446 = vmatprep.subr.bf16.mxu0 0
      %4447 = vmatpush1.bf16.msra.mxu0 %v4422
      %4448 = vmatprep.subr.bf16.mxu0 0
      %4449 = vmatpush1.bf16.msra.mxu0 %v4421
      %4450 = vmatprep.subr.bf16.mxu0 0
      %4451 = vmatpush1.bf16.msra.mxu0 %v4420
      %4452 = vmatprep.subr.bf16.mxu0 0
      %4453 = vmatpush2.bf16.msra.mxu0 0
      %4454 = vmatprep.subr.bf16.mxu0 0
      %4455 = vmatpush2.bf16.msra.mxu0 0
      %4456 = vmatprep.subr.bf16.mxu0 0
      %4457 = vmatpush2.bf16.msra.mxu0 0
      %4458 = vmatprep.subr.bf16.mxu0 0
      %4459 = vmatpush2.bf16.msra.mxu0 0
      %4460 = vmatprep.subr.bf16.mxu0 0
      %4461 = vmatpush2.bf16.msra.mxu0 0
      %4462 = vmatprep.subr.bf16.mxu0 0
      %4463 = vmatpush2.bf16.msra.mxu0 0
      %4464 = vmatprep.subr.bf16.mxu0 0
      %4465 = vmatpush2.bf16.msra.mxu0 0
      %4466 = vmatprep.subr.bf16.mxu0 0
      %4467 = vmatpush2.bf16.msra.mxu0 0
      %4468 = vmatprep.mubr.bf16.mxu0 0
      %4469 = vmatmul.mubr.bf16.gmra.mxu0 %v4372
      %v4470 = vpop.f32.mrf.mxu0
      %v4471 = vadd.f32 0.0, %v4470
      %v4472 = vpop.f32.mrf.mxu0
      %v4473 = vpop.f32.mrf.mxu0
      %v4474 = vpop.f32.mrf.mxu0
      %4475 = vmatprep.mubr.bf16.mxu0 0
      %4476 = vmatmul.mubr.bf16.gmra.mxu0 %v4373
      %v4477 = vpop.f32.mrf.mxu0
      %v4478 = vadd.f32 0.0, %v4477
      %v4479 = vpop.f32.mrf.mxu0
      %v4480 = vpop.f32.mrf.mxu0
      %v4481 = vpop.f32.mrf.mxu0
      %4482 = vmatprep.mubr.bf16.mxu0 0
      %4483 = vmatmul.mubr.bf16.gmra.mxu0 %v4374
      %v4484 = vpop.f32.mrf.mxu0
      %v4485 = vadd.f32 0.0, %v4484
      %v4486 = vpop.f32.mrf.mxu0
      %v4487 = vpop.f32.mrf.mxu0
      %v4488 = vpop.f32.mrf.mxu0
      %4489 = vmatprep.mubr.bf16.mxu0 0
      %4490 = vmatmul.mubr.bf16.gmra.mxu0 %v4375
      %v4491 = vpop.f32.mrf.mxu0
      %v4492 = vadd.f32 0.0, %v4491
      %v4493 = vpop.f32.mrf.mxu0
      %v4494 = vpop.f32.mrf.mxu0
      %v4495 = vpop.f32.mrf.mxu0
      %4496 = vmatprep.mubr.bf16.mxu0 0
      %4497 = vmatmul.mubr.bf16.gmra.mxu0 %v4376
      %v4498 = vpop.f32.mrf.mxu0
      %v4499 = vadd.f32 0.0, %v4498
      %v4500 = vpop.f32.mrf.mxu0
      %v4501 = vpop.f32.mrf.mxu0
      %v4502 = vpop.f32.mrf.mxu0
      %4503 = vmatprep.mubr.bf16.mxu0 0
      %4504 = vmatmul.mubr.bf16.gmra.mxu0 %v4377
      %v4505 = vpop.f32.mrf.mxu0
      %v4506 = vadd.f32 0.0, %v4505
      %v4507 = vpop.f32.mrf.mxu0
      %v4508 = vpop.f32.mrf.mxu0
      %v4509 = vpop.f32.mrf.mxu0
      %4510 = vmatprep.mubr.bf16.mxu0 0
      %4511 = vmatmul.mubr.bf16.gmra.mxu0 %v4378
      %v4512 = vpop.f32.mrf.mxu0
      %v4513 = vadd.f32 0.0, %v4512
      %v4514 = vpop.f32.mrf.mxu0
      %v4515 = vpop.f32.mrf.mxu0
      %v4516 = vpop.f32.mrf.mxu0
      %4517 = vmatprep.mubr.bf16.mxu0 0
      %4518 = vmatmul.mubr.bf16.gmra.mxu0 %v4379
      %v4519 = vpop.f32.mrf.mxu0
      %v4520 = vadd.f32 0.0, %v4519
      %v4521 = vpop.f32.mrf.mxu0
      %v4522 = vpop.f32.mrf.mxu0
      %v4523 = vpop.f32.mrf.mxu0
      %4524 = vdwg.mxu0
      %v4525 = vadd.f32 %v4299, %v4471
      %v4526 = vadd.f32 %v4300, %v4478
      %v4527 = vadd.f32 %v4301, %v4485
      %v4528 = vadd.f32 %v4302, %v4492
      %v4529 = vadd.f32 %v4303, %v4499
      %v4530 = vadd.f32 %v4304, %v4506
      %v4531 = vadd.f32 %v4305, %v4513
      %v4532 = vadd.f32 %v4306, %v4520
      %v4533 = vld [vmem:[#allocation2 + $0x10] sm:$0xf]
      %v4534 = vld [vmem:[#allocation2 + $0x14] sm:$0xf]
      %v4535 = vld [vmem:[#allocation2 + $0x18] sm:$0xf]
      %v4536 = vld [vmem:[#allocation2 + $0x1c] sm:$0xf]
      %v4537 = vld [vmem:[#allocation2 + $0x20] sm:$0xf]
      %v4538 = vld [vmem:[#allocation2 + $0x24] sm:$0xf]
      %v4539 = vld [vmem:[#allocation2 + $0x28] sm:$0xf]
      %v4540 = vld [vmem:[#allocation2 + $0x2c] sm:$0xf]
      %v4541 = vld [vmem:[#allocation2 + $0x30] sm:$0xf]
      %v4542 = vld [vmem:[#allocation2 + $0x34] sm:$0xf]
      %v4543 = vld [vmem:[#allocation2 + $0x38] sm:$0xf]
      %v4544 = vld [vmem:[#allocation2 + $0x3c] sm:$0xf]
      %v4545 = vld [vmem:[#allocation2 + $0x40] sm:$0xf]
      %v4546 = vld [vmem:[#allocation2 + $0x44] sm:$0xf]
      %v4547 = vld [vmem:[#allocation2 + $0x48] sm:$0xf]
      %v4548 = vld [vmem:[#allocation2 + $0x4c] sm:$0xf]
      %v4549 = vld [vmem:[#allocation2 + $0x50] sm:$0x1]
      %s4550 = scalar_lea.vmem %s3, 448
      %v4551 = vld [vmem:[%s4550] sm:$0xf]
      %v4552 = vld [vmem:[%s4550 + $0x4] sm:$0xf]
      %v4553 = vld [vmem:[%s4550 + $0x8] sm:$0xf]
      %v4554 = vld [vmem:[%s4550 + $0xc] sm:$0xf]
      %v4555 = vld [vmem:[%s4550 + $0x10] sm:$0xf]
      %v4556 = vld [vmem:[%s4550 + $0x14] sm:$0xf]
      %v4557 = vld [vmem:[%s4550 + $0x18] sm:$0xf]
      %v4558 = vld [vmem:[%s4550 + $0x1c] sm:$0xf]
      %v4559 = vld [vmem:[%s4550 + $0x20] sm:$0xf]
      %v4560 = vld [vmem:[%s4550 + $0x24] sm:$0xf]
      %v4561 = vld [vmem:[%s4550 + $0x28] sm:$0xf]
      %v4562 = vld [vmem:[%s4550 + $0x2c] sm:$0xf]
      %v4563 = vld [vmem:[%s4550 + $0x30] sm:$0xf]
      %v4564 = vld [vmem:[%s4550 + $0x34] sm:$0xf]
      %v4565 = vld [vmem:[%s4550 + $0x38] sm:$0xf]
      %v4566 = vld [vmem:[%s4550 + $0x3c] sm:$0xf]
      %v4584 = vunpack.c.l.b16 %v4533
      %v4585 = vunpack.c.l.b16 %v4534
      %v4586 = vunpack.c.l.b16 %v4535
      %v4587 = vunpack.c.l.b16 %v4536
      %v4588 = vunpack.c.l.b16 %v4537
      %v4589 = vunpack.c.l.b16 %v4538
      %v4590 = vunpack.c.l.b16 %v4539
      %v4591 = vunpack.c.l.b16 %v4540
      %v4592 = vunpack.c.l.b16 %v4541
      %v4593 = vunpack.c.l.b16 %v4542
      %v4594 = vunpack.c.l.b16 %v4543
      %v4595 = vunpack.c.l.b16 %v4544
      %v4596 = vunpack.c.l.b16 %v4545
      %v4597 = vunpack.c.l.b16 %v4546
      %v4598 = vunpack.c.l.b16 %v4547
      %v4599 = vunpack.c.l.b16 %v4548
      %v4600 = vunpack.c.l.b16 %v4549
      %v4601 = vpack.c.b16 %v4585, %v4584
      %v4602 = vpack.c.b16 %v4587, %v4586
      %v4603 = vpack.c.b16 %v4589, %v4588
      %v4604 = vpack.c.b16 %v4591, %v4590
      %v4605 = vpack.c.b16 %v4593, %v4592
      %v4606 = vpack.c.b16 %v4595, %v4594
      %v4607 = vpack.c.b16 %v4597, %v4596
      %v4608 = vpack.c.b16 %v4599, %v4598
      %v4609 = vpack.c.b16 %v4600, %v4600
      %v4611 = vshrl.u32 %v4601, 16
      %v4613 = vshll.u32 %v4601, 16
      %v4615 = vrot.slane %v4613, 1
      %v4616 = vor.u32 %v4611, %v4615
      %v4618 = vshll.u32 %v4602, 16
      %v4620 = vrot.slane %v4618, 1
      %v4621 = vsel %vm819, %v4616, %v4620
      %v4622 = vshrl.u32 %v4602, 16
      %v4624 = vor.u32 %v4622, %v4620
      %v4626 = vshll.u32 %v4603, 16
      %v4628 = vrot.slane %v4626, 1
      %v4629 = vsel %vm819, %v4624, %v4628
      %v4630 = vshrl.u32 %v4603, 16
      %v4632 = vor.u32 %v4630, %v4628
      %v4634 = vshll.u32 %v4604, 16
      %v4636 = vrot.slane %v4634, 1
      %v4637 = vsel %vm819, %v4632, %v4636
      %v4638 = vshrl.u32 %v4604, 16
      %v4640 = vor.u32 %v4638, %v4636
      %v4642 = vshll.u32 %v4605, 16
      %v4644 = vrot.slane %v4642, 1
      %v4645 = vsel %vm819, %v4640, %v4644
      %v4646 = vshrl.u32 %v4605, 16
      %v4648 = vor.u32 %v4646, %v4644
      %v4650 = vshll.u32 %v4606, 16
      %v4652 = vrot.slane %v4650, 1
      %v4653 = vsel %vm819, %v4648, %v4652
      %v4654 = vshrl.u32 %v4606, 16
      %v4656 = vor.u32 %v4654, %v4652
      %v4658 = vshll.u32 %v4607, 16
      %v4660 = vrot.slane %v4658, 1
      %v4661 = vsel %vm819, %v4656, %v4660
      %v4662 = vshrl.u32 %v4607, 16
      %v4664 = vor.u32 %v4662, %v4660
      %v4666 = vshll.u32 %v4608, 16
      %v4668 = vrot.slane %v4666, 1
      %v4669 = vsel %vm819, %v4664, %v4668
      %v4670 = vshrl.u32 %v4608, 16
      %v4672 = vor.u32 %v4670, %v4668
      %v4674 = vshll.u32 %v4609, 16
      %v4676 = vrot.slane %v4674, 1
      %v4677 = vsel %vm819, %v4672, %v4676
      %v4702 = vunpack.c.l.b16 %v4551
      %v4703 = vunpack.c.l.b16 %v4552
      %v4704 = vunpack.c.l.b16 %v4553
      %v4705 = vunpack.c.l.b16 %v4554
      %v4706 = vunpack.c.l.b16 %v4555
      %v4707 = vunpack.c.l.b16 %v4556
      %v4708 = vunpack.c.l.b16 %v4557
      %v4709 = vunpack.c.l.b16 %v4558
      %v4710 = vunpack.c.l.b16 %v4559
      %v4711 = vunpack.c.l.b16 %v4560
      %v4712 = vunpack.c.l.b16 %v4561
      %v4713 = vunpack.c.l.b16 %v4562
      %v4714 = vunpack.c.l.b16 %v4563
      %v4715 = vunpack.c.l.b16 %v4564
      %v4716 = vunpack.c.l.b16 %v4565
      %v4717 = vunpack.c.l.b16 %v4566
      %v4718 = vpack.c.b16 %v4703, %v4702
      %v4719 = vpack.c.b16 %v4705, %v4704
      %v4720 = vpack.c.b16 %v4707, %v4706
      %v4721 = vpack.c.b16 %v4709, %v4708
      %v4722 = vpack.c.b16 %v4711, %v4710
      %v4723 = vpack.c.b16 %v4713, %v4712
      %v4724 = vpack.c.b16 %v4715, %v4714
      %v4725 = vpack.c.b16 %v4717, %v4716
      %4734 = vmatprep.subr.bf16.mxu0 0
      %4735 = vmatpush1.bf16.msra.mxu0 %v4725
      %4736 = vmatprep.subr.bf16.mxu0 0
      %4737 = vmatpush1.bf16.msra.mxu0 %v4724
      %4738 = vmatprep.subr.bf16.mxu0 0
      %4739 = vmatpush1.bf16.msra.mxu0 %v4723
      %4740 = vmatprep.subr.bf16.mxu0 0
      %4741 = vmatpush1.bf16.msra.mxu0 %v4722
      %4742 = vmatprep.subr.bf16.mxu0 0
      %4743 = vmatpush1.bf16.msra.mxu0 %v4721
      %4744 = vmatprep.subr.bf16.mxu0 0
      %4745 = vmatpush1.bf16.msra.mxu0 %v4720
      %4746 = vmatprep.subr.bf16.mxu0 0
      %4747 = vmatpush1.bf16.msra.mxu0 %v4719
      %4748 = vmatprep.subr.bf16.mxu0 0
      %4749 = vmatpush1.bf16.msra.mxu0 %v4718
      %4750 = vmatprep.subr.bf16.mxu0 0
      %4751 = vmatpush2.bf16.msra.mxu0 0
      %4752 = vmatprep.subr.bf16.mxu0 0
      %4753 = vmatpush2.bf16.msra.mxu0 0
      %4754 = vmatprep.subr.bf16.mxu0 0
      %4755 = vmatpush2.bf16.msra.mxu0 0
      %4756 = vmatprep.subr.bf16.mxu0 0
      %4757 = vmatpush2.bf16.msra.mxu0 0
      %4758 = vmatprep.subr.bf16.mxu0 0
      %4759 = vmatpush2.bf16.msra.mxu0 0
      %4760 = vmatprep.subr.bf16.mxu0 0
      %4761 = vmatpush2.bf16.msra.mxu0 0
      %4762 = vmatprep.subr.bf16.mxu0 0
      %4763 = vmatpush2.bf16.msra.mxu0 0
      %4764 = vmatprep.subr.bf16.mxu0 0
      %4765 = vmatpush2.bf16.msra.mxu0 0
      %4766 = vmatprep.mubr.bf16.mxu0 0
      %4767 = vmatmul.mubr.bf16.gmra.mxu0 %v4621
      %v4768 = vpop.f32.mrf.mxu0
      %v4769 = vadd.f32 0.0, %v4768
      %v4770 = vpop.f32.mrf.mxu0
      %v4771 = vpop.f32.mrf.mxu0
      %v4772 = vpop.f32.mrf.mxu0
      %4773 = vmatprep.mubr.bf16.mxu0 0
      %4774 = vmatmul.mubr.bf16.gmra.mxu0 %v4629
      %v4775 = vpop.f32.mrf.mxu0
      %v4776 = vadd.f32 0.0, %v4775
      %v4777 = vpop.f32.mrf.mxu0
      %v4778 = vpop.f32.mrf.mxu0
      %v4779 = vpop.f32.mrf.mxu0
      %4780 = vmatprep.mubr.bf16.mxu0 0
      %4781 = vmatmul.mubr.bf16.gmra.mxu0 %v4637
      %v4782 = vpop.f32.mrf.mxu0
      %v4783 = vadd.f32 0.0, %v4782
      %v4784 = vpop.f32.mrf.mxu0
      %v4785 = vpop.f32.mrf.mxu0
      %v4786 = vpop.f32.mrf.mxu0
      %4787 = vmatprep.mubr.bf16.mxu0 0
      %4788 = vmatmul.mubr.bf16.gmra.mxu0 %v4645
      %v4789 = vpop.f32.mrf.mxu0
      %v4790 = vadd.f32 0.0, %v4789
      %v4791 = vpop.f32.mrf.mxu0
      %v4792 = vpop.f32.mrf.mxu0
      %v4793 = vpop.f32.mrf.mxu0
      %4794 = vmatprep.mubr.bf16.mxu0 0
      %4795 = vmatmul.mubr.bf16.gmra.mxu0 %v4653
      %v4796 = vpop.f32.mrf.mxu0
      %v4797 = vadd.f32 0.0, %v4796
      %v4798 = vpop.f32.mrf.mxu0
      %v4799 = vpop.f32.mrf.mxu0
      %v4800 = vpop.f32.mrf.mxu0
      %4801 = vmatprep.mubr.bf16.mxu0 0
      %4802 = vmatmul.mubr.bf16.gmra.mxu0 %v4661
      %v4803 = vpop.f32.mrf.mxu0
      %v4804 = vadd.f32 0.0, %v4803
      %v4805 = vpop.f32.mrf.mxu0
      %v4806 = vpop.f32.mrf.mxu0
      %v4807 = vpop.f32.mrf.mxu0
      %4808 = vmatprep.mubr.bf16.mxu0 0
      %4809 = vmatmul.mubr.bf16.gmra.mxu0 %v4669
      %v4810 = vpop.f32.mrf.mxu0
      %v4811 = vadd.f32 0.0, %v4810
      %v4812 = vpop.f32.mrf.mxu0
      %v4813 = vpop.f32.mrf.mxu0
      %v4814 = vpop.f32.mrf.mxu0
      %4815 = vmatprep.mubr.bf16.mxu0 0
      %4816 = vmatmul.mubr.bf16.gmra.mxu0 %v4677
      %v4817 = vpop.f32.mrf.mxu0
      %v4818 = vadd.f32 0.0, %v4817
      %v4819 = vpop.f32.mrf.mxu0
      %v4820 = vpop.f32.mrf.mxu0
      %v4821 = vpop.f32.mrf.mxu0
      %4822 = vdwg.mxu0
      %v4823 = vadd.f32 %v4525, %v4769
      %v4824 = vadd.f32 %v4526, %v4776
      %v4825 = vadd.f32 %v4527, %v4783
      %v4826 = vadd.f32 %v4528, %v4790
      %v4827 = vadd.f32 %v4529, %v4797
      %v4828 = vadd.f32 %v4530, %v4804
      %v4829 = vadd.f32 %v4531, %v4811
      %v4830 = vadd.f32 %v4532, %v4818
      %v4831 = vld [vmem:[#allocation2 + $0x10] sm:$0xe]
      %s4832 = scalar_lea.vmem %s3, 512
      %v4833 = vld [vmem:[%s4832] sm:$0xf]
      %v4834 = vld [vmem:[%s4832 + $0x4] sm:$0xf]
      %v4835 = vld [vmem:[%s4832 + $0x8] sm:$0xf]
      %v4836 = vld [vmem:[%s4832 + $0xc] sm:$0xf]
      %v4837 = vld [vmem:[%s4832 + $0x10] sm:$0xf]
      %v4838 = vld [vmem:[%s4832 + $0x14] sm:$0xf]
      %v4839 = vld [vmem:[%s4832 + $0x18] sm:$0xf]
      %v4840 = vld [vmem:[%s4832 + $0x1c] sm:$0xf]
      %v4841 = vld [vmem:[%s4832 + $0x20] sm:$0xf]
      %v4842 = vld [vmem:[%s4832 + $0x24] sm:$0xf]
      %v4843 = vld [vmem:[%s4832 + $0x28] sm:$0xf]
      %v4844 = vld [vmem:[%s4832 + $0x2c] sm:$0xf]
      %v4845 = vld [vmem:[%s4832 + $0x30] sm:$0xf]
      %v4846 = vld [vmem:[%s4832 + $0x34] sm:$0xf]
      %v4847 = vld [vmem:[%s4832 + $0x38] sm:$0xf]
      %v4848 = vld [vmem:[%s4832 + $0x3c] sm:$0xf]
      %v4850 = vunpack.c.l.b16 %v4831
      %v4851 = vpack.c.b16 %v4585, %v4850
      %v4852 = vrot.slane %v4851, 1
      %v4853 = vrot.slane %v4602, 1
      %v4854 = vsel %vm3421, %v4852, %v4853
      %v4855 = vrot.slane %v4603, 1
      %v4856 = vsel %vm3421, %v4853, %v4855
      %v4857 = vrot.slane %v4604, 1
      %v4858 = vsel %vm3421, %v4855, %v4857
      %v4859 = vrot.slane %v4605, 1
      %v4860 = vsel %vm3421, %v4857, %v4859
      %v4861 = vrot.slane %v4606, 1
      %v4862 = vsel %vm3421, %v4859, %v4861
      %v4863 = vrot.slane %v4607, 1
      %v4864 = vsel %vm3421, %v4861, %v4863
      %v4865 = vrot.slane %v4608, 1
      %v4866 = vsel %vm3421, %v4863, %v4865
      %v4867 = vrot.slane %v4609, 1
      %v4868 = vsel %vm3421, %v4865, %v4867
      %v4893 = vunpack.c.l.b16 %v4833
      %v4894 = vunpack.c.l.b16 %v4834
      %v4895 = vunpack.c.l.b16 %v4835
      %v4896 = vunpack.c.l.b16 %v4836
      %v4897 = vunpack.c.l.b16 %v4837
      %v4898 = vunpack.c.l.b16 %v4838
      %v4899 = vunpack.c.l.b16 %v4839
      %v4900 = vunpack.c.l.b16 %v4840
      %v4901 = vunpack.c.l.b16 %v4841
      %v4902 = vunpack.c.l.b16 %v4842
      %v4903 = vunpack.c.l.b16 %v4843
      %v4904 = vunpack.c.l.b16 %v4844
      %v4905 = vunpack.c.l.b16 %v4845
      %v4906 = vunpack.c.l.b16 %v4846
      %v4907 = vunpack.c.l.b16 %v4847
      %v4908 = vunpack.c.l.b16 %v4848
      %v4909 = vpack.c.b16 %v4894, %v4893
      %v4910 = vpack.c.b16 %v4896, %v4895
      %v4911 = vpack.c.b16 %v4898, %v4897
      %v4912 = vpack.c.b16 %v4900, %v4899
      %v4913 = vpack.c.b16 %v4902, %v4901
      %v4914 = vpack.c.b16 %v4904, %v4903
      %v4915 = vpack.c.b16 %v4906, %v4905
      %v4916 = vpack.c.b16 %v4908, %v4907
      %4925 = vmatprep.subr.bf16.mxu0 0
      %4926 = vmatpush1.bf16.msra.mxu0 %v4916
      %4927 = vmatprep.subr.bf16.mxu0 0
      %4928 = vmatpush1.bf16.msra.mxu0 %v4915
      %4929 = vmatprep.subr.bf16.mxu0 0
      %4930 = vmatpush1.bf16.msra.mxu0 %v4914
      %4931 = vmatprep.subr.bf16.mxu0 0
      %4932 = vmatpush1.bf16.msra.mxu0 %v4913
      %4933 = vmatprep.subr.bf16.mxu0 0
      %4934 = vmatpush1.bf16.msra.mxu0 %v4912
      %4935 = vmatprep.subr.bf16.mxu0 0
      %4936 = vmatpush1.bf16.msra.mxu0 %v4911
      %4937 = vmatprep.subr.bf16.mxu0 0
      %4938 = vmatpush1.bf16.msra.mxu0 %v4910
      %4939 = vmatprep.subr.bf16.mxu0 0
      %4940 = vmatpush1.bf16.msra.mxu0 %v4909
      %4941 = vmatprep.subr.bf16.mxu0 0
      %4942 = vmatpush2.bf16.msra.mxu0 0
      %4943 = vmatprep.subr.bf16.mxu0 0
      %4944 = vmatpush2.bf16.msra.mxu0 0
      %4945 = vmatprep.subr.bf16.mxu0 0
      %4946 = vmatpush2.bf16.msra.mxu0 0
      %4947 = vmatprep.subr.bf16.mxu0 0
      %4948 = vmatpush2.bf16.msra.mxu0 0
      %4949 = vmatprep.subr.bf16.mxu0 0
      %4950 = vmatpush2.bf16.msra.mxu0 0
      %4951 = vmatprep.subr.bf16.mxu0 0
      %4952 = vmatpush2.bf16.msra.mxu0 0
      %4953 = vmatprep.subr.bf16.mxu0 0
      %4954 = vmatpush2.bf16.msra.mxu0 0
      %4955 = vmatprep.subr.bf16.mxu0 0
      %4956 = vmatpush2.bf16.msra.mxu0 0
      %4957 = vmatprep.mubr.bf16.mxu0 0
      %4958 = vmatmul.mubr.bf16.gmra.mxu0 %v4854
      %v4959 = vpop.f32.mrf.mxu0
      %v4960 = vadd.f32 0.0, %v4959
      %v4961 = vpop.f32.mrf.mxu0
      %v4962 = vpop.f32.mrf.mxu0
      %v4963 = vpop.f32.mrf.mxu0
      %4964 = vmatprep.mubr.bf16.mxu0 0
      %4965 = vmatmul.mubr.bf16.gmra.mxu0 %v4856
      %v4966 = vpop.f32.mrf.mxu0
      %v4967 = vadd.f32 0.0, %v4966
      %v4968 = vpop.f32.mrf.mxu0
      %v4969 = vpop.f32.mrf.mxu0
      %v4970 = vpop.f32.mrf.mxu0
      %4971 = vmatprep.mubr.bf16.mxu0 0
      %4972 = vmatmul.mubr.bf16.gmra.mxu0 %v4858
      %v4973 = vpop.f32.mrf.mxu0
      %v4974 = vadd.f32 0.0, %v4973
      %v4975 = vpop.f32.mrf.mxu0
      %v4976 = vpop.f32.mrf.mxu0
      %v4977 = vpop.f32.mrf.mxu0
      %4978 = vmatprep.mubr.bf16.mxu0 0
      %4979 = vmatmul.mubr.bf16.gmra.mxu0 %v4860
      %v4980 = vpop.f32.mrf.mxu0
      %v4981 = vadd.f32 0.0, %v4980
      %v4982 = vpop.f32.mrf.mxu0
      %v4983 = vpop.f32.mrf.mxu0
      %v4984 = vpop.f32.mrf.mxu0
      %4985 = vmatprep.mubr.bf16.mxu0 0
      %4986 = vmatmul.mubr.bf16.gmra.mxu0 %v4862
      %v4987 = vpop.f32.mrf.mxu0
      %v4988 = vadd.f32 0.0, %v4987
      %v4989 = vpop.f32.mrf.mxu0
      %v4990 = vpop.f32.mrf.mxu0
      %v4991 = vpop.f32.mrf.mxu0
      %4992 = vmatprep.mubr.bf16.mxu0 0
      %4993 = vmatmul.mubr.bf16.gmra.mxu0 %v4864
      %v4994 = vpop.f32.mrf.mxu0
      %v4995 = vadd.f32 0.0, %v4994
      %v4996 = vpop.f32.mrf.mxu0
      %v4997 = vpop.f32.mrf.mxu0
      %v4998 = vpop.f32.mrf.mxu0
      %4999 = vmatprep.mubr.bf16.mxu0 0
      %5000 = vmatmul.mubr.bf16.gmra.mxu0 %v4866
      %v5001 = vpop.f32.mrf.mxu0
      %v5002 = vadd.f32 0.0, %v5001
      %v5003 = vpop.f32.mrf.mxu0
      %v5004 = vpop.f32.mrf.mxu0
      %v5005 = vpop.f32.mrf.mxu0
      %5006 = vmatprep.mubr.bf16.mxu0 0
      %5007 = vmatmul.mubr.bf16.gmra.mxu0 %v4868
      %v5008 = vpop.f32.mrf.mxu0
      %v5009 = vadd.f32 0.0, %v5008
      %v5010 = vpop.f32.mrf.mxu0
      %v5011 = vpop.f32.mrf.mxu0
      %v5012 = vpop.f32.mrf.mxu0
      %5013 = vdwg.mxu0
      %v5014 = vadd.f32 %v4823, %v4960
      %v5015 = vadd.f32 %v4824, %v4967
      %v5016 = vadd.f32 %v4825, %v4974
      %v5017 = vadd.f32 %v4826, %v4981
      %v5018 = vadd.f32 %v4827, %v4988
      %v5019 = vadd.f32 %v4828, %v4995
      %v5020 = vadd.f32 %v4829, %v5002
      %v5021 = vadd.f32 %v4830, %v5009
      %v5022 = vld [vmem:[%s4] sm:$0x1]
      %v5024 = vlaneseq
      %v5025 = vshrl.u32 %v5024, 7
      %v5026 = vsub.s32 0, %v5025
      %v5027 = vrot.slane %v5022, %v5026
      %v5029 = vadd.f32 %v5014, %v5027
      %v5030 = vadd.f32 %v5015, %v5027
      %v5031 = vadd.f32 %v5016, %v5027
      %v5032 = vadd.f32 %v5017, %v5027
      %v5033 = vadd.f32 %v5018, %v5027
      %v5034 = vadd.f32 %v5019, %v5027
      %v5035 = vadd.f32 %v5020, %v5027
      %v5036 = vadd.f32 %v5021, %v5027
      %v5037 = vld [vmem:[%s273 + $0xc] sm:$0xf]
      %v5038 = vld [vmem:[%s273 + $0x1c] sm:$0xf]
      %v5039 = vld [vmem:[%s273 + $0x2c] sm:$0xf]
      %v5040 = vld [vmem:[%s273 + $0x3c] sm:$0xf]
      %v5041 = vld [vmem:[%s273 + $0x4c] sm:$0xf]
      %v5042 = vld [vmem:[%s273 + $0x5c] sm:$0xf]
      %v5043 = vld [vmem:[%s273 + $0x6c] sm:$0xf]
      %v5044 = vld [vmem:[%s273 + $0x7c] sm:$0xf]
      %v5045 = vld [vmem:[%s273 + $0x8c] sm:$0xf]
      %v5046 = vld [vmem:[%s273 + $0x9c] sm:$0xf]
      %v5047 = vld [vmem:[%s273 + $0xac] sm:$0xf]
      %v5048 = vld [vmem:[%s273 + $0xbc] sm:$0xf]
      %v5049 = vld [vmem:[%s273 + $0xcc] sm:$0xf]
      %v5050 = vld [vmem:[%s273 + $0xdc] sm:$0xf]
      %v5051 = vld [vmem:[%s273 + $0xec] sm:$0xf]
      %v5052 = vld [vmem:[%s273 + $0xfc] sm:$0xf]
      %v5053 = vld [vmem:[%s5] sm:$0xf]
      %v5054 = vld [vmem:[%s5 + $0x4] sm:$0xf]
      %v5055 = vld [vmem:[%s5 + $0x8] sm:$0xf]
      %v5056 = vld [vmem:[%s5 + $0xc] sm:$0xf]
      %v5057 = vld [vmem:[%s5 + $0x10] sm:$0xf]
      %v5058 = vld [vmem:[%s5 + $0x14] sm:$0xf]
      %v5059 = vld [vmem:[%s5 + $0x18] sm:$0xf]
      %v5060 = vld [vmem:[%s5 + $0x1c] sm:$0xf]
      %v5061 = vld [vmem:[%s5 + $0x20] sm:$0xf]
      %v5062 = vld [vmem:[%s5 + $0x24] sm:$0xf]
      %v5063 = vld [vmem:[%s5 + $0x28] sm:$0xf]
      %v5064 = vld [vmem:[%s5 + $0x2c] sm:$0xf]
      %v5065 = vld [vmem:[%s5 + $0x30] sm:$0xf]
      %v5066 = vld [vmem:[%s5 + $0x34] sm:$0xf]
      %v5067 = vld [vmem:[%s5 + $0x38] sm:$0xf]
      %v5068 = vld [vmem:[%s5 + $0x3c] sm:$0xf]
      %v5085 = vunpack.c.l.b16 %v5037
      %v5086 = vunpack.c.l.b16 %v5038
      %v5087 = vunpack.c.l.b16 %v5039
      %v5088 = vunpack.c.l.b16 %v5040
      %v5089 = vunpack.c.l.b16 %v5041
      %v5090 = vunpack.c.l.b16 %v5042
      %v5091 = vunpack.c.l.b16 %v5043
      %v5092 = vunpack.c.l.b16 %v5044
      %v5093 = vunpack.c.l.b16 %v5045
      %v5094 = vunpack.c.l.b16 %v5046
      %v5095 = vunpack.c.l.b16 %v5047
      %v5096 = vunpack.c.l.b16 %v5048
      %v5097 = vunpack.c.l.b16 %v5049
      %v5098 = vunpack.c.l.b16 %v5050
      %v5099 = vunpack.c.l.b16 %v5051
      %v5100 = vunpack.c.l.b16 %v5052
      %v5101 = vpack.c.b16 %v5086, %v5085
      %v5102 = vpack.c.b16 %v5088, %v5087
      %v5103 = vpack.c.b16 %v5090, %v5089
      %v5104 = vpack.c.b16 %v5092, %v5091
      %v5105 = vpack.c.b16 %v5094, %v5093
      %v5106 = vpack.c.b16 %v5096, %v5095
      %v5107 = vpack.c.b16 %v5098, %v5097
      %v5108 = vpack.c.b16 %v5100, %v5099
      %v5133 = vunpack.c.l.b16 %v5053
      %v5134 = vunpack.c.l.b16 %v5054
      %v5135 = vunpack.c.l.b16 %v5055
      %v5136 = vunpack.c.l.b16 %v5056
      %v5137 = vunpack.c.l.b16 %v5057
      %v5138 = vunpack.c.l.b16 %v5058
      %v5139 = vunpack.c.l.b16 %v5059
      %v5140 = vunpack.c.l.b16 %v5060
      %v5141 = vunpack.c.l.b16 %v5061
      %v5142 = vunpack.c.l.b16 %v5062
      %v5143 = vunpack.c.l.b16 %v5063
      %v5144 = vunpack.c.l.b16 %v5064
      %v5145 = vunpack.c.l.b16 %v5065
      %v5146 = vunpack.c.l.b16 %v5066
      %v5147 = vunpack.c.l.b16 %v5067
      %v5148 = vunpack.c.l.b16 %v5068
      %v5149 = vpack.c.b16 %v5134, %v5133
      %v5150 = vpack.c.b16 %v5136, %v5135
      %v5151 = vpack.c.b16 %v5138, %v5137
      %v5152 = vpack.c.b16 %v5140, %v5139
      %v5153 = vpack.c.b16 %v5142, %v5141
      %v5154 = vpack.c.b16 %v5144, %v5143
      %v5155 = vpack.c.b16 %v5146, %v5145
      %v5156 = vpack.c.b16 %v5148, %v5147
      %5165 = vmatprep.subr.bf16.mxu0 0
      %5166 = vmatpush1.bf16.msra.mxu0 %v5156
      %5167 = vmatprep.subr.bf16.mxu0 0
      %5168 = vmatpush1.bf16.msra.mxu0 %v5155
      %5169 = vmatprep.subr.bf16.mxu0 0
      %5170 = vmatpush1.bf16.msra.mxu0 %v5154
      %5171 = vmatprep.subr.bf16.mxu0 0
      %5172 = vmatpush1.bf16.msra.mxu0 %v5153
      %5173 = vmatprep.subr.bf16.mxu0 0
      %5174 = vmatpush1.bf16.msra.mxu0 %v5152
      %5175 = vmatprep.subr.bf16.mxu0 0
      %5176 = vmatpush1.bf16.msra.mxu0 %v5151
      %5177 = vmatprep.subr.bf16.mxu0 0
      %5178 = vmatpush1.bf16.msra.mxu0 %v5150
      %5179 = vmatprep.subr.bf16.mxu0 0
      %5180 = vmatpush1.bf16.msra.mxu0 %v5149
      %5181 = vmatprep.subr.bf16.mxu0 0
      %5182 = vmatpush2.bf16.msra.mxu0 0
      %5183 = vmatprep.subr.bf16.mxu0 0
      %5184 = vmatpush2.bf16.msra.mxu0 0
      %5185 = vmatprep.subr.bf16.mxu0 0
      %5186 = vmatpush2.bf16.msra.mxu0 0
      %5187 = vmatprep.subr.bf16.mxu0 0
      %5188 = vmatpush2.bf16.msra.mxu0 0
      %5189 = vmatprep.subr.bf16.mxu0 0
      %5190 = vmatpush2.bf16.msra.mxu0 0
      %5191 = vmatprep.subr.bf16.mxu0 0
      %5192 = vmatpush2.bf16.msra.mxu0 0
      %5193 = vmatprep.subr.bf16.mxu0 0
      %5194 = vmatpush2.bf16.msra.mxu0 0
      %5195 = vmatprep.subr.bf16.mxu0 0
      %5196 = vmatpush2.bf16.msra.mxu0 0
      %5197 = vmatprep.mubr.bf16.mxu0 0
      %5198 = vmatmul.mubr.bf16.gmra.mxu0 %v5101
      %v5199 = vpop.f32.mrf.mxu0
      %v5200 = vadd.f32 0.0, %v5199
      %v5201 = vpop.f32.mrf.mxu0
      %v5202 = vpop.f32.mrf.mxu0
      %v5203 = vpop.f32.mrf.mxu0
      %5204 = vmatprep.mubr.bf16.mxu0 0
      %5205 = vmatmul.mubr.bf16.gmra.mxu0 %v5102
      %v5206 = vpop.f32.mrf.mxu0
      %v5207 = vadd.f32 0.0, %v5206
      %v5208 = vpop.f32.mrf.mxu0
      %v5209 = vpop.f32.mrf.mxu0
      %v5210 = vpop.f32.mrf.mxu0
      %5211 = vmatprep.mubr.bf16.mxu0 0
      %5212 = vmatmul.mubr.bf16.gmra.mxu0 %v5103
      %v5213 = vpop.f32.mrf.mxu0
      %v5214 = vadd.f32 0.0, %v5213
      %v5215 = vpop.f32.mrf.mxu0
      %v5216 = vpop.f32.mrf.mxu0
      %v5217 = vpop.f32.mrf.mxu0
      %5218 = vmatprep.mubr.bf16.mxu0 0
      %5219 = vmatmul.mubr.bf16.gmra.mxu0 %v5104
      %v5220 = vpop.f32.mrf.mxu0
      %v5221 = vadd.f32 0.0, %v5220
      %v5222 = vpop.f32.mrf.mxu0
      %v5223 = vpop.f32.mrf.mxu0
      %v5224 = vpop.f32.mrf.mxu0
      %5225 = vmatprep.mubr.bf16.mxu0 0
      %5226 = vmatmul.mubr.bf16.gmra.mxu0 %v5105
      %v5227 = vpop.f32.mrf.mxu0
      %v5228 = vadd.f32 0.0, %v5227
      %v5229 = vpop.f32.mrf.mxu0
      %v5230 = vpop.f32.mrf.mxu0
      %v5231 = vpop.f32.mrf.mxu0
      %5232 = vmatprep.mubr.bf16.mxu0 0
      %5233 = vmatmul.mubr.bf16.gmra.mxu0 %v5106
      %v5234 = vpop.f32.mrf.mxu0
      %v5235 = vadd.f32 0.0, %v5234
      %v5236 = vpop.f32.mrf.mxu0
      %v5237 = vpop.f32.mrf.mxu0
      %v5238 = vpop.f32.mrf.mxu0
      %5239 = vmatprep.mubr.bf16.mxu0 0
      %5240 = vmatmul.mubr.bf16.gmra.mxu0 %v5107
      %v5241 = vpop.f32.mrf.mxu0
      %v5242 = vadd.f32 0.0, %v5241
      %v5243 = vpop.f32.mrf.mxu0
      %v5244 = vpop.f32.mrf.mxu0
      %v5245 = vpop.f32.mrf.mxu0
      %5246 = vmatprep.mubr.bf16.mxu0 0
      %5247 = vmatmul.mubr.bf16.gmra.mxu0 %v5108
      %v5248 = vpop.f32.mrf.mxu0
      %v5249 = vadd.f32 0.0, %v5248
      %v5250 = vpop.f32.mrf.mxu0
      %v5251 = vpop.f32.mrf.mxu0
      %v5252 = vpop.f32.mrf.mxu0
      %5253 = vdwg.mxu0
      %v5254 = vadd.f32 %v5029, %v5200
      %v5255 = vadd.f32 %v5030, %v5207
      %v5256 = vadd.f32 %v5031, %v5214
      %v5257 = vadd.f32 %v5032, %v5221
      %v5258 = vadd.f32 %v5033, %v5228
      %v5259 = vadd.f32 %v5034, %v5235
      %v5260 = vadd.f32 %v5035, %v5242
      %v5261 = vadd.f32 %v5036, %v5249
      %v5262 = vld [vmem:[%s6] sm:$0x1]
      %v5264 = vlaneseq
      %v5265 = vshrl.u32 %v5264, 7
      %v5266 = vsub.s32 0, %v5265
      %v5267 = vrot.slane %v5262, %v5266
      %v5269 = vadd.f32 %v5254, %v5267
      %v5270 = vadd.f32 %v5255, %v5267
      %v5271 = vadd.f32 %v5256, %v5267
      %v5272 = vadd.f32 %v5257, %v5267
      %v5273 = vadd.f32 %v5258, %v5267
      %v5274 = vadd.f32 %v5259, %v5267
      %v5275 = vadd.f32 %v5260, %v5267
      %v5276 = vadd.f32 %v5261, %v5267
      %v5277 = vmax.f32 %v5269, 0.0
      %v5278 = vmax.f32 %v5270, 0.0
      %v5279 = vmax.f32 %v5271, 0.0
      %v5280 = vmax.f32 %v5272, 0.0
      %v5281 = vmax.f32 %v5273, 0.0
      %v5282 = vmax.f32 %v5274, 0.0
      %v5283 = vmax.f32 %v5275, 0.0
      %v5284 = vmax.f32 %v5276, 0.0
      %v5285 = vpack.c.bf16 %v5277, %v5277
      %v5286 = vpack.c.bf16 %v5278, %v5278
      %v5287 = vpack.c.bf16 %v5279, %v5279
      %v5288 = vpack.c.bf16 %v5280, %v5280
      %v5289 = vpack.c.bf16 %v5281, %v5281
      %v5290 = vpack.c.bf16 %v5282, %v5282
      %v5291 = vpack.c.bf16 %v5283, %v5283
      %v5292 = vpack.c.bf16 %v5284, %v5284
      %5293 = vst [vmem:[%s278] sm:$0xf] %v5285
      %5294 = vst [vmem:[%s278 + $0x4] sm:$0xf] %v5286
      %5295 = vst [vmem:[%s278 + $0x8] sm:$0xf] %v5287
      %5296 = vst [vmem:[%s278 + $0xc] sm:$0xf] %v5288
      %5297 = vst [vmem:[%s278 + $0x10] sm:$0xf] %v5289
      %5298 = vst [vmem:[%s278 + $0x14] sm:$0xf] %v5290
      %5299 = vst [vmem:[%s278 + $0x18] sm:$0xf] %v5291
      %5300 = vst [vmem:[%s278 + $0x1c] sm:$0xf] %v5292
      %p5301 = scmp.lt.s32.totalorder %s18, 1
      %s5302 = scalar_select %p5301, %s18, 1
      %s5303 = smul.addr %s5302, 8
      %s5304 = smul.addr %s5303, 4
      %s5305 = scalar_lea.vmem %s7, %s5304
      // Predicated region
      $region49: #{basic_block_forward.1} parent=47 // pred_check
        %p5306 = pneg %p188
      $region50: #{basic_block_forward.1} parent=47 // pred_check_branch
        %5308 = sbr.rel (%p5306) target = $region52
      $region51: #{basic_block_forward.1} parent=47 // pred_region
        _
      $region52: #{basic_block_forward.1} parent=47 // pred_fallthru
        _
    $region48: #{basic_block_forward.1} parent=5 // pred_fallthru
      _
    %p5309 = scmp.le.s32.totalorder 2, %s13
    // Predicated region
    $region53: #{basic_block_forward.1} parent=5 // pred_check
      %p5310 = pneg %p5309
    $region54: #{basic_block_forward.1} parent=5 // pred_check_branch
      %5312 = sbr.rel (%p5310) target = $region56
    $region55: #{basic_block_forward.1} parent=5 // pred_region
      %s5313 = ssub.s32 %s13, 2
      // Predicated region
      $region57: #{basic_block_forward.1} parent=55 // pred_check
        %p5314 = pneg %p194
      $region58: #{basic_block_forward.1} parent=55 // pred_check_branch
        %5316 = sbr.rel (%p5314) target = $region60
      $region59: #{basic_block_forward.1} parent=55 // pred_region
        %p5317 = scmp.lt.s32.totalorder %s19, 1
        %s5318 = scalar_select %p5317, %s19, 1
        %s5319 = smul.addr %s5318, 8
        %s5320 = smul.addr %s5319, 4
        %s5321 = scalar_lea.vmem %s7, %s5320
      $region60: #{basic_block_forward.1} parent=55 // pred_fallthru
        _
    $region56: #{basic_block_forward.1} parent=5 // pred_fallthru
      _
  $region6: #{basic_block_forward.1} parent=0 // loop_footer
    %s17 = sadd.s32 1, %s13
  $region7: #{basic_block_forward.1} parent=0 // loop_footer_branch
    %12 = sbr.rel target = $region3
  $region8: #{basic_block_forward.1} parent=0 // loop_exit
    _

</llo_original>
